<compile_context>
chip_gen: v6e
topology: v6e:2x2x1
jax: 0.10.0
libtpu: 0.0.40
codegen_flags: <defaults>
</compile_context>

<pallas_src>
import functools

import jax
import jax.numpy as jnp
from jax.experimental import pallas as pl
from jax.experimental.pallas import tpu as pltpu

_OUT_LANES = 128  # lane-dense output slab width


def _combined_kernel(x_ref, pool_ref, wc_ref, bc_ref,
                     wf_ref, bf_ref,
                     w1s_ref, w1a_ref, b1_ref,
                     w2_ref, b2_ref,
                     w3_ref, b3_ref,
                     out_ref,
                     patch_ref,
                     *, C, Wp, n_rows, Ds, threshold, weight):
    # ---- in-VMEM im2col: 9 row-shifted slices -> (n_rows, 9C) patch slab ----
    for dh in range(3):
        for dw in range(3):
            idx = dh * 3 + dw
            off = dh * Wp + dw
            patch_ref[:, idx * C:(idx + 1) * C] = x_ref[off:off + n_rows, :]

    # ---- fused (shufflenet|alexnet) backbone stand-in: conv3x3 -> ReLU -> GAP
    y = jnp.dot(patch_ref[...], wc_ref[...],
                preferred_element_type=jnp.float32) + bc_ref[...]    # (n_rows, Ds+Da)
    y = jnp.maximum(y, 0.0)
    # per-sample global average pool as a matmul (MXU, not XLU reduce); the
    # pooling matrix also zero-masks padded/garbage rows.
    feats = jnp.dot(pool_ref[...], y,
                    preferred_element_type=jnp.float32)              # (B, Ds+Da)
    sf = feats[:, :Ds]                                               # shufflenet feats
    af = feats[:, Ds:]                                               # alexnet feats

    # ---- classifier head (exact; dropout = identity in eval mode) ----
    gate = jax.nn.sigmoid(
        jnp.dot(sf, wf_ref[...], preferred_element_type=jnp.float32)
        + bf_ref[...])                                               # (B, 1)
    mod_af = jnp.where(gate < threshold, af * weight, af)            # (B, Da)
    h1 = jnp.maximum(
        jnp.dot(sf, w1s_ref[...], preferred_element_type=jnp.float32)
        + jnp.dot(mod_af, w1a_ref[...], preferred_element_type=jnp.float32)
        + b1_ref[...], 0.0)
    h2 = jnp.maximum(
        jnp.dot(h1, w2_ref[...], preferred_element_type=jnp.float32)
        + b2_ref[...], 0.0)
    # w3/b3 are zero-padded to 128 lanes -> single lane-dense unmasked store.
    out_ref[...] = (jnp.dot(h2, w3_ref[...], preferred_element_type=jnp.float32)
                    + b3_ref[...])


def combined_model(x_nchw, params, threshold, weight):
    x = jnp.transpose(x_nchw, (0, 2, 3, 1)).astype(jnp.float32)   # NHWC
    B, H, W, C = x.shape
    Hp, Wp = H + 2, W + 2
    n_rows = B * Hp * Wp          # conv is evaluated at every padded pixel row
    HW = H * W

    # zero-ring pad + flatten to a (rows, C) slab; append a zero tail so the
    # nine shifted slices stay in-bounds.  No 9x im2col blowup in HBM.
    xpad = jnp.pad(x, ((0, 0), (1, 1), (1, 1), (0, 0)))
    x_flat = xpad.reshape(n_rows, C)
    tail = 2 * Wp + 2
    tail += (-(n_rows + tail)) % 8
    x_ext = jnp.pad(x_flat, ((0, tail), (0, 0)))

    # per-sample average-pool / validity-mask matrix: (B, n_rows)
    r = jnp.arange(n_rows)
    b_of_r = r // (Hp * Wp)
    i_of_r = (r % (Hp * Wp)) // Wp
    j_of_r = r % Wp
    valid = (i_of_r < H) & (j_of_r < W)
    pool = (b_of_r[None, :] == jnp.arange(B)[:, None]) & valid[None, :]
    pool = pool.astype(jnp.float32) * (1.0 / HW)

    # fuse both backbone projections into one weight (Cout = Ds + Da)
    Ds = params["shuffle_w"].shape[1]
    wc = jnp.concatenate([params["shuffle_w"], params["alex_w"]], axis=1)
    bc = jnp.concatenate([params["shuffle_b"], params["alex_b"]])[None, :]

    # fc1 weight split into shufflenet / alexnet halves (concat -> split matmul)
    w1s = params["w1"][:Ds]
    w1a = params["w1"][Ds:]

    # lane-pad the final classifier so the kernel's only HBM store is lane-dense
    n_cls = params["w3"].shape[1]
    w3p = jnp.zeros((params["w3"].shape[0], _OUT_LANES), jnp.float32)
    w3p = w3p.at[:, :n_cls].set(params["w3"])
    b3p = jnp.zeros((1, _OUT_LANES), jnp.float32).at[0, :n_cls].set(params["b3"])

    kern = functools.partial(_combined_kernel, C=C, Wp=Wp, n_rows=n_rows,
                             Ds=Ds, threshold=float(threshold),
                             weight=float(weight))

    out_pad = pl.pallas_call(
        kern,
        out_shape=jax.ShapeDtypeStruct((B, _OUT_LANES), jnp.float32),
        scratch_shapes=[pltpu.VMEM((n_rows, 9 * C), jnp.float32)],
    )(x_ext, pool, wc, bc,
      params["wf"], params["bf"].reshape(1, 1),
      w1s, w1a, params["b1"].reshape(1, -1),
      params["w2"], params["b2"].reshape(1, -1),
      w3p, b3p)
    return out_pad[:, :n_cls]


def reference_model(x_nchw, params, threshold, weight):
    """Plain-JAX reference mirroring the PyTorch forward (eval mode)."""
    x_nhwc = jnp.transpose(x_nchw, (0, 2, 3, 1))

    def ref_backbone(xh, w, b):
        B, H, W, C = xh.shape
        xp = jnp.pad(xh, ((0, 0), (1, 1), (1, 1), (0, 0)))
        taps = [xp[:, dh:dh + H, dw:dw + W, :] for dh in range(3) for dw in range(3)]
        patches = jnp.concatenate(taps, axis=-1).reshape(B, H * W, 9 * C)
        y = jnp.maximum(jnp.einsum("bpk,kc->bpc", patches, w) + b, 0.0)
        return jnp.mean(y, axis=1)

    sf = ref_backbone(x_nhwc, params["shuffle_w"], params["shuffle_b"])
    af = ref_backbone(x_nhwc, params["alex_w"], params["alex_b"])
    gate = jax.nn.sigmoid(sf @ params["wf"] + params["bf"])
    mod_af = jnp.where(gate < threshold, af * weight, af)
    comb = jnp.concatenate([sf, mod_af], axis=1)
    h1 = jnp.maximum(comb @ params["w1"] + params["b1"], 0.0)
    h2 = jnp.maximum(h1 @ params["w2"] + params["b2"], 0.0)
    return h2 @ params["w3"] + params["b3"]


if __name__ == "__main__":
    # image x: (B=2, C=3, H=16, W=16) NCHW (PyTorch convention)
    # shufflenet_features Ds=32, alexnet_features Da=64,
    # hp.filters=32, hp.num_dense_units=16, final classes=2
    B, C, H, W = 2, 3, 16, 16
    Ds, Da = 32, 64
    FILTERS, DENSE = 32, 16
    THRESHOLD, WEIGHT = 0.5, 0.3

    key = jax.random.PRNGKey(0)
    ks = jax.random.split(key, 12)
    scale = 0.1
    params = {
        "shuffle_w": scale * jax.random.normal(ks[0], (9 * C, Ds), jnp.float32),
        "shuffle_b": scale * jax.random.normal(ks[1], (Ds,), jnp.float32),
        "alex_w": scale * jax.random.normal(ks[2], (9 * C, Da), jnp.float32),
        "alex_b": scale * jax.random.normal(ks[3], (Da,), jnp.float32),
        "wf": scale * jax.random.normal(ks[4], (Ds, 1), jnp.float32),
        "bf": scale * jax.random.normal(ks[5], (1,), jnp.float32),
        "w1": scale * jax.random.normal(ks[6], (Ds + Da, FILTERS), jnp.float32),
        "b1": scale * jax.random.normal(ks[7], (FILTERS,), jnp.float32),
        "w2": scale * jax.random.normal(ks[8], (FILTERS, DENSE), jnp.float32),
        "b2": scale * jax.random.normal(ks[9], (DENSE,), jnp.float32),
        "w3": scale * jax.random.normal(ks[10], (DENSE, 2), jnp.float32),
        "b3": scale * jax.random.normal(ks[11], (2,), jnp.float32),
    }

    x = jax.random.normal(jax.random.PRNGKey(1), (B, C, H, W), jnp.float32)

    out = jax.block_until_ready(combined_model(x, params, THRESHOLD, WEIGHT))
    ref = reference_model(x, params, THRESHOLD, WEIGHT)
    assert out.shape == (B, 2), out.shape
    assert jnp.allclose(out, ref, atol=1e-4, rtol=1e-4), (out, ref)

    print("KERNEL_OK")
</pallas_src>

<mosaic_0001>
module attributes {stable_mosaic.version = 11 : i64} {
  func.func @_combined_kernel(%arg0: memref<688x3xf32, #tpu.memory_space<vmem>>, %arg1: memref<2x648xf32, #tpu.memory_space<vmem>>, %arg2: memref<27x96xf32, #tpu.memory_space<vmem>>, %arg3: memref<1x96xf32, #tpu.memory_space<vmem>>, %arg4: memref<32x1xf32, #tpu.memory_space<vmem>>, %arg5: memref<1x1xf32, #tpu.memory_space<vmem>>, %arg6: memref<32x32xf32, #tpu.memory_space<vmem>>, %arg7: memref<64x32xf32, #tpu.memory_space<vmem>>, %arg8: memref<1x32xf32, #tpu.memory_space<vmem>>, %arg9: memref<32x16xf32, #tpu.memory_space<vmem>>, %arg10: memref<1x16xf32, #tpu.memory_space<vmem>>, %arg11: memref<16x128xf32, #tpu.memory_space<vmem>>, %arg12: memref<1x128xf32, #tpu.memory_space<vmem>>, %arg13: memref<2x128xf32, #tpu.memory_space<vmem>>, %arg14: memref<648x27xf32, #tpu.memory_space<vmem>>) attributes {dimension_semantics = [], scalar_prefetch = 0 : i64, scratch_operands = 1 : i64, tpu.core_type = #tpu.core_type<tc>} {
    %c0 = arith.constant 0 : index
    %c0_0 = arith.constant 0 : index
    %0 = vector.load %arg0[%c0, %c0_0] : memref<688x3xf32, #tpu.memory_space<vmem>>, vector<648x3xf32>
    %c0_1 = arith.constant 0 : index
    %c0_2 = arith.constant 0 : index
    %1 = vector.load %arg14[%c0_1, %c0_2] : memref<648x27xf32, #tpu.memory_space<vmem>>, vector<648x3xf32>
    tpu.vector_store %arg14[%c0_1, %c0_2], %0 {strides = array<i32>} : memref<648x27xf32, #tpu.memory_space<vmem>>, vector<648x3xf32>,
    %c1 = arith.constant 1 : index
    %c0_3 = arith.constant 0 : index
    %2 = vector.load %arg0[%c1, %c0_3] : memref<688x3xf32, #tpu.memory_space<vmem>>, vector<648x3xf32>
    %c0_4 = arith.constant 0 : index
    %c3 = arith.constant 3 : index
    %3 = vector.load %arg14[%c0_4, %c3] : memref<648x27xf32, #tpu.memory_space<vmem>>, vector<648x3xf32>
    tpu.vector_store %arg14[%c0_4, %c3], %2 {strides = array<i32>} : memref<648x27xf32, #tpu.memory_space<vmem>>, vector<648x3xf32>,
    %c2 = arith.constant 2 : index
    %c0_5 = arith.constant 0 : index
    %4 = vector.load %arg0[%c2, %c0_5] : memref<688x3xf32, #tpu.memory_space<vmem>>, vector<648x3xf32>
    %c0_6 = arith.constant 0 : index
    %c6 = arith.constant 6 : index
    %5 = vector.load %arg14[%c0_6, %c6] : memref<648x27xf32, #tpu.memory_space<vmem>>, vector<648x3xf32>
    tpu.vector_store %arg14[%c0_6, %c6], %4 {strides = array<i32>} : memref<648x27xf32, #tpu.memory_space<vmem>>, vector<648x3xf32>,
    %c18 = arith.constant 18 : index
    %c0_7 = arith.constant 0 : index
    %6 = vector.load %arg0[%c18, %c0_7] : memref<688x3xf32, #tpu.memory_space<vmem>>, vector<648x3xf32>
    %c0_8 = arith.constant 0 : index
    %c9 = arith.constant 9 : index
    %7 = vector.load %arg14[%c0_8, %c9] : memref<648x27xf32, #tpu.memory_space<vmem>>, vector<648x3xf32>
    tpu.vector_store %arg14[%c0_8, %c9], %6 {strides = array<i32>} : memref<648x27xf32, #tpu.memory_space<vmem>>, vector<648x3xf32>,
    %c19 = arith.constant 19 : index
    %c0_9 = arith.constant 0 : index
    %8 = vector.load %arg0[%c19, %c0_9] : memref<688x3xf32, #tpu.memory_space<vmem>>, vector<648x3xf32>
    %c0_10 = arith.constant 0 : index
    %c12 = arith.constant 12 : index
    %9 = vector.load %arg14[%c0_10, %c12] : memref<648x27xf32, #tpu.memory_space<vmem>>, vector<648x3xf32>
    tpu.vector_store %arg14[%c0_10, %c12], %8 {strides = array<i32>} : memref<648x27xf32, #tpu.memory_space<vmem>>, vector<648x3xf32>,
    %c20 = arith.constant 20 : index
    %c0_11 = arith.constant 0 : index
    %10 = vector.load %arg0[%c20, %c0_11] : memref<688x3xf32, #tpu.memory_space<vmem>>, vector<648x3xf32>
    %c0_12 = arith.constant 0 : index
    %c15 = arith.constant 15 : index
    %11 = vector.load %arg14[%c0_12, %c15] : memref<648x27xf32, #tpu.memory_space<vmem>>, vector<648x3xf32>
    tpu.vector_store %arg14[%c0_12, %c15], %10 {strides = array<i32>} : memref<648x27xf32, #tpu.memory_space<vmem>>, vector<648x3xf32>,
    %c36 = arith.constant 36 : index
    %c0_13 = arith.constant 0 : index
    %12 = vector.load %arg0[%c36, %c0_13] : memref<688x3xf32, #tpu.memory_space<vmem>>, vector<648x3xf32>
    %c0_14 = arith.constant 0 : index
    %c18_15 = arith.constant 18 : index
    %13 = vector.load %arg14[%c0_14, %c18_15] : memref<648x27xf32, #tpu.memory_space<vmem>>, vector<648x3xf32>
    tpu.vector_store %arg14[%c0_14, %c18_15], %12 {strides = array<i32>} : memref<648x27xf32, #tpu.memory_space<vmem>>, vector<648x3xf32>,
    %c37 = arith.constant 37 : index
    %c0_16 = arith.constant 0 : index
    %14 = vector.load %arg0[%c37, %c0_16] : memref<688x3xf32, #tpu.memory_space<vmem>>, vector<648x3xf32>
    %c0_17 = arith.constant 0 : index
    %c21 = arith.constant 21 : index
    %15 = vector.load %arg14[%c0_17, %c21] : memref<648x27xf32, #tpu.memory_space<vmem>>, vector<648x3xf32>
    tpu.vector_store %arg14[%c0_17, %c21], %14 {strides = array<i32>} : memref<648x27xf32, #tpu.memory_space<vmem>>, vector<648x3xf32>,
    %c38 = arith.constant 38 : index
    %c0_18 = arith.constant 0 : index
    %16 = vector.load %arg0[%c38, %c0_18] : memref<688x3xf32, #tpu.memory_space<vmem>>, vector<648x3xf32>
    %c0_19 = arith.constant 0 : index
    %c24 = arith.constant 24 : index
    %17 = vector.load %arg14[%c0_19, %c24] : memref<648x27xf32, #tpu.memory_space<vmem>>, vector<648x3xf32>
    tpu.vector_store %arg14[%c0_19, %c24], %16 {strides = array<i32>} : memref<648x27xf32, #tpu.memory_space<vmem>>, vector<648x3xf32>,
    %c0_20 = arith.constant 0 : index
    %c0_21 = arith.constant 0 : index
    %18 = vector.load %arg14[%c0_20, %c0_21] : memref<648x27xf32, #tpu.memory_space<vmem>>, vector<648x27xf32>
    %c0_22 = arith.constant 0 : index
    %c0_23 = arith.constant 0 : index
    %19 = vector.load %arg2[%c0_22, %c0_23] : memref<27x96xf32, #tpu.memory_space<vmem>>, vector<27x96xf32>
    %cst = arith.constant dense<0.000000e+00> : vector<648x96xf32>
    %20 = tpu.matmul %18, %19, %cst {dimension_numbers = #tpu.dot_dimension_numbers<[1], [0], [0], [1], [0, 0, 1, 1], [], []>} : vector<648x27xf32>, vector<27x96xf32>, vector<648x96xf32> -> vector<648x96xf32>
    %c0_24 = arith.constant 0 : index
    %c0_25 = arith.constant 0 : index
    %21 = vector.load %arg3[%c0_24, %c0_25] : memref<1x96xf32, #tpu.memory_space<vmem>>, vector<1x96xf32>
    %22 = vector.broadcast %21 : vector<1x96xf32> to vector<648x96xf32>
    %23 = arith.addf %20, %22 : vector<648x96xf32>
    %cst_26 = arith.constant 0.000000e+00 : f32
    %24 = vector.broadcast %cst_26 : f32 to vector<648x96xf32>
    %25 = arith.maximumf %23, %24 : vector<648x96xf32>
    %c0_27 = arith.constant 0 : index
    %c0_28 = arith.constant 0 : index
    %26 = vector.load %arg1[%c0_27, %c0_28] : memref<2x648xf32, #tpu.memory_space<vmem>>, vector<2x648xf32>
    %cst_29 = arith.constant dense<0.000000e+00> : vector<2x96xf32>
    %27 = tpu.matmul %26, %25, %cst_29 {dimension_numbers = #tpu.dot_dimension_numbers<[1], [0], [0], [1], [0, 0, 1, 1], [], []>} : vector<2x648xf32>, vector<648x96xf32>, vector<2x96xf32> -> vector<2x96xf32>
    %28 = vector.extract_strided_slice %27 {offsets = [0, 0], sizes = [2, 32], strides = [1, 1]} : vector<2x96xf32> to vector<2x32xf32>
    %29 = vector.extract_strided_slice %27 {offsets = [0, 32], sizes = [2, 64], strides = [1, 1]} : vector<2x96xf32> to vector<2x64xf32>
    %c0_30 = arith.constant 0 : index
    %c0_31 = arith.constant 0 : index
    %30 = vector.load %arg4[%c0_30, %c0_31] : memref<32x1xf32, #tpu.memory_space<vmem>>, vector<32x1xf32>
    %cst_32 = arith.constant dense<0.000000e+00> : vector<2x1xf32>
    %31 = tpu.matmul %28, %30, %cst_32 {dimension_numbers = #tpu.dot_dimension_numbers<[1], [0], [0], [1], [0, 0, 1, 1], [], []>} : vector<2x32xf32>, vector<32x1xf32>, vector<2x1xf32> -> vector<2x1xf32>
    %c0_33 = arith.constant 0 : index
    %c0_34 = arith.constant 0 : index
    %32 = vector.load %arg5[%c0_33, %c0_34] : memref<1x1xf32, #tpu.memory_space<vmem>>, vector<1x1xf32>
    %33 = vector.broadcast %32 : vector<1x1xf32> to vector<2x1xf32>
    %34 = arith.addf %31, %33 : vector<2x1xf32>
    %35 = arith.negf %34 : vector<2x1xf32>
    %36 = math.exp %35 : vector<2x1xf32>
    %cst_35 = arith.constant 1.000000e+00 : f32
    %37 = vector.broadcast %cst_35 : f32 to vector<2x1xf32>
    %38 = arith.addf %37, %36 : vector<2x1xf32>
    %39 = arith.divf %37, %38 : vector<2x1xf32>
    %cst_36 = arith.constant 5.000000e-01 : f32
    %40 = vector.broadcast %cst_36 : f32 to vector<2x1xf32>
    %41 = arith.cmpf olt, %39, %40 : vector<2x1xf32>
    %cst_37 = arith.constant 3.000000e-01 : f32
    %42 = vector.broadcast %cst_37 : f32 to vector<2x64xf32>
    %43 = arith.mulf %29, %42 : vector<2x64xf32>
    %44 = vector.shape_cast %41 : vector<2x1xi1> to vector<2x1xi1>
    %45 = vector.broadcast %44 : vector<2x1xi1> to vector<2x64xi1>
    %46 = arith.select %45, %43, %29 : vector<2x64xi1>, vector<2x64xf32>
    %c0_38 = arith.constant 0 : index
    %c0_39 = arith.constant 0 : index
    %47 = vector.load %arg6[%c0_38, %c0_39] : memref<32x32xf32, #tpu.memory_space<vmem>>, vector<32x32xf32>
    %cst_40 = arith.constant dense<0.000000e+00> : vector<2x32xf32>
    %48 = tpu.matmul %28, %47, %cst_40 {dimension_numbers = #tpu.dot_dimension_numbers<[1], [0], [0], [1], [0, 0, 1, 1], [], []>} : vector<2x32xf32>, vector<32x32xf32>, vector<2x32xf32> -> vector<2x32xf32>
    %c0_41 = arith.constant 0 : index
    %c0_42 = arith.constant 0 : index
    %49 = vector.load %arg7[%c0_41, %c0_42] : memref<64x32xf32, #tpu.memory_space<vmem>>, vector<64x32xf32>
    %cst_43 = arith.constant dense<0.000000e+00> : vector<2x32xf32>
    %50 = tpu.matmul %46, %49, %cst_43 {dimension_numbers = #tpu.dot_dimension_numbers<[1], [0], [0], [1], [0, 0, 1, 1], [], []>} : vector<2x64xf32>, vector<64x32xf32>, vector<2x32xf32> -> vector<2x32xf32>
    %51 = arith.addf %48, %50 : vector<2x32xf32>
    %c0_44 = arith.constant 0 : index
    %c0_45 = arith.constant 0 : index
    %52 = vector.load %arg8[%c0_44, %c0_45] : memref<1x32xf32, #tpu.memory_space<vmem>>, vector<1x32xf32>
    %53 = vector.broadcast %52 : vector<1x32xf32> to vector<2x32xf32>
    %54 = arith.addf %51, %53 : vector<2x32xf32>
    %cst_46 = arith.constant 0.000000e+00 : f32
    %55 = vector.broadcast %cst_46 : f32 to vector<2x32xf32>
    %56 = arith.maximumf %54, %55 : vector<2x32xf32>
    %c0_47 = arith.constant 0 : index
    %c0_48 = arith.constant 0 : index
    %57 = vector.load %arg9[%c0_47, %c0_48] : memref<32x16xf32, #tpu.memory_space<vmem>>, vector<32x16xf32>
    %cst_49 = arith.constant dense<0.000000e+00> : vector<2x16xf32>
    %58 = tpu.matmul %56, %57, %cst_49 {dimension_numbers = #tpu.dot_dimension_numbers<[1], [0], [0], [1], [0, 0, 1, 1], [], []>} : vector<2x32xf32>, vector<32x16xf32>, vector<2x16xf32> -> vector<2x16xf32>
    %c0_50 = arith.constant 0 : index
    %c0_51 = arith.constant 0 : index
    %59 = vector.load %arg10[%c0_50, %c0_51] : memref<1x16xf32, #tpu.memory_space<vmem>>, vector<1x16xf32>
    %60 = vector.broadcast %59 : vector<1x16xf32> to vector<2x16xf32>
    %61 = arith.addf %58, %60 : vector<2x16xf32>
    %cst_52 = arith.constant 0.000000e+00 : f32
    %62 = vector.broadcast %cst_52 : f32 to vector<2x16xf32>
    %63 = arith.maximumf %61, %62 : vector<2x16xf32>
    %c0_53 = arith.constant 0 : index
    %c0_54 = arith.constant 0 : index
    %64 = vector.load %arg11[%c0_53, %c0_54] : memref<16x128xf32, #tpu.memory_space<vmem>>, vector<16x128xf32>
    %cst_55 = arith.constant dense<0.000000e+00> : vector<2x128xf32>
    %65 = tpu.matmul %63, %64, %cst_55 {dimension_numbers = #tpu.dot_dimension_numbers<[1], [0], [0], [1], [0, 0, 1, 1], [], []>} : vector<2x16xf32>, vector<16x128xf32>, vector<2x128xf32> -> vector<2x128xf32>
    %c0_56 = arith.constant 0 : index
    %c0_57 = arith.constant 0 : index
    %66 = vector.load %arg12[%c0_56, %c0_57] : memref<1x128xf32, #tpu.memory_space<vmem>>, vector<1x128xf32>
    %67 = vector.broadcast %66 : vector<1x128xf32> to vector<2x128xf32>
    %68 = arith.addf %65, %67 : vector<2x128xf32>
    %c0_58 = arith.constant 0 : index
    %c0_59 = arith.constant 0 : index
    %69 = vector.load %arg13[%c0_58, %c0_59] : memref<2x128xf32, #tpu.memory_space<vmem>>, vector<2x128xf32>
    tpu.vector_store %arg13[%c0_58, %c0_59], %68 {strides = array<i32>} : memref<2x128xf32, #tpu.memory_space<vmem>>, vector<2x128xf32>,
    return
  }
}

</mosaic_0001>

<llo_original>
// kernel: tpu_custom_call.1
$region0: #{tpu_custom_call.1}
  #allocation0 [shape = 'u32[]', space=smem, size = 0x4, offset = 0x4, fixed_abs, tag = 'smem constant byte address 0x4 - core index']
  #allocation1 [shape = 'u32[144,128]{1,0:T(1,128)}', space=vmem, size = 0x12000, scoped, tag = 'internal scratch']
  #allocation2 [shape = 'f32[648,27]{1,0:T(8,128)}', space=vmem, size = 0x51000, scoped, tag = 'scratch operand']
  #allocation3 [shape = 'f32[1,1]{1,0:T(1,128)S(1)}', space=vmem, size = 0x200, scoped, tag = 'scoped memory for tpu_custom_call.1']
  %s0 = inlined_call_operand.vmem [shape: f32[688,3], index: 0, kind: input, shape index: {}]
  %s1 = inlined_call_operand.vmem [shape: f32[2,648], index: 1, kind: input, shape index: {}]
  %s2 = inlined_call_operand.vmem [shape: f32[27,96], index: 2, kind: input, shape index: {}]
  %s3 = inlined_call_operand.vmem [shape: f32[1,96], index: 3, kind: input, shape index: {}]
  %s4 = inlined_call_operand.vmem [shape: f32[32,1], index: 4, kind: input, shape index: {}]
  %s5 = inlined_call_operand.<no memory space> [shape: f32[1,1], index: 5, kind: input, shape index: {}]
  %s6 = inlined_call_operand.vmem [shape: f32[32,32], index: 6, kind: input, shape index: {}]
  %s7 = inlined_call_operand.vmem [shape: f32[64,32], index: 7, kind: input, shape index: {}]
  %s8 = inlined_call_operand.vmem [shape: f32[1,32], index: 8, kind: input, shape index: {}]
  %s9 = inlined_call_operand.vmem [shape: f32[32,16], index: 9, kind: input, shape index: {}]
  %s10 = inlined_call_operand.vmem [shape: f32[1,16], index: 10, kind: input, shape index: {}]
  %s11 = inlined_call_operand.vmem [shape: f32[16,128], index: 11, kind: input, shape index: {}]
  %s12 = inlined_call_operand.vmem [shape: f32[1,128], index: 12, kind: input, shape index: {}]
  %s13 = inlined_call_operand.hbm [shape: f32[2,128], index: 13, kind: output, shape index: {}]
  %s14 = sld [smem:[#allocation0]]
  $region62: #{tpu_custom_call.1} parent=0
    _
  %s16 = ssub.s32 1, %s14
  %s17 = scalar_select 0, %s16, %s14
  %v18 = vstv %s5
  %19 = vst [vmem:[#allocation3] sm:$0x1] %v18
  $region1: #{tpu_custom_call.1} parent=0
    #allocation4 [shape = 'u8[1024]{0}', space=vmem, size = 0x400, scoped, tag = 'output window, operand 0, single buffered']
    #allocation5 [shape = 's32[1]{0}', space=sflag, size = 0x4, scoped, tag = 'scoped memory for tpu_custom_call.1']
    %20 = vsyncpa [#allocation5], 0
    // Predicated region
    $region2: #{tpu_custom_call.1} parent=1 // pred_check
      _
    $region3: #{tpu_custom_call.1} parent=1 // pred_check_branch
      %22 = sbr.rel (0) target = $region5
    $region4: #{tpu_custom_call.1} parent=1 // pred_region
      _
    $region5: #{tpu_custom_call.1} parent=1 // pred_fallthru
      _
    // Predicated region
    $region6: #{tpu_custom_call.1} parent=1 // pred_check
      _
    $region7: #{tpu_custom_call.1} parent=1 // pred_check_branch
      %24 = sbr.rel (0) target = $region9
    $region8: #{tpu_custom_call.1} parent=1 // pred_region
      _
    $region9: #{tpu_custom_call.1} parent=1 // pred_fallthru
      _
    // Predicated region
    $region10: #{tpu_custom_call.1} parent=1 // pred_check
      _
    $region11: #{tpu_custom_call.1} parent=1 // pred_check_branch
      %26 = sbr.rel (0) target = $region13
    $region12: #{tpu_custom_call.1} parent=1 // pred_region
      _
    $region13: #{tpu_custom_call.1} parent=1 // pred_fallthru
      _
    // Predicated region
    $region14: #{tpu_custom_call.1} parent=1 // pred_check
      _
    $region15: #{tpu_custom_call.1} parent=1 // pred_check_branch
      %28 = sbr.rel (0) target = $region17
    $region16: #{tpu_custom_call.1} parent=1 // pred_region
      _
    $region17: #{tpu_custom_call.1} parent=1 // pred_fallthru
      _
    // Predicated region
    $region18: #{tpu_custom_call.1} parent=1 // pred_check
      _
    $region19: #{tpu_custom_call.1} parent=1 // pred_check_branch
      %30 = sbr.rel (0) target = $region21
    $region20: #{tpu_custom_call.1} parent=1 // pred_region
      _
    $region21: #{tpu_custom_call.1} parent=1 // pred_fallthru
      _
    // Predicated region
    $region22: #{tpu_custom_call.1} parent=1 // pred_check
      _
    $region23: #{tpu_custom_call.1} parent=1 // pred_check_branch
      %32 = sbr.rel (0) target = $region25
    $region24: #{tpu_custom_call.1} parent=1 // pred_region
      _
    $region25: #{tpu_custom_call.1} parent=1 // pred_fallthru
      _
    // Predicated region
    $region26: #{tpu_custom_call.1} parent=1 // pred_check
      _
    $region27: #{tpu_custom_call.1} parent=1 // pred_check_branch
      %34 = sbr.rel (0) target = $region29
    $region28: #{tpu_custom_call.1} parent=1 // pred_region
      _
    $region29: #{tpu_custom_call.1} parent=1 // pred_fallthru
      _
    // Predicated region
    $region30: #{tpu_custom_call.1} parent=1 // pred_check
      _
    $region31: #{tpu_custom_call.1} parent=1 // pred_check_branch
      %36 = sbr.rel (0) target = $region33
    $region32: #{tpu_custom_call.1} parent=1 // pred_region
      _
    $region33: #{tpu_custom_call.1} parent=1 // pred_fallthru
      _
    // Predicated region
    $region34: #{tpu_custom_call.1} parent=1 // pred_check
      _
    $region35: #{tpu_custom_call.1} parent=1 // pred_check_branch
      %38 = sbr.rel (0) target = $region37
    $region36: #{tpu_custom_call.1} parent=1 // pred_region
      _
    $region37: #{tpu_custom_call.1} parent=1 // pred_fallthru
      _
    // Predicated region
    $region38: #{tpu_custom_call.1} parent=1 // pred_check
      _
    $region39: #{tpu_custom_call.1} parent=1 // pred_check_branch
      %40 = sbr.rel (0) target = $region41
    $region40: #{tpu_custom_call.1} parent=1 // pred_region
      _
    $region41: #{tpu_custom_call.1} parent=1 // pred_fallthru
      _
    // Predicated region
    $region42: #{tpu_custom_call.1} parent=1 // pred_check
      _
    $region43: #{tpu_custom_call.1} parent=1 // pred_check_branch
      %42 = sbr.rel (0) target = $region45
    $region44: #{tpu_custom_call.1} parent=1 // pred_region
      _
    $region45: #{tpu_custom_call.1} parent=1 // pred_fallthru
      _
    // Predicated region
    $region46: #{tpu_custom_call.1} parent=1 // pred_check
      _
    $region47: #{tpu_custom_call.1} parent=1 // pred_check_branch
      %44 = sbr.rel (0) target = $region49
    $region48: #{tpu_custom_call.1} parent=1 // pred_region
      _
    $region49: #{tpu_custom_call.1} parent=1 // pred_fallthru
      _
    // Predicated region
    $region50: #{tpu_custom_call.1} parent=1 // pred_check
      _
    $region51: #{tpu_custom_call.1} parent=1 // pred_check_branch
      %46 = sbr.rel (0) target = $region53
    $region52: #{tpu_custom_call.1} parent=1 // pred_region
      _
    $region53: #{tpu_custom_call.1} parent=1 // pred_fallthru
      _
    %v47 = vld [vmem:[%s0] sm:$0xff]
    %v48 = vld [vmem:[%s0 + $0x8] sm:$0xff]
    %v49 = vld [vmem:[%s0 + $0x10] sm:$0xff]
    %v50 = vld [vmem:[%s0 + $0x18] sm:$0xff]
    %v51 = vld [vmem:[%s0 + $0x20] sm:$0xff]
    %v52 = vld [vmem:[%s0 + $0x28] sm:$0xff]
    %v53 = vld [vmem:[%s0 + $0x30] sm:$0xff]
    %v54 = vld [vmem:[%s0 + $0x38] sm:$0xff]
    %v55 = vld [vmem:[%s0 + $0x40] sm:$0xff]
    %v56 = vld [vmem:[%s0 + $0x48] sm:$0xff]
    %v57 = vld [vmem:[%s0 + $0x50] sm:$0xff]
    %v58 = vld [vmem:[%s0 + $0x58] sm:$0xff]
    %v59 = vld [vmem:[%s0 + $0x60] sm:$0xff]
    %v60 = vld [vmem:[%s0 + $0x68] sm:$0xff]
    %v61 = vld [vmem:[%s0 + $0x70] sm:$0xff]
    %v62 = vld [vmem:[%s0 + $0x78] sm:$0xff]
    %v63 = vld [vmem:[%s0 + $0x80] sm:$0xff]
    %v64 = vld [vmem:[%s0 + $0x88] sm:$0xff]
    %v65 = vld [vmem:[%s0 + $0x90] sm:$0xff]
    %v66 = vld [vmem:[%s0 + $0x98] sm:$0xff]
    %v67 = vld [vmem:[%s0 + $0xa0] sm:$0xff]
    %v68 = vld [vmem:[%s0 + $0xa8] sm:$0xff]
    %v69 = vld [vmem:[%s0 + $0xb0] sm:$0xff]
    %v70 = vld [vmem:[%s0 + $0xb8] sm:$0xff]
    %v71 = vld [vmem:[%s0 + $0xc0] sm:$0xff]
    %v72 = vld [vmem:[%s0 + $0xc8] sm:$0xff]
    %v73 = vld [vmem:[%s0 + $0xd0] sm:$0xff]
    %v74 = vld [vmem:[%s0 + $0xd8] sm:$0xff]
    %v75 = vld [vmem:[%s0 + $0xe0] sm:$0xff]
    %v76 = vld [vmem:[%s0 + $0xe8] sm:$0xff]
    %v77 = vld [vmem:[%s0 + $0xf0] sm:$0xff]
    %v78 = vld [vmem:[%s0 + $0xf8] sm:$0xff]
    %v79 = vld [vmem:[%s0 + $0x100] sm:$0xff]
    %v80 = vld [vmem:[%s0 + $0x108] sm:$0xff]
    %v81 = vld [vmem:[%s0 + $0x110] sm:$0xff]
    %v82 = vld [vmem:[%s0 + $0x118] sm:$0xff]
    %v83 = vld [vmem:[%s0 + $0x120] sm:$0xff]
    %v84 = vld [vmem:[%s0 + $0x128] sm:$0xff]
    %v85 = vld [vmem:[%s0 + $0x130] sm:$0xff]
    %v86 = vld [vmem:[%s0 + $0x138] sm:$0xff]
    %v87 = vld [vmem:[%s0 + $0x140] sm:$0xff]
    %v88 = vld [vmem:[%s0 + $0x148] sm:$0xff]
    %v89 = vld [vmem:[%s0 + $0x150] sm:$0xff]
    %v90 = vld [vmem:[%s0 + $0x158] sm:$0xff]
    %v91 = vld [vmem:[%s0 + $0x160] sm:$0xff]
    %v92 = vld [vmem:[%s0 + $0x168] sm:$0xff]
    %v93 = vld [vmem:[%s0 + $0x170] sm:$0xff]
    %v94 = vld [vmem:[%s0 + $0x178] sm:$0xff]
    %v95 = vld [vmem:[%s0 + $0x180] sm:$0xff]
    %v96 = vld [vmem:[%s0 + $0x188] sm:$0xff]
    %v97 = vld [vmem:[%s0 + $0x190] sm:$0xff]
    %v98 = vld [vmem:[%s0 + $0x198] sm:$0xff]
    %v99 = vld [vmem:[%s0 + $0x1a0] sm:$0xff]
    %v100 = vld [vmem:[%s0 + $0x1a8] sm:$0xff]
    %v101 = vld [vmem:[%s0 + $0x1b0] sm:$0xff]
    %v102 = vld [vmem:[%s0 + $0x1b8] sm:$0xff]
    %v103 = vld [vmem:[%s0 + $0x1c0] sm:$0xff]
    %v104 = vld [vmem:[%s0 + $0x1c8] sm:$0xff]
    %v105 = vld [vmem:[%s0 + $0x1d0] sm:$0xff]
    %v106 = vld [vmem:[%s0 + $0x1d8] sm:$0xff]
    %v107 = vld [vmem:[%s0 + $0x1e0] sm:$0xff]
    %v108 = vld [vmem:[%s0 + $0x1e8] sm:$0xff]
    %v109 = vld [vmem:[%s0 + $0x1f0] sm:$0xff]
    %v110 = vld [vmem:[%s0 + $0x1f8] sm:$0xff]
    %v111 = vld [vmem:[%s0 + $0x200] sm:$0xff]
    %v112 = vld [vmem:[%s0 + $0x208] sm:$0xff]
    %v113 = vld [vmem:[%s0 + $0x210] sm:$0xff]
    %v114 = vld [vmem:[%s0 + $0x218] sm:$0xff]
    %v115 = vld [vmem:[%s0 + $0x220] sm:$0xff]
    %v116 = vld [vmem:[%s0 + $0x228] sm:$0xff]
    %v117 = vld [vmem:[%s0 + $0x230] sm:$0xff]
    %v118 = vld [vmem:[%s0 + $0x238] sm:$0xff]
    %v119 = vld [vmem:[%s0 + $0x240] sm:$0xff]
    %v120 = vld [vmem:[%s0 + $0x248] sm:$0xff]
    %v121 = vld [vmem:[%s0 + $0x250] sm:$0xff]
    %v122 = vld [vmem:[%s0 + $0x258] sm:$0xff]
    %v123 = vld [vmem:[%s0 + $0x260] sm:$0xff]
    %v124 = vld [vmem:[%s0 + $0x268] sm:$0xff]
    %v125 = vld [vmem:[%s0 + $0x270] sm:$0xff]
    %v126 = vld [vmem:[%s0 + $0x278] sm:$0xff]
    %v127 = vld [vmem:[%s0 + $0x280] sm:$0xff]
    %vm128 = vcmask 23552
    %129 = vst.msk [vmem:[#allocation2] sm:$0xff] %vm128, %v47
    %130 = vst.msk [vmem:[#allocation2 + $0x8] sm:$0xff] %vm128, %v48
    %131 = vst.msk [vmem:[#allocation2 + $0x10] sm:$0xff] %vm128, %v49
    %132 = vst.msk [vmem:[#allocation2 + $0x18] sm:$0xff] %vm128, %v50
    %133 = vst.msk [vmem:[#allocation2 + $0x20] sm:$0xff] %vm128, %v51
    %134 = vst.msk [vmem:[#allocation2 + $0x28] sm:$0xff] %vm128, %v52
    %135 = vst.msk [vmem:[#allocation2 + $0x30] sm:$0xff] %vm128, %v53
    %136 = vst.msk [vmem:[#allocation2 + $0x38] sm:$0xff] %vm128, %v54
    %137 = vst.msk [vmem:[#allocation2 + $0x40] sm:$0xff] %vm128, %v55
    %138 = vst.msk [vmem:[#allocation2 + $0x48] sm:$0xff] %vm128, %v56
    %139 = vst.msk [vmem:[#allocation2 + $0x50] sm:$0xff] %vm128, %v57
    %140 = vst.msk [vmem:[#allocation2 + $0x58] sm:$0xff] %vm128, %v58
    %141 = vst.msk [vmem:[#allocation2 + $0x60] sm:$0xff] %vm128, %v59
    %142 = vst.msk [vmem:[#allocation2 + $0x68] sm:$0xff] %vm128, %v60
    %143 = vst.msk [vmem:[#allocation2 + $0x70] sm:$0xff] %vm128, %v61
    %144 = vst.msk [vmem:[#allocation2 + $0x78] sm:$0xff] %vm128, %v62
    %145 = vst.msk [vmem:[#allocation2 + $0x80] sm:$0xff] %vm128, %v63
    %146 = vst.msk [vmem:[#allocation2 + $0x88] sm:$0xff] %vm128, %v64
    %147 = vst.msk [vmem:[#allocation2 + $0x90] sm:$0xff] %vm128, %v65
    %148 = vst.msk [vmem:[#allocation2 + $0x98] sm:$0xff] %vm128, %v66
    %149 = vst.msk [vmem:[#allocation2 + $0xa0] sm:$0xff] %vm128, %v67
    %150 = vst.msk [vmem:[#allocation2 + $0xa8] sm:$0xff] %vm128, %v68
    %151 = vst.msk [vmem:[#allocation2 + $0xb0] sm:$0xff] %vm128, %v69
    %152 = vst.msk [vmem:[#allocation2 + $0xb8] sm:$0xff] %vm128, %v70
    %153 = vst.msk [vmem:[#allocation2 + $0xc0] sm:$0xff] %vm128, %v71
    %154 = vst.msk [vmem:[#allocation2 + $0xc8] sm:$0xff] %vm128, %v72
    %155 = vst.msk [vmem:[#allocation2 + $0xd0] sm:$0xff] %vm128, %v73
    %156 = vst.msk [vmem:[#allocation2 + $0xd8] sm:$0xff] %vm128, %v74
    %157 = vst.msk [vmem:[#allocation2 + $0xe0] sm:$0xff] %vm128, %v75
    %158 = vst.msk [vmem:[#allocation2 + $0xe8] sm:$0xff] %vm128, %v76
    %159 = vst.msk [vmem:[#allocation2 + $0xf0] sm:$0xff] %vm128, %v77
    %160 = vst.msk [vmem:[#allocation2 + $0xf8] sm:$0xff] %vm128, %v78
    %161 = vst.msk [vmem:[#allocation2 + $0x100] sm:$0xff] %vm128, %v79
    %162 = vst.msk [vmem:[#allocation2 + $0x108] sm:$0xff] %vm128, %v80
    %163 = vst.msk [vmem:[#allocation2 + $0x110] sm:$0xff] %vm128, %v81
    %164 = vst.msk [vmem:[#allocation2 + $0x118] sm:$0xff] %vm128, %v82
    %165 = vst.msk [vmem:[#allocation2 + $0x120] sm:$0xff] %vm128, %v83
    %166 = vst.msk [vmem:[#allocation2 + $0x128] sm:$0xff] %vm128, %v84
    %167 = vst.msk [vmem:[#allocation2 + $0x130] sm:$0xff] %vm128, %v85
    %168 = vst.msk [vmem:[#allocation2 + $0x138] sm:$0xff] %vm128, %v86
    %169 = vst.msk [vmem:[#allocation2 + $0x140] sm:$0xff] %vm128, %v87
    %170 = vst.msk [vmem:[#allocation2 + $0x148] sm:$0xff] %vm128, %v88
    %171 = vst.msk [vmem:[#allocation2 + $0x150] sm:$0xff] %vm128, %v89
    %172 = vst.msk [vmem:[#allocation2 + $0x158] sm:$0xff] %vm128, %v90
    %173 = vst.msk [vmem:[#allocation2 + $0x160] sm:$0xff] %vm128, %v91
    %174 = vst.msk [vmem:[#allocation2 + $0x168] sm:$0xff] %vm128, %v92
    %175 = vst.msk [vmem:[#allocation2 + $0x170] sm:$0xff] %vm128, %v93
    %176 = vst.msk [vmem:[#allocation2 + $0x178] sm:$0xff] %vm128, %v94
    %177 = vst.msk [vmem:[#allocation2 + $0x180] sm:$0xff] %vm128, %v95
    %178 = vst.msk [vmem:[#allocation2 + $0x188] sm:$0xff] %vm128, %v96
    %179 = vst.msk [vmem:[#allocation2 + $0x190] sm:$0xff] %vm128, %v97
    %180 = vst.msk [vmem:[#allocation2 + $0x198] sm:$0xff] %vm128, %v98
    %181 = vst.msk [vmem:[#allocation2 + $0x1a0] sm:$0xff] %vm128, %v99
    %182 = vst.msk [vmem:[#allocation2 + $0x1a8] sm:$0xff] %vm128, %v100
    %183 = vst.msk [vmem:[#allocation2 + $0x1b0] sm:$0xff] %vm128, %v101
    %184 = vst.msk [vmem:[#allocation2 + $0x1b8] sm:$0xff] %vm128, %v102
    %185 = vst.msk [vmem:[#allocation2 + $0x1c0] sm:$0xff] %vm128, %v103
    %186 = vst.msk [vmem:[#allocation2 + $0x1c8] sm:$0xff] %vm128, %v104
    %187 = vst.msk [vmem:[#allocation2 + $0x1d0] sm:$0xff] %vm128, %v105
    %188 = vst.msk [vmem:[#allocation2 + $0x1d8] sm:$0xff] %vm128, %v106
    %189 = vst.msk [vmem:[#allocation2 + $0x1e0] sm:$0xff] %vm128, %v107
    %190 = vst.msk [vmem:[#allocation2 + $0x1e8] sm:$0xff] %vm128, %v108
    %191 = vst.msk [vmem:[#allocation2 + $0x1f0] sm:$0xff] %vm128, %v109
    %192 = vst.msk [vmem:[#allocation2 + $0x1f8] sm:$0xff] %vm128, %v110
    %193 = vst.msk [vmem:[#allocation2 + $0x200] sm:$0xff] %vm128, %v111
    %194 = vst.msk [vmem:[#allocation2 + $0x208] sm:$0xff] %vm128, %v112
    %195 = vst.msk [vmem:[#allocation2 + $0x210] sm:$0xff] %vm128, %v113
    %196 = vst.msk [vmem:[#allocation2 + $0x218] sm:$0xff] %vm128, %v114
    %197 = vst.msk [vmem:[#allocation2 + $0x220] sm:$0xff] %vm128, %v115
    %198 = vst.msk [vmem:[#allocation2 + $0x228] sm:$0xff] %vm128, %v116
    %199 = vst.msk [vmem:[#allocation2 + $0x230] sm:$0xff] %vm128, %v117
    %200 = vst.msk [vmem:[#allocation2 + $0x238] sm:$0xff] %vm128, %v118
    %201 = vst.msk [vmem:[#allocation2 + $0x240] sm:$0xff] %vm128, %v119
    %202 = vst.msk [vmem:[#allocation2 + $0x248] sm:$0xff] %vm128, %v120
    %203 = vst.msk [vmem:[#allocation2 + $0x250] sm:$0xff] %vm128, %v121
    %204 = vst.msk [vmem:[#allocation2 + $0x258] sm:$0xff] %vm128, %v122
    %205 = vst.msk [vmem:[#allocation2 + $0x260] sm:$0xff] %vm128, %v123
    %206 = vst.msk [vmem:[#allocation2 + $0x268] sm:$0xff] %vm128, %v124
    %207 = vst.msk [vmem:[#allocation2 + $0x270] sm:$0xff] %vm128, %v125
    %208 = vst.msk [vmem:[#allocation2 + $0x278] sm:$0xff] %vm128, %v126
    %209 = vst.msk [vmem:[#allocation2 + $0x280] sm:$0xff] %vm128, %v127
    %v210 = vld [vmem:[%s0 + $0x1] sm:$0xff]
    %v211 = vld [vmem:[%s0 + $0x9] sm:$0xff]
    %v212 = vld [vmem:[%s0 + $0x11] sm:$0xff]
    %v213 = vld [vmem:[%s0 + $0x19] sm:$0xff]
    %v214 = vld [vmem:[%s0 + $0x21] sm:$0xff]
    %v215 = vld [vmem:[%s0 + $0x29] sm:$0xff]
    %v216 = vld [vmem:[%s0 + $0x31] sm:$0xff]
    %v217 = vld [vmem:[%s0 + $0x39] sm:$0xff]
    %v218 = vld [vmem:[%s0 + $0x41] sm:$0xff]
    %v219 = vld [vmem:[%s0 + $0x49] sm:$0xff]
    %v220 = vld [vmem:[%s0 + $0x51] sm:$0xff]
    %v221 = vld [vmem:[%s0 + $0x59] sm:$0xff]
    %v222 = vld [vmem:[%s0 + $0x61] sm:$0xff]
    %v223 = vld [vmem:[%s0 + $0x69] sm:$0xff]
    %v224 = vld [vmem:[%s0 + $0x71] sm:$0xff]
    %v225 = vld [vmem:[%s0 + $0x79] sm:$0xff]
    %v226 = vld [vmem:[%s0 + $0x81] sm:$0xff]
    %v227 = vld [vmem:[%s0 + $0x89] sm:$0xff]
    %v228 = vld [vmem:[%s0 + $0x91] sm:$0xff]
    %v229 = vld [vmem:[%s0 + $0x99] sm:$0xff]
    %v230 = vld [vmem:[%s0 + $0xa1] sm:$0xff]
    %v231 = vld [vmem:[%s0 + $0xa9] sm:$0xff]
    %v232 = vld [vmem:[%s0 + $0xb1] sm:$0xff]
    %v233 = vld [vmem:[%s0 + $0xb9] sm:$0xff]
    %v234 = vld [vmem:[%s0 + $0xc1] sm:$0xff]
    %v235 = vld [vmem:[%s0 + $0xc9] sm:$0xff]
    %v236 = vld [vmem:[%s0 + $0xd1] sm:$0xff]
    %v237 = vld [vmem:[%s0 + $0xd9] sm:$0xff]
    %v238 = vld [vmem:[%s0 + $0xe1] sm:$0xff]
    %v239 = vld [vmem:[%s0 + $0xe9] sm:$0xff]
    %v240 = vld [vmem:[%s0 + $0xf1] sm:$0xff]
    %v241 = vld [vmem:[%s0 + $0xf9] sm:$0xff]
    %v242 = vld [vmem:[%s0 + $0x101] sm:$0xff]
    %v243 = vld [vmem:[%s0 + $0x109] sm:$0xff]
    %v244 = vld [vmem:[%s0 + $0x111] sm:$0xff]
    %v245 = vld [vmem:[%s0 + $0x119] sm:$0xff]
    %v246 = vld [vmem:[%s0 + $0x121] sm:$0xff]
    %v247 = vld [vmem:[%s0 + $0x129] sm:$0xff]
    %v248 = vld [vmem:[%s0 + $0x131] sm:$0xff]
    %v249 = vld [vmem:[%s0 + $0x139] sm:$0xff]
    %v250 = vld [vmem:[%s0 + $0x141] sm:$0xff]
    %v251 = vld [vmem:[%s0 + $0x149] sm:$0xff]
    %v252 = vld [vmem:[%s0 + $0x151] sm:$0xff]
    %v253 = vld [vmem:[%s0 + $0x159] sm:$0xff]
    %v254 = vld [vmem:[%s0 + $0x161] sm:$0xff]
    %v255 = vld [vmem:[%s0 + $0x169] sm:$0xff]
    %v256 = vld [vmem:[%s0 + $0x171] sm:$0xff]
    %v257 = vld [vmem:[%s0 + $0x179] sm:$0xff]
    %v258 = vld [vmem:[%s0 + $0x181] sm:$0xff]
    %v259 = vld [vmem:[%s0 + $0x189] sm:$0xff]
    %v260 = vld [vmem:[%s0 + $0x191] sm:$0xff]
    %v261 = vld [vmem:[%s0 + $0x199] sm:$0xff]
    %v262 = vld [vmem:[%s0 + $0x1a1] sm:$0xff]
    %v263 = vld [vmem:[%s0 + $0x1a9] sm:$0xff]
    %v264 = vld [vmem:[%s0 + $0x1b1] sm:$0xff]
    %v265 = vld [vmem:[%s0 + $0x1b9] sm:$0xff]
    %v266 = vld [vmem:[%s0 + $0x1c1] sm:$0xff]
    %v267 = vld [vmem:[%s0 + $0x1c9] sm:$0xff]
    %v268 = vld [vmem:[%s0 + $0x1d1] sm:$0xff]
    %v269 = vld [vmem:[%s0 + $0x1d9] sm:$0xff]
    %v270 = vld [vmem:[%s0 + $0x1e1] sm:$0xff]
    %v271 = vld [vmem:[%s0 + $0x1e9] sm:$0xff]
    %v272 = vld [vmem:[%s0 + $0x1f1] sm:$0xff]
    %v273 = vld [vmem:[%s0 + $0x1f9] sm:$0xff]
    %v274 = vld [vmem:[%s0 + $0x201] sm:$0xff]
    %v275 = vld [vmem:[%s0 + $0x209] sm:$0xff]
    %v276 = vld [vmem:[%s0 + $0x211] sm:$0xff]
    %v277 = vld [vmem:[%s0 + $0x219] sm:$0xff]
    %v278 = vld [vmem:[%s0 + $0x221] sm:$0xff]
    %v279 = vld [vmem:[%s0 + $0x229] sm:$0xff]
    %v280 = vld [vmem:[%s0 + $0x231] sm:$0xff]
    %v281 = vld [vmem:[%s0 + $0x239] sm:$0xff]
    %v282 = vld [vmem:[%s0 + $0x241] sm:$0xff]
    %v283 = vld [vmem:[%s0 + $0x249] sm:$0xff]
    %v284 = vld [vmem:[%s0 + $0x251] sm:$0xff]
    %v285 = vld [vmem:[%s0 + $0x259] sm:$0xff]
    %v286 = vld [vmem:[%s0 + $0x261] sm:$0xff]
    %v287 = vld [vmem:[%s0 + $0x269] sm:$0xff]
    %v288 = vld [vmem:[%s0 + $0x271] sm:$0xff]
    %v289 = vld [vmem:[%s0 + $0x279] sm:$0xff]
    %v290 = vld [vmem:[%s0 + $0x281] sm:$0xff]
    %372 = vrot.lane.b32.xlu0 %v210, 3
    %v373 = vpop.permute.xlu0 %372
    %374 = vrot.lane.b32.xlu0 %v211, 3
    %v375 = vpop.permute.xlu0 %374
    %376 = vrot.lane.b32.xlu0 %v212, 3
    %v377 = vpop.permute.xlu0 %376
    %378 = vrot.lane.b32.xlu0 %v213, 3
    %v379 = vpop.permute.xlu0 %378
    %380 = vrot.lane.b32.xlu0 %v214, 3
    %v381 = vpop.permute.xlu0 %380
    %382 = vrot.lane.b32.xlu0 %v215, 3
    %v383 = vpop.permute.xlu0 %382
    %384 = vrot.lane.b32.xlu0 %v216, 3
    %v385 = vpop.permute.xlu0 %384
    %386 = vrot.lane.b32.xlu0 %v217, 3
    %v387 = vpop.permute.xlu0 %386
    %388 = vrot.lane.b32.xlu0 %v218, 3
    %v389 = vpop.permute.xlu0 %388
    %390 = vrot.lane.b32.xlu0 %v219, 3
    %v391 = vpop.permute.xlu0 %390
    %392 = vrot.lane.b32.xlu0 %v220, 3
    %v393 = vpop.permute.xlu0 %392
    %394 = vrot.lane.b32.xlu0 %v221, 3
    %v395 = vpop.permute.xlu0 %394
    %396 = vrot.lane.b32.xlu0 %v222, 3
    %v397 = vpop.permute.xlu0 %396
    %398 = vrot.lane.b32.xlu0 %v223, 3
    %v399 = vpop.permute.xlu0 %398
    %400 = vrot.lane.b32.xlu0 %v224, 3
    %v401 = vpop.permute.xlu0 %400
    %402 = vrot.lane.b32.xlu0 %v225, 3
    %v403 = vpop.permute.xlu0 %402
    %404 = vrot.lane.b32.xlu0 %v226, 3
    %v405 = vpop.permute.xlu0 %404
    %406 = vrot.lane.b32.xlu0 %v227, 3
    %v407 = vpop.permute.xlu0 %406
    %408 = vrot.lane.b32.xlu0 %v228, 3
    %v409 = vpop.permute.xlu0 %408
    %410 = vrot.lane.b32.xlu0 %v229, 3
    %v411 = vpop.permute.xlu0 %410
    %412 = vrot.lane.b32.xlu0 %v230, 3
    %v413 = vpop.permute.xlu0 %412
    %414 = vrot.lane.b32.xlu0 %v231, 3
    %v415 = vpop.permute.xlu0 %414
    %416 = vrot.lane.b32.xlu0 %v232, 3
    %v417 = vpop.permute.xlu0 %416
    %418 = vrot.lane.b32.xlu0 %v233, 3
    %v419 = vpop.permute.xlu0 %418
    %420 = vrot.lane.b32.xlu0 %v234, 3
    %v421 = vpop.permute.xlu0 %420
    %422 = vrot.lane.b32.xlu0 %v235, 3
    %v423 = vpop.permute.xlu0 %422
    %424 = vrot.lane.b32.xlu0 %v236, 3
    %v425 = vpop.permute.xlu0 %424
    %426 = vrot.lane.b32.xlu0 %v237, 3
    %v427 = vpop.permute.xlu0 %426
    %428 = vrot.lane.b32.xlu0 %v238, 3
    %v429 = vpop.permute.xlu0 %428
    %430 = vrot.lane.b32.xlu0 %v239, 3
    %v431 = vpop.permute.xlu0 %430
    %432 = vrot.lane.b32.xlu0 %v240, 3
    %v433 = vpop.permute.xlu0 %432
    %434 = vrot.lane.b32.xlu0 %v241, 3
    %v435 = vpop.permute.xlu0 %434
    %436 = vrot.lane.b32.xlu0 %v242, 3
    %v437 = vpop.permute.xlu0 %436
    %438 = vrot.lane.b32.xlu0 %v243, 3
    %v439 = vpop.permute.xlu0 %438
    %440 = vrot.lane.b32.xlu0 %v244, 3
    %v441 = vpop.permute.xlu0 %440
    %442 = vrot.lane.b32.xlu0 %v245, 3
    %v443 = vpop.permute.xlu0 %442
    %444 = vrot.lane.b32.xlu0 %v246, 3
    %v445 = vpop.permute.xlu0 %444
    %446 = vrot.lane.b32.xlu0 %v247, 3
    %v447 = vpop.permute.xlu0 %446
    %448 = vrot.lane.b32.xlu0 %v248, 3
    %v449 = vpop.permute.xlu0 %448
    %450 = vrot.lane.b32.xlu0 %v249, 3
    %v451 = vpop.permute.xlu0 %450
    %452 = vrot.lane.b32.xlu0 %v250, 3
    %v453 = vpop.permute.xlu0 %452
    %454 = vrot.lane.b32.xlu0 %v251, 3
    %v455 = vpop.permute.xlu0 %454
    %456 = vrot.lane.b32.xlu0 %v252, 3
    %v457 = vpop.permute.xlu0 %456
    %458 = vrot.lane.b32.xlu0 %v253, 3
    %v459 = vpop.permute.xlu0 %458
    %460 = vrot.lane.b32.xlu0 %v254, 3
    %v461 = vpop.permute.xlu0 %460
    %462 = vrot.lane.b32.xlu0 %v255, 3
    %v463 = vpop.permute.xlu0 %462
    %464 = vrot.lane.b32.xlu0 %v256, 3
    %v465 = vpop.permute.xlu0 %464
    %466 = vrot.lane.b32.xlu0 %v257, 3
    %v467 = vpop.permute.xlu0 %466
    %468 = vrot.lane.b32.xlu0 %v258, 3
    %v469 = vpop.permute.xlu0 %468
    %470 = vrot.lane.b32.xlu0 %v259, 3
    %v471 = vpop.permute.xlu0 %470
    %472 = vrot.lane.b32.xlu0 %v260, 3
    %v473 = vpop.permute.xlu0 %472
    %474 = vrot.lane.b32.xlu0 %v261, 3
    %v475 = vpop.permute.xlu0 %474
    %476 = vrot.lane.b32.xlu0 %v262, 3
    %v477 = vpop.permute.xlu0 %476
    %478 = vrot.lane.b32.xlu0 %v263, 3
    %v479 = vpop.permute.xlu0 %478
    %480 = vrot.lane.b32.xlu0 %v264, 3
    %v481 = vpop.permute.xlu0 %480
    %482 = vrot.lane.b32.xlu0 %v265, 3
    %v483 = vpop.permute.xlu0 %482
    %484 = vrot.lane.b32.xlu0 %v266, 3
    %v485 = vpop.permute.xlu0 %484
    %486 = vrot.lane.b32.xlu0 %v267, 3
    %v487 = vpop.permute.xlu0 %486
    %488 = vrot.lane.b32.xlu0 %v268, 3
    %v489 = vpop.permute.xlu0 %488
    %490 = vrot.lane.b32.xlu0 %v269, 3
    %v491 = vpop.permute.xlu0 %490
    %492 = vrot.lane.b32.xlu0 %v270, 3
    %v493 = vpop.permute.xlu0 %492
    %494 = vrot.lane.b32.xlu0 %v271, 3
    %v495 = vpop.permute.xlu0 %494
    %496 = vrot.lane.b32.xlu0 %v272, 3
    %v497 = vpop.permute.xlu0 %496
    %498 = vrot.lane.b32.xlu0 %v273, 3
    %v499 = vpop.permute.xlu0 %498
    %500 = vrot.lane.b32.xlu0 %v274, 3
    %v501 = vpop.permute.xlu0 %500
    %502 = vrot.lane.b32.xlu0 %v275, 3
    %v503 = vpop.permute.xlu0 %502
    %504 = vrot.lane.b32.xlu0 %v276, 3
    %v505 = vpop.permute.xlu0 %504
    %506 = vrot.lane.b32.xlu0 %v277, 3
    %v507 = vpop.permute.xlu0 %506
    %508 = vrot.lane.b32.xlu0 %v278, 3
    %v509 = vpop.permute.xlu0 %508
    %510 = vrot.lane.b32.xlu0 %v279, 3
    %v511 = vpop.permute.xlu0 %510
    %512 = vrot.lane.b32.xlu0 %v280, 3
    %v513 = vpop.permute.xlu0 %512
    %514 = vrot.lane.b32.xlu0 %v281, 3
    %v515 = vpop.permute.xlu0 %514
    %516 = vrot.lane.b32.xlu0 %v282, 3
    %v517 = vpop.permute.xlu0 %516
    %518 = vrot.lane.b32.xlu0 %v283, 3
    %v519 = vpop.permute.xlu0 %518
    %520 = vrot.lane.b32.xlu0 %v284, 3
    %v521 = vpop.permute.xlu0 %520
    %522 = vrot.lane.b32.xlu0 %v285, 3
    %v523 = vpop.permute.xlu0 %522
    %524 = vrot.lane.b32.xlu0 %v286, 3
    %v525 = vpop.permute.xlu0 %524
    %526 = vrot.lane.b32.xlu0 %v287, 3
    %v527 = vpop.permute.xlu0 %526
    %528 = vrot.lane.b32.xlu0 %v288, 3
    %v529 = vpop.permute.xlu0 %528
    %530 = vrot.lane.b32.xlu0 %v289, 3
    %v531 = vpop.permute.xlu0 %530
    %532 = vrot.lane.b32.xlu0 %v290, 3
    %v533 = vpop.permute.xlu0 %532
    %vm615 = vcmask 48152
    %616 = vst.msk [vmem:[#allocation2] sm:$0xff] %vm615, %v373
    %617 = vst.msk [vmem:[#allocation2 + $0x8] sm:$0xff] %vm615, %v375
    %618 = vst.msk [vmem:[#allocation2 + $0x10] sm:$0xff] %vm615, %v377
    %619 = vst.msk [vmem:[#allocation2 + $0x18] sm:$0xff] %vm615, %v379
    %620 = vst.msk [vmem:[#allocation2 + $0x20] sm:$0xff] %vm615, %v381
    %621 = vst.msk [vmem:[#allocation2 + $0x28] sm:$0xff] %vm615, %v383
    %622 = vst.msk [vmem:[#allocation2 + $0x30] sm:$0xff] %vm615, %v385
    %623 = vst.msk [vmem:[#allocation2 + $0x38] sm:$0xff] %vm615, %v387
    %624 = vst.msk [vmem:[#allocation2 + $0x40] sm:$0xff] %vm615, %v389
    %625 = vst.msk [vmem:[#allocation2 + $0x48] sm:$0xff] %vm615, %v391
    %626 = vst.msk [vmem:[#allocation2 + $0x50] sm:$0xff] %vm615, %v393
    %627 = vst.msk [vmem:[#allocation2 + $0x58] sm:$0xff] %vm615, %v395
    %628 = vst.msk [vmem:[#allocation2 + $0x60] sm:$0xff] %vm615, %v397
    %629 = vst.msk [vmem:[#allocation2 + $0x68] sm:$0xff] %vm615, %v399
    %630 = vst.msk [vmem:[#allocation2 + $0x70] sm:$0xff] %vm615, %v401
    %631 = vst.msk [vmem:[#allocation2 + $0x78] sm:$0xff] %vm615, %v403
    %632 = vst.msk [vmem:[#allocation2 + $0x80] sm:$0xff] %vm615, %v405
    %633 = vst.msk [vmem:[#allocation2 + $0x88] sm:$0xff] %vm615, %v407
    %634 = vst.msk [vmem:[#allocation2 + $0x90] sm:$0xff] %vm615, %v409
    %635 = vst.msk [vmem:[#allocation2 + $0x98] sm:$0xff] %vm615, %v411
    %636 = vst.msk [vmem:[#allocation2 + $0xa0] sm:$0xff] %vm615, %v413
    %637 = vst.msk [vmem:[#allocation2 + $0xa8] sm:$0xff] %vm615, %v415
    %638 = vst.msk [vmem:[#allocation2 + $0xb0] sm:$0xff] %vm615, %v417
    %639 = vst.msk [vmem:[#allocation2 + $0xb8] sm:$0xff] %vm615, %v419
    %640 = vst.msk [vmem:[#allocation2 + $0xc0] sm:$0xff] %vm615, %v421
    %641 = vst.msk [vmem:[#allocation2 + $0xc8] sm:$0xff] %vm615, %v423
    %642 = vst.msk [vmem:[#allocation2 + $0xd0] sm:$0xff] %vm615, %v425
    %643 = vst.msk [vmem:[#allocation2 + $0xd8] sm:$0xff] %vm615, %v427
    %644 = vst.msk [vmem:[#allocation2 + $0xe0] sm:$0xff] %vm615, %v429
    %645 = vst.msk [vmem:[#allocation2 + $0xe8] sm:$0xff] %vm615, %v431
    %646 = vst.msk [vmem:[#allocation2 + $0xf0] sm:$0xff] %vm615, %v433
    %647 = vst.msk [vmem:[#allocation2 + $0xf8] sm:$0xff] %vm615, %v435
    %648 = vst.msk [vmem:[#allocation2 + $0x100] sm:$0xff] %vm615, %v437
    %649 = vst.msk [vmem:[#allocation2 + $0x108] sm:$0xff] %vm615, %v439
    %650 = vst.msk [vmem:[#allocation2 + $0x110] sm:$0xff] %vm615, %v441
    %651 = vst.msk [vmem:[#allocation2 + $0x118] sm:$0xff] %vm615, %v443
    %652 = vst.msk [vmem:[#allocation2 + $0x120] sm:$0xff] %vm615, %v445
    %653 = vst.msk [vmem:[#allocation2 + $0x128] sm:$0xff] %vm615, %v447
    %654 = vst.msk [vmem:[#allocation2 + $0x130] sm:$0xff] %vm615, %v449
    %655 = vst.msk [vmem:[#allocation2 + $0x138] sm:$0xff] %vm615, %v451
    %656 = vst.msk [vmem:[#allocation2 + $0x140] sm:$0xff] %vm615, %v453
    %657 = vst.msk [vmem:[#allocation2 + $0x148] sm:$0xff] %vm615, %v455
    %658 = vst.msk [vmem:[#allocation2 + $0x150] sm:$0xff] %vm615, %v457
    %659 = vst.msk [vmem:[#allocation2 + $0x158] sm:$0xff] %vm615, %v459
    %660 = vst.msk [vmem:[#allocation2 + $0x160] sm:$0xff] %vm615, %v461
    %661 = vst.msk [vmem:[#allocation2 + $0x168] sm:$0xff] %vm615, %v463
    %662 = vst.msk [vmem:[#allocation2 + $0x170] sm:$0xff] %vm615, %v465
    %663 = vst.msk [vmem:[#allocation2 + $0x178] sm:$0xff] %vm615, %v467
    %664 = vst.msk [vmem:[#allocation2 + $0x180] sm:$0xff] %vm615, %v469
    %665 = vst.msk [vmem:[#allocation2 + $0x188] sm:$0xff] %vm615, %v471
    %666 = vst.msk [vmem:[#allocation2 + $0x190] sm:$0xff] %vm615, %v473
    %667 = vst.msk [vmem:[#allocation2 + $0x198] sm:$0xff] %vm615, %v475
    %668 = vst.msk [vmem:[#allocation2 + $0x1a0] sm:$0xff] %vm615, %v477
    %669 = vst.msk [vmem:[#allocation2 + $0x1a8] sm:$0xff] %vm615, %v479
    %670 = vst.msk [vmem:[#allocation2 + $0x1b0] sm:$0xff] %vm615, %v481
    %671 = vst.msk [vmem:[#allocation2 + $0x1b8] sm:$0xff] %vm615, %v483
    %672 = vst.msk [vmem:[#allocation2 + $0x1c0] sm:$0xff] %vm615, %v485
    %673 = vst.msk [vmem:[#allocation2 + $0x1c8] sm:$0xff] %vm615, %v487
    %674 = vst.msk [vmem:[#allocation2 + $0x1d0] sm:$0xff] %vm615, %v489
    %675 = vst.msk [vmem:[#allocation2 + $0x1d8] sm:$0xff] %vm615, %v491
    %676 = vst.msk [vmem:[#allocation2 + $0x1e0] sm:$0xff] %vm615, %v493
    %677 = vst.msk [vmem:[#allocation2 + $0x1e8] sm:$0xff] %vm615, %v495
    %678 = vst.msk [vmem:[#allocation2 + $0x1f0] sm:$0xff] %vm615, %v497
    %679 = vst.msk [vmem:[#allocation2 + $0x1f8] sm:$0xff] %vm615, %v499
    %680 = vst.msk [vmem:[#allocation2 + $0x200] sm:$0xff] %vm615, %v501
    %681 = vst.msk [vmem:[#allocation2 + $0x208] sm:$0xff] %vm615, %v503
    %682 = vst.msk [vmem:[#allocation2 + $0x210] sm:$0xff] %vm615, %v505
    %683 = vst.msk [vmem:[#allocation2 + $0x218] sm:$0xff] %vm615, %v507
    %684 = vst.msk [vmem:[#allocation2 + $0x220] sm:$0xff] %vm615, %v509
    %685 = vst.msk [vmem:[#allocation2 + $0x228] sm:$0xff] %vm615, %v511
    %686 = vst.msk [vmem:[#allocation2 + $0x230] sm:$0xff] %vm615, %v513
    %687 = vst.msk [vmem:[#allocation2 + $0x238] sm:$0xff] %vm615, %v515
    %688 = vst.msk [vmem:[#allocation2 + $0x240] sm:$0xff] %vm615, %v517
    %689 = vst.msk [vmem:[#allocation2 + $0x248] sm:$0xff] %vm615, %v519
    %690 = vst.msk [vmem:[#allocation2 + $0x250] sm:$0xff] %vm615, %v521
    %691 = vst.msk [vmem:[#allocation2 + $0x258] sm:$0xff] %vm615, %v523
    %692 = vst.msk [vmem:[#allocation2 + $0x260] sm:$0xff] %vm615, %v525
    %693 = vst.msk [vmem:[#allocation2 + $0x268] sm:$0xff] %vm615, %v527
    %694 = vst.msk [vmem:[#allocation2 + $0x270] sm:$0xff] %vm615, %v529
    %695 = vst.msk [vmem:[#allocation2 + $0x278] sm:$0xff] %vm615, %v531
    %696 = vst.msk [vmem:[#allocation2 + $0x280] sm:$0xff] %vm615, %v533
    %v697 = vld [vmem:[%s0 + $0x2] sm:$0xff]
    %v698 = vld [vmem:[%s0 + $0xa] sm:$0xff]
    %v699 = vld [vmem:[%s0 + $0x12] sm:$0xff]
    %v700 = vld [vmem:[%s0 + $0x1a] sm:$0xff]
    %v701 = vld [vmem:[%s0 + $0x22] sm:$0xff]
    %v702 = vld [vmem:[%s0 + $0x2a] sm:$0xff]
    %v703 = vld [vmem:[%s0 + $0x32] sm:$0xff]
    %v704 = vld [vmem:[%s0 + $0x3a] sm:$0xff]
    %v705 = vld [vmem:[%s0 + $0x42] sm:$0xff]
    %v706 = vld [vmem:[%s0 + $0x4a] sm:$0xff]
    %v707 = vld [vmem:[%s0 + $0x52] sm:$0xff]
    %v708 = vld [vmem:[%s0 + $0x5a] sm:$0xff]
    %v709 = vld [vmem:[%s0 + $0x62] sm:$0xff]
    %v710 = vld [vmem:[%s0 + $0x6a] sm:$0xff]
    %v711 = vld [vmem:[%s0 + $0x72] sm:$0xff]
    %v712 = vld [vmem:[%s0 + $0x7a] sm:$0xff]
    %v713 = vld [vmem:[%s0 + $0x82] sm:$0xff]
    %v714 = vld [vmem:[%s0 + $0x8a] sm:$0xff]
    %v715 = vld [vmem:[%s0 + $0x92] sm:$0xff]
    %v716 = vld [vmem:[%s0 + $0x9a] sm:$0xff]
    %v717 = vld [vmem:[%s0 + $0xa2] sm:$0xff]
    %v718 = vld [vmem:[%s0 + $0xaa] sm:$0xff]
    %v719 = vld [vmem:[%s0 + $0xb2] sm:$0xff]
    %v720 = vld [vmem:[%s0 + $0xba] sm:$0xff]
    %v721 = vld [vmem:[%s0 + $0xc2] sm:$0xff]
    %v722 = vld [vmem:[%s0 + $0xca] sm:$0xff]
    %v723 = vld [vmem:[%s0 + $0xd2] sm:$0xff]
    %v724 = vld [vmem:[%s0 + $0xda] sm:$0xff]
    %v725 = vld [vmem:[%s0 + $0xe2] sm:$0xff]
    %v726 = vld [vmem:[%s0 + $0xea] sm:$0xff]
    %v727 = vld [vmem:[%s0 + $0xf2] sm:$0xff]
    %v728 = vld [vmem:[%s0 + $0xfa] sm:$0xff]
    %v729 = vld [vmem:[%s0 + $0x102] sm:$0xff]
    %v730 = vld [vmem:[%s0 + $0x10a] sm:$0xff]
    %v731 = vld [vmem:[%s0 + $0x112] sm:$0xff]
    %v732 = vld [vmem:[%s0 + $0x11a] sm:$0xff]
    %v733 = vld [vmem:[%s0 + $0x122] sm:$0xff]
    %v734 = vld [vmem:[%s0 + $0x12a] sm:$0xff]
    %v735 = vld [vmem:[%s0 + $0x132] sm:$0xff]
    %v736 = vld [vmem:[%s0 + $0x13a] sm:$0xff]
    %v737 = vld [vmem:[%s0 + $0x142] sm:$0xff]
    %v738 = vld [vmem:[%s0 + $0x14a] sm:$0xff]
    %v739 = vld [vmem:[%s0 + $0x152] sm:$0xff]
    %v740 = vld [vmem:[%s0 + $0x15a] sm:$0xff]
    %v741 = vld [vmem:[%s0 + $0x162] sm:$0xff]
    %v742 = vld [vmem:[%s0 + $0x16a] sm:$0xff]
    %v743 = vld [vmem:[%s0 + $0x172] sm:$0xff]
    %v744 = vld [vmem:[%s0 + $0x17a] sm:$0xff]
    %v745 = vld [vmem:[%s0 + $0x182] sm:$0xff]
    %v746 = vld [vmem:[%s0 + $0x18a] sm:$0xff]
    %v747 = vld [vmem:[%s0 + $0x192] sm:$0xff]
    %v748 = vld [vmem:[%s0 + $0x19a] sm:$0xff]
    %v749 = vld [vmem:[%s0 + $0x1a2] sm:$0xff]
    %v750 = vld [vmem:[%s0 + $0x1aa] sm:$0xff]
    %v751 = vld [vmem:[%s0 + $0x1b2] sm:$0xff]
    %v752 = vld [vmem:[%s0 + $0x1ba] sm:$0xff]
    %v753 = vld [vmem:[%s0 + $0x1c2] sm:$0xff]
    %v754 = vld [vmem:[%s0 + $0x1ca] sm:$0xff]
    %v755 = vld [vmem:[%s0 + $0x1d2] sm:$0xff]
    %v756 = vld [vmem:[%s0 + $0x1da] sm:$0xff]
    %v757 = vld [vmem:[%s0 + $0x1e2] sm:$0xff]
    %v758 = vld [vmem:[%s0 + $0x1ea] sm:$0xff]
    %v759 = vld [vmem:[%s0 + $0x1f2] sm:$0xff]
    %v760 = vld [vmem:[%s0 + $0x1fa] sm:$0xff]
    %v761 = vld [vmem:[%s0 + $0x202] sm:$0xff]
    %v762 = vld [vmem:[%s0 + $0x20a] sm:$0xff]
    %v763 = vld [vmem:[%s0 + $0x212] sm:$0xff]
    %v764 = vld [vmem:[%s0 + $0x21a] sm:$0xff]
    %v765 = vld [vmem:[%s0 + $0x222] sm:$0xff]
    %v766 = vld [vmem:[%s0 + $0x22a] sm:$0xff]
    %v767 = vld [vmem:[%s0 + $0x232] sm:$0xff]
    %v768 = vld [vmem:[%s0 + $0x23a] sm:$0xff]
    %v769 = vld [vmem:[%s0 + $0x242] sm:$0xff]
    %v770 = vld [vmem:[%s0 + $0x24a] sm:$0xff]
    %v771 = vld [vmem:[%s0 + $0x252] sm:$0xff]
    %v772 = vld [vmem:[%s0 + $0x25a] sm:$0xff]
    %v773 = vld [vmem:[%s0 + $0x262] sm:$0xff]
    %v774 = vld [vmem:[%s0 + $0x26a] sm:$0xff]
    %v775 = vld [vmem:[%s0 + $0x272] sm:$0xff]
    %v776 = vld [vmem:[%s0 + $0x27a] sm:$0xff]
    %v777 = vld [vmem:[%s0 + $0x282] sm:$0xff]
    %859 = vrot.lane.b32.xlu0 %v697, 6
    %v860 = vpop.permute.xlu0 %859
    %861 = vrot.lane.b32.xlu0 %v698, 6
    %v862 = vpop.permute.xlu0 %861
    %863 = vrot.lane.b32.xlu0 %v699, 6
    %v864 = vpop.permute.xlu0 %863
    %865 = vrot.lane.b32.xlu0 %v700, 6
    %v866 = vpop.permute.xlu0 %865
    %867 = vrot.lane.b32.xlu0 %v701, 6
    %v868 = vpop.permute.xlu0 %867
    %869 = vrot.lane.b32.xlu0 %v702, 6
    %v870 = vpop.permute.xlu0 %869
    %871 = vrot.lane.b32.xlu0 %v703, 6
    %v872 = vpop.permute.xlu0 %871
    %873 = vrot.lane.b32.xlu0 %v704, 6
    %v874 = vpop.permute.xlu0 %873
    %875 = vrot.lane.b32.xlu0 %v705, 6
    %v876 = vpop.permute.xlu0 %875
    %877 = vrot.lane.b32.xlu0 %v706, 6
    %v878 = vpop.permute.xlu0 %877
    %879 = vrot.lane.b32.xlu0 %v707, 6
    %v880 = vpop.permute.xlu0 %879
    %881 = vrot.lane.b32.xlu0 %v708, 6
    %v882 = vpop.permute.xlu0 %881
    %883 = vrot.lane.b32.xlu0 %v709, 6
    %v884 = vpop.permute.xlu0 %883
    %885 = vrot.lane.b32.xlu0 %v710, 6
    %v886 = vpop.permute.xlu0 %885
    %887 = vrot.lane.b32.xlu0 %v711, 6
    %v888 = vpop.permute.xlu0 %887
    %889 = vrot.lane.b32.xlu0 %v712, 6
    %v890 = vpop.permute.xlu0 %889
    %891 = vrot.lane.b32.xlu0 %v713, 6
    %v892 = vpop.permute.xlu0 %891
    %893 = vrot.lane.b32.xlu0 %v714, 6
    %v894 = vpop.permute.xlu0 %893
    %895 = vrot.lane.b32.xlu0 %v715, 6
    %v896 = vpop.permute.xlu0 %895
    %897 = vrot.lane.b32.xlu0 %v716, 6
    %v898 = vpop.permute.xlu0 %897
    %899 = vrot.lane.b32.xlu0 %v717, 6
    %v900 = vpop.permute.xlu0 %899
    %901 = vrot.lane.b32.xlu0 %v718, 6
    %v902 = vpop.permute.xlu0 %901
    %903 = vrot.lane.b32.xlu0 %v719, 6
    %v904 = vpop.permute.xlu0 %903
    %905 = vrot.lane.b32.xlu0 %v720, 6
    %v906 = vpop.permute.xlu0 %905
    %907 = vrot.lane.b32.xlu0 %v721, 6
    %v908 = vpop.permute.xlu0 %907
    %909 = vrot.lane.b32.xlu0 %v722, 6
    %v910 = vpop.permute.xlu0 %909
    %911 = vrot.lane.b32.xlu0 %v723, 6
    %v912 = vpop.permute.xlu0 %911
    %913 = vrot.lane.b32.xlu0 %v724, 6
    %v914 = vpop.permute.xlu0 %913
    %915 = vrot.lane.b32.xlu0 %v725, 6
    %v916 = vpop.permute.xlu0 %915
    %917 = vrot.lane.b32.xlu0 %v726, 6
    %v918 = vpop.permute.xlu0 %917
    %919 = vrot.lane.b32.xlu0 %v727, 6
    %v920 = vpop.permute.xlu0 %919
    %921 = vrot.lane.b32.xlu0 %v728, 6
    %v922 = vpop.permute.xlu0 %921
    %923 = vrot.lane.b32.xlu0 %v729, 6
    %v924 = vpop.permute.xlu0 %923
    %925 = vrot.lane.b32.xlu0 %v730, 6
    %v926 = vpop.permute.xlu0 %925
    %927 = vrot.lane.b32.xlu0 %v731, 6
    %v928 = vpop.permute.xlu0 %927
    %929 = vrot.lane.b32.xlu0 %v732, 6
    %v930 = vpop.permute.xlu0 %929
    %931 = vrot.lane.b32.xlu0 %v733, 6
    %v932 = vpop.permute.xlu0 %931
    %933 = vrot.lane.b32.xlu0 %v734, 6
    %v934 = vpop.permute.xlu0 %933
    %935 = vrot.lane.b32.xlu0 %v735, 6
    %v936 = vpop.permute.xlu0 %935
    %937 = vrot.lane.b32.xlu0 %v736, 6
    %v938 = vpop.permute.xlu0 %937
    %939 = vrot.lane.b32.xlu0 %v737, 6
    %v940 = vpop.permute.xlu0 %939
    %941 = vrot.lane.b32.xlu0 %v738, 6
    %v942 = vpop.permute.xlu0 %941
    %943 = vrot.lane.b32.xlu0 %v739, 6
    %v944 = vpop.permute.xlu0 %943
    %945 = vrot.lane.b32.xlu0 %v740, 6
    %v946 = vpop.permute.xlu0 %945
    %947 = vrot.lane.b32.xlu0 %v741, 6
    %v948 = vpop.permute.xlu0 %947
    %949 = vrot.lane.b32.xlu0 %v742, 6
    %v950 = vpop.permute.xlu0 %949
    %951 = vrot.lane.b32.xlu0 %v743, 6
    %v952 = vpop.permute.xlu0 %951
    %953 = vrot.lane.b32.xlu0 %v744, 6
    %v954 = vpop.permute.xlu0 %953
    %955 = vrot.lane.b32.xlu0 %v745, 6
    %v956 = vpop.permute.xlu0 %955
    %957 = vrot.lane.b32.xlu0 %v746, 6
    %v958 = vpop.permute.xlu0 %957
    %959 = vrot.lane.b32.xlu0 %v747, 6
    %v960 = vpop.permute.xlu0 %959
    %961 = vrot.lane.b32.xlu0 %v748, 6
    %v962 = vpop.permute.xlu0 %961
    %963 = vrot.lane.b32.xlu0 %v749, 6
    %v964 = vpop.permute.xlu0 %963
    %965 = vrot.lane.b32.xlu0 %v750, 6
    %v966 = vpop.permute.xlu0 %965
    %967 = vrot.lane.b32.xlu0 %v751, 6
    %v968 = vpop.permute.xlu0 %967
    %969 = vrot.lane.b32.xlu0 %v752, 6
    %v970 = vpop.permute.xlu0 %969
    %971 = vrot.lane.b32.xlu0 %v753, 6
    %v972 = vpop.permute.xlu0 %971
    %973 = vrot.lane.b32.xlu0 %v754, 6
    %v974 = vpop.permute.xlu0 %973
    %975 = vrot.lane.b32.xlu0 %v755, 6
    %v976 = vpop.permute.xlu0 %975
    %977 = vrot.lane.b32.xlu0 %v756, 6
    %v978 = vpop.permute.xlu0 %977
    %979 = vrot.lane.b32.xlu0 %v757, 6
    %v980 = vpop.permute.xlu0 %979
    %981 = vrot.lane.b32.xlu0 %v758, 6
    %v982 = vpop.permute.xlu0 %981
    %983 = vrot.lane.b32.xlu0 %v759, 6
    %v984 = vpop.permute.xlu0 %983
    %985 = vrot.lane.b32.xlu0 %v760, 6
    %v986 = vpop.permute.xlu0 %985
    %987 = vrot.lane.b32.xlu0 %v761, 6
    %v988 = vpop.permute.xlu0 %987
    %989 = vrot.lane.b32.xlu0 %v762, 6
    %v990 = vpop.permute.xlu0 %989
    %991 = vrot.lane.b32.xlu0 %v763, 6
    %v992 = vpop.permute.xlu0 %991
    %993 = vrot.lane.b32.xlu0 %v764, 6
    %v994 = vpop.permute.xlu0 %993
    %995 = vrot.lane.b32.xlu0 %v765, 6
    %v996 = vpop.permute.xlu0 %995
    %997 = vrot.lane.b32.xlu0 %v766, 6
    %v998 = vpop.permute.xlu0 %997
    %999 = vrot.lane.b32.xlu0 %v767, 6
    %v1000 = vpop.permute.xlu0 %999
    %1001 = vrot.lane.b32.xlu0 %v768, 6
    %v1002 = vpop.permute.xlu0 %1001
    %1003 = vrot.lane.b32.xlu0 %v769, 6
    %v1004 = vpop.permute.xlu0 %1003
    %1005 = vrot.lane.b32.xlu0 %v770, 6
    %v1006 = vpop.permute.xlu0 %1005
    %1007 = vrot.lane.b32.xlu0 %v771, 6
    %v1008 = vpop.permute.xlu0 %1007
    %1009 = vrot.lane.b32.xlu0 %v772, 6
    %v1010 = vpop.permute.xlu0 %1009
    %1011 = vrot.lane.b32.xlu0 %v773, 6
    %v1012 = vpop.permute.xlu0 %1011
    %1013 = vrot.lane.b32.xlu0 %v774, 6
    %v1014 = vpop.permute.xlu0 %1013
    %1015 = vrot.lane.b32.xlu0 %v775, 6
    %v1016 = vpop.permute.xlu0 %1015
    %1017 = vrot.lane.b32.xlu0 %v776, 6
    %v1018 = vpop.permute.xlu0 %1017
    %1019 = vrot.lane.b32.xlu0 %v777, 6
    %v1020 = vpop.permute.xlu0 %1019
    %vm1102 = vcmask 72752
    %1103 = vst.msk [vmem:[#allocation2] sm:$0xff] %vm1102, %v860
    %1104 = vst.msk [vmem:[#allocation2 + $0x8] sm:$0xff] %vm1102, %v862
    %1105 = vst.msk [vmem:[#allocation2 + $0x10] sm:$0xff] %vm1102, %v864
    %1106 = vst.msk [vmem:[#allocation2 + $0x18] sm:$0xff] %vm1102, %v866
    %1107 = vst.msk [vmem:[#allocation2 + $0x20] sm:$0xff] %vm1102, %v868
    %1108 = vst.msk [vmem:[#allocation2 + $0x28] sm:$0xff] %vm1102, %v870
    %1109 = vst.msk [vmem:[#allocation2 + $0x30] sm:$0xff] %vm1102, %v872
    %1110 = vst.msk [vmem:[#allocation2 + $0x38] sm:$0xff] %vm1102, %v874
    %1111 = vst.msk [vmem:[#allocation2 + $0x40] sm:$0xff] %vm1102, %v876
    %1112 = vst.msk [vmem:[#allocation2 + $0x48] sm:$0xff] %vm1102, %v878
    %1113 = vst.msk [vmem:[#allocation2 + $0x50] sm:$0xff] %vm1102, %v880
    %1114 = vst.msk [vmem:[#allocation2 + $0x58] sm:$0xff] %vm1102, %v882
    %1115 = vst.msk [vmem:[#allocation2 + $0x60] sm:$0xff] %vm1102, %v884
    %1116 = vst.msk [vmem:[#allocation2 + $0x68] sm:$0xff] %vm1102, %v886
    %1117 = vst.msk [vmem:[#allocation2 + $0x70] sm:$0xff] %vm1102, %v888
    %1118 = vst.msk [vmem:[#allocation2 + $0x78] sm:$0xff] %vm1102, %v890
    %1119 = vst.msk [vmem:[#allocation2 + $0x80] sm:$0xff] %vm1102, %v892
    %1120 = vst.msk [vmem:[#allocation2 + $0x88] sm:$0xff] %vm1102, %v894
    %1121 = vst.msk [vmem:[#allocation2 + $0x90] sm:$0xff] %vm1102, %v896
    %1122 = vst.msk [vmem:[#allocation2 + $0x98] sm:$0xff] %vm1102, %v898
    %1123 = vst.msk [vmem:[#allocation2 + $0xa0] sm:$0xff] %vm1102, %v900
    %1124 = vst.msk [vmem:[#allocation2 + $0xa8] sm:$0xff] %vm1102, %v902
    %1125 = vst.msk [vmem:[#allocation2 + $0xb0] sm:$0xff] %vm1102, %v904
    %1126 = vst.msk [vmem:[#allocation2 + $0xb8] sm:$0xff] %vm1102, %v906
    %1127 = vst.msk [vmem:[#allocation2 + $0xc0] sm:$0xff] %vm1102, %v908
    %1128 = vst.msk [vmem:[#allocation2 + $0xc8] sm:$0xff] %vm1102, %v910
    %1129 = vst.msk [vmem:[#allocation2 + $0xd0] sm:$0xff] %vm1102, %v912
    %1130 = vst.msk [vmem:[#allocation2 + $0xd8] sm:$0xff] %vm1102, %v914
    %1131 = vst.msk [vmem:[#allocation2 + $0xe0] sm:$0xff] %vm1102, %v916
    %1132 = vst.msk [vmem:[#allocation2 + $0xe8] sm:$0xff] %vm1102, %v918
    %1133 = vst.msk [vmem:[#allocation2 + $0xf0] sm:$0xff] %vm1102, %v920
    %1134 = vst.msk [vmem:[#allocation2 + $0xf8] sm:$0xff] %vm1102, %v922
    %1135 = vst.msk [vmem:[#allocation2 + $0x100] sm:$0xff] %vm1102, %v924
    %1136 = vst.msk [vmem:[#allocation2 + $0x108] sm:$0xff] %vm1102, %v926
    %1137 = vst.msk [vmem:[#allocation2 + $0x110] sm:$0xff] %vm1102, %v928
    %1138 = vst.msk [vmem:[#allocation2 + $0x118] sm:$0xff] %vm1102, %v930
    %1139 = vst.msk [vmem:[#allocation2 + $0x120] sm:$0xff] %vm1102, %v932
    %1140 = vst.msk [vmem:[#allocation2 + $0x128] sm:$0xff] %vm1102, %v934
    %1141 = vst.msk [vmem:[#allocation2 + $0x130] sm:$0xff] %vm1102, %v936
    %1142 = vst.msk [vmem:[#allocation2 + $0x138] sm:$0xff] %vm1102, %v938
    %1143 = vst.msk [vmem:[#allocation2 + $0x140] sm:$0xff] %vm1102, %v940
    %1144 = vst.msk [vmem:[#allocation2 + $0x148] sm:$0xff] %vm1102, %v942
    %1145 = vst.msk [vmem:[#allocation2 + $0x150] sm:$0xff] %vm1102, %v944
    %1146 = vst.msk [vmem:[#allocation2 + $0x158] sm:$0xff] %vm1102, %v946
    %1147 = vst.msk [vmem:[#allocation2 + $0x160] sm:$0xff] %vm1102, %v948
    %1148 = vst.msk [vmem:[#allocation2 + $0x168] sm:$0xff] %vm1102, %v950
    %1149 = vst.msk [vmem:[#allocation2 + $0x170] sm:$0xff] %vm1102, %v952
    %1150 = vst.msk [vmem:[#allocation2 + $0x178] sm:$0xff] %vm1102, %v954
    %1151 = vst.msk [vmem:[#allocation2 + $0x180] sm:$0xff] %vm1102, %v956
    %1152 = vst.msk [vmem:[#allocation2 + $0x188] sm:$0xff] %vm1102, %v958
    %1153 = vst.msk [vmem:[#allocation2 + $0x190] sm:$0xff] %vm1102, %v960
    %1154 = vst.msk [vmem:[#allocation2 + $0x198] sm:$0xff] %vm1102, %v962
    %1155 = vst.msk [vmem:[#allocation2 + $0x1a0] sm:$0xff] %vm1102, %v964
    %1156 = vst.msk [vmem:[#allocation2 + $0x1a8] sm:$0xff] %vm1102, %v966
    %1157 = vst.msk [vmem:[#allocation2 + $0x1b0] sm:$0xff] %vm1102, %v968
    %1158 = vst.msk [vmem:[#allocation2 + $0x1b8] sm:$0xff] %vm1102, %v970
    %1159 = vst.msk [vmem:[#allocation2 + $0x1c0] sm:$0xff] %vm1102, %v972
    %1160 = vst.msk [vmem:[#allocation2 + $0x1c8] sm:$0xff] %vm1102, %v974
    %1161 = vst.msk [vmem:[#allocation2 + $0x1d0] sm:$0xff] %vm1102, %v976
    %1162 = vst.msk [vmem:[#allocation2 + $0x1d8] sm:$0xff] %vm1102, %v978
    %1163 = vst.msk [vmem:[#allocation2 + $0x1e0] sm:$0xff] %vm1102, %v980
    %1164 = vst.msk [vmem:[#allocation2 + $0x1e8] sm:$0xff] %vm1102, %v982
    %1165 = vst.msk [vmem:[#allocation2 + $0x1f0] sm:$0xff] %vm1102, %v984
    %1166 = vst.msk [vmem:[#allocation2 + $0x1f8] sm:$0xff] %vm1102, %v986
    %1167 = vst.msk [vmem:[#allocation2 + $0x200] sm:$0xff] %vm1102, %v988
    %1168 = vst.msk [vmem:[#allocation2 + $0x208] sm:$0xff] %vm1102, %v990
    %1169 = vst.msk [vmem:[#allocation2 + $0x210] sm:$0xff] %vm1102, %v992
    %1170 = vst.msk [vmem:[#allocation2 + $0x218] sm:$0xff] %vm1102, %v994
    %1171 = vst.msk [vmem:[#allocation2 + $0x220] sm:$0xff] %vm1102, %v996
    %1172 = vst.msk [vmem:[#allocation2 + $0x228] sm:$0xff] %vm1102, %v998
    %1173 = vst.msk [vmem:[#allocation2 + $0x230] sm:$0xff] %vm1102, %v1000
    %1174 = vst.msk [vmem:[#allocation2 + $0x238] sm:$0xff] %vm1102, %v1002
    %1175 = vst.msk [vmem:[#allocation2 + $0x240] sm:$0xff] %vm1102, %v1004
    %1176 = vst.msk [vmem:[#allocation2 + $0x248] sm:$0xff] %vm1102, %v1006
    %1177 = vst.msk [vmem:[#allocation2 + $0x250] sm:$0xff] %vm1102, %v1008
    %1178 = vst.msk [vmem:[#allocation2 + $0x258] sm:$0xff] %vm1102, %v1010
    %1179 = vst.msk [vmem:[#allocation2 + $0x260] sm:$0xff] %vm1102, %v1012
    %1180 = vst.msk [vmem:[#allocation2 + $0x268] sm:$0xff] %vm1102, %v1014
    %1181 = vst.msk [vmem:[#allocation2 + $0x270] sm:$0xff] %vm1102, %v1016
    %1182 = vst.msk [vmem:[#allocation2 + $0x278] sm:$0xff] %vm1102, %v1018
    %1183 = vst.msk [vmem:[#allocation2 + $0x280] sm:$0xff] %vm1102, %v1020
    %v1184 = vld [vmem:[%s0 + $0x12] sm:$0xff]
    %v1185 = vld [vmem:[%s0 + $0x1a] sm:$0xff]
    %v1186 = vld [vmem:[%s0 + $0x22] sm:$0xff]
    %v1187 = vld [vmem:[%s0 + $0x2a] sm:$0xff]
    %v1188 = vld [vmem:[%s0 + $0x32] sm:$0xff]
    %v1189 = vld [vmem:[%s0 + $0x3a] sm:$0xff]
    %v1190 = vld [vmem:[%s0 + $0x42] sm:$0xff]
    %v1191 = vld [vmem:[%s0 + $0x4a] sm:$0xff]
    %v1192 = vld [vmem:[%s0 + $0x52] sm:$0xff]
    %v1193 = vld [vmem:[%s0 + $0x5a] sm:$0xff]
    %v1194 = vld [vmem:[%s0 + $0x62] sm:$0xff]
    %v1195 = vld [vmem:[%s0 + $0x6a] sm:$0xff]
    %v1196 = vld [vmem:[%s0 + $0x72] sm:$0xff]
    %v1197 = vld [vmem:[%s0 + $0x7a] sm:$0xff]
    %v1198 = vld [vmem:[%s0 + $0x82] sm:$0xff]
    %v1199 = vld [vmem:[%s0 + $0x8a] sm:$0xff]
    %v1200 = vld [vmem:[%s0 + $0x92] sm:$0xff]
    %v1201 = vld [vmem:[%s0 + $0x9a] sm:$0xff]
    %v1202 = vld [vmem:[%s0 + $0xa2] sm:$0xff]
    %v1203 = vld [vmem:[%s0 + $0xaa] sm:$0xff]
    %v1204 = vld [vmem:[%s0 + $0xb2] sm:$0xff]
    %v1205 = vld [vmem:[%s0 + $0xba] sm:$0xff]
    %v1206 = vld [vmem:[%s0 + $0xc2] sm:$0xff]
    %v1207 = vld [vmem:[%s0 + $0xca] sm:$0xff]
    %v1208 = vld [vmem:[%s0 + $0xd2] sm:$0xff]
    %v1209 = vld [vmem:[%s0 + $0xda] sm:$0xff]
    %v1210 = vld [vmem:[%s0 + $0xe2] sm:$0xff]
    %v1211 = vld [vmem:[%s0 + $0xea] sm:$0xff]
    %v1212 = vld [vmem:[%s0 + $0xf2] sm:$0xff]
    %v1213 = vld [vmem:[%s0 + $0xfa] sm:$0xff]
    %v1214 = vld [vmem:[%s0 + $0x102] sm:$0xff]
    %v1215 = vld [vmem:[%s0 + $0x10a] sm:$0xff]
    %v1216 = vld [vmem:[%s0 + $0x112] sm:$0xff]
    %v1217 = vld [vmem:[%s0 + $0x11a] sm:$0xff]
    %v1218 = vld [vmem:[%s0 + $0x122] sm:$0xff]
    %v1219 = vld [vmem:[%s0 + $0x12a] sm:$0xff]
    %v1220 = vld [vmem:[%s0 + $0x132] sm:$0xff]
    %v1221 = vld [vmem:[%s0 + $0x13a] sm:$0xff]
    %v1222 = vld [vmem:[%s0 + $0x142] sm:$0xff]
    %v1223 = vld [vmem:[%s0 + $0x14a] sm:$0xff]
    %v1224 = vld [vmem:[%s0 + $0x152] sm:$0xff]
    %v1225 = vld [vmem:[%s0 + $0x15a] sm:$0xff]
    %v1226 = vld [vmem:[%s0 + $0x162] sm:$0xff]
    %v1227 = vld [vmem:[%s0 + $0x16a] sm:$0xff]
    %v1228 = vld [vmem:[%s0 + $0x172] sm:$0xff]
    %v1229 = vld [vmem:[%s0 + $0x17a] sm:$0xff]
    %v1230 = vld [vmem:[%s0 + $0x182] sm:$0xff]
    %v1231 = vld [vmem:[%s0 + $0x18a] sm:$0xff]
    %v1232 = vld [vmem:[%s0 + $0x192] sm:$0xff]
    %v1233 = vld [vmem:[%s0 + $0x19a] sm:$0xff]
    %v1234 = vld [vmem:[%s0 + $0x1a2] sm:$0xff]
    %v1235 = vld [vmem:[%s0 + $0x1aa] sm:$0xff]
    %v1236 = vld [vmem:[%s0 + $0x1b2] sm:$0xff]
    %v1237 = vld [vmem:[%s0 + $0x1ba] sm:$0xff]
    %v1238 = vld [vmem:[%s0 + $0x1c2] sm:$0xff]
    %v1239 = vld [vmem:[%s0 + $0x1ca] sm:$0xff]
    %v1240 = vld [vmem:[%s0 + $0x1d2] sm:$0xff]
    %v1241 = vld [vmem:[%s0 + $0x1da] sm:$0xff]
    %v1242 = vld [vmem:[%s0 + $0x1e2] sm:$0xff]
    %v1243 = vld [vmem:[%s0 + $0x1ea] sm:$0xff]
    %v1244 = vld [vmem:[%s0 + $0x1f2] sm:$0xff]
    %v1245 = vld [vmem:[%s0 + $0x1fa] sm:$0xff]
    %v1246 = vld [vmem:[%s0 + $0x202] sm:$0xff]
    %v1247 = vld [vmem:[%s0 + $0x20a] sm:$0xff]
    %v1248 = vld [vmem:[%s0 + $0x212] sm:$0xff]
    %v1249 = vld [vmem:[%s0 + $0x21a] sm:$0xff]
    %v1250 = vld [vmem:[%s0 + $0x222] sm:$0xff]
    %v1251 = vld [vmem:[%s0 + $0x22a] sm:$0xff]
    %v1252 = vld [vmem:[%s0 + $0x232] sm:$0xff]
    %v1253 = vld [vmem:[%s0 + $0x23a] sm:$0xff]
    %v1254 = vld [vmem:[%s0 + $0x242] sm:$0xff]
    %v1255 = vld [vmem:[%s0 + $0x24a] sm:$0xff]
    %v1256 = vld [vmem:[%s0 + $0x252] sm:$0xff]
    %v1257 = vld [vmem:[%s0 + $0x25a] sm:$0xff]
    %v1258 = vld [vmem:[%s0 + $0x262] sm:$0xff]
    %v1259 = vld [vmem:[%s0 + $0x26a] sm:$0xff]
    %v1260 = vld [vmem:[%s0 + $0x272] sm:$0xff]
    %v1261 = vld [vmem:[%s0 + $0x27a] sm:$0xff]
    %v1262 = vld [vmem:[%s0 + $0x282] sm:$0xff]
    %v1263 = vld [vmem:[%s0 + $0x28a] sm:$0xff]
    %v1264 = vld [vmem:[%s0 + $0x292] sm:$0xff]
    %1346 = vrot.lane.b32.xlu0 %v1184, 9
    %v1347 = vpop.permute.xlu0 %1346
    %1348 = vrot.lane.b32.xlu0 %v1185, 9
    %v1349 = vpop.permute.xlu0 %1348
    %1350 = vrot.lane.b32.xlu0 %v1186, 9
    %v1351 = vpop.permute.xlu0 %1350
    %1352 = vrot.lane.b32.xlu0 %v1187, 9
    %v1353 = vpop.permute.xlu0 %1352
    %1354 = vrot.lane.b32.xlu0 %v1188, 9
    %v1355 = vpop.permute.xlu0 %1354
    %1356 = vrot.lane.b32.xlu0 %v1189, 9
    %v1357 = vpop.permute.xlu0 %1356
    %1358 = vrot.lane.b32.xlu0 %v1190, 9
    %v1359 = vpop.permute.xlu0 %1358
    %1360 = vrot.lane.b32.xlu0 %v1191, 9
    %v1361 = vpop.permute.xlu0 %1360
    %1362 = vrot.lane.b32.xlu0 %v1192, 9
    %v1363 = vpop.permute.xlu0 %1362
    %1364 = vrot.lane.b32.xlu0 %v1193, 9
    %v1365 = vpop.permute.xlu0 %1364
    %1366 = vrot.lane.b32.xlu0 %v1194, 9
    %v1367 = vpop.permute.xlu0 %1366
    %1368 = vrot.lane.b32.xlu0 %v1195, 9
    %v1369 = vpop.permute.xlu0 %1368
    %1370 = vrot.lane.b32.xlu0 %v1196, 9
    %v1371 = vpop.permute.xlu0 %1370
    %1372 = vrot.lane.b32.xlu0 %v1197, 9
    %v1373 = vpop.permute.xlu0 %1372
    %1374 = vrot.lane.b32.xlu0 %v1198, 9
    %v1375 = vpop.permute.xlu0 %1374
    %1376 = vrot.lane.b32.xlu0 %v1199, 9
    %v1377 = vpop.permute.xlu0 %1376
    %1378 = vrot.lane.b32.xlu0 %v1200, 9
    %v1379 = vpop.permute.xlu0 %1378
    %1380 = vrot.lane.b32.xlu0 %v1201, 9
    %v1381 = vpop.permute.xlu0 %1380
    %1382 = vrot.lane.b32.xlu0 %v1202, 9
    %v1383 = vpop.permute.xlu0 %1382
    %1384 = vrot.lane.b32.xlu0 %v1203, 9
    %v1385 = vpop.permute.xlu0 %1384
    %1386 = vrot.lane.b32.xlu0 %v1204, 9
    %v1387 = vpop.permute.xlu0 %1386
    %1388 = vrot.lane.b32.xlu0 %v1205, 9
    %v1389 = vpop.permute.xlu0 %1388
    %1390 = vrot.lane.b32.xlu0 %v1206, 9
    %v1391 = vpop.permute.xlu0 %1390
    %1392 = vrot.lane.b32.xlu0 %v1207, 9
    %v1393 = vpop.permute.xlu0 %1392
    %1394 = vrot.lane.b32.xlu0 %v1208, 9
    %v1395 = vpop.permute.xlu0 %1394
    %1396 = vrot.lane.b32.xlu0 %v1209, 9
    %v1397 = vpop.permute.xlu0 %1396
    %1398 = vrot.lane.b32.xlu0 %v1210, 9
    %v1399 = vpop.permute.xlu0 %1398
    %1400 = vrot.lane.b32.xlu0 %v1211, 9
    %v1401 = vpop.permute.xlu0 %1400
    %1402 = vrot.lane.b32.xlu0 %v1212, 9
    %v1403 = vpop.permute.xlu0 %1402
    %1404 = vrot.lane.b32.xlu0 %v1213, 9
    %v1405 = vpop.permute.xlu0 %1404
    %1406 = vrot.lane.b32.xlu0 %v1214, 9
    %v1407 = vpop.permute.xlu0 %1406
    %1408 = vrot.lane.b32.xlu0 %v1215, 9
    %v1409 = vpop.permute.xlu0 %1408
    %1410 = vrot.lane.b32.xlu0 %v1216, 9
    %v1411 = vpop.permute.xlu0 %1410
    %1412 = vrot.lane.b32.xlu0 %v1217, 9
    %v1413 = vpop.permute.xlu0 %1412
    %1414 = vrot.lane.b32.xlu0 %v1218, 9
    %v1415 = vpop.permute.xlu0 %1414
    %1416 = vrot.lane.b32.xlu0 %v1219, 9
    %v1417 = vpop.permute.xlu0 %1416
    %1418 = vrot.lane.b32.xlu0 %v1220, 9
    %v1419 = vpop.permute.xlu0 %1418
    %1420 = vrot.lane.b32.xlu0 %v1221, 9
    %v1421 = vpop.permute.xlu0 %1420
    %1422 = vrot.lane.b32.xlu0 %v1222, 9
    %v1423 = vpop.permute.xlu0 %1422
    %1424 = vrot.lane.b32.xlu0 %v1223, 9
    %v1425 = vpop.permute.xlu0 %1424
    %1426 = vrot.lane.b32.xlu0 %v1224, 9
    %v1427 = vpop.permute.xlu0 %1426
    %1428 = vrot.lane.b32.xlu0 %v1225, 9
    %v1429 = vpop.permute.xlu0 %1428
    %1430 = vrot.lane.b32.xlu0 %v1226, 9
    %v1431 = vpop.permute.xlu0 %1430
    %1432 = vrot.lane.b32.xlu0 %v1227, 9
    %v1433 = vpop.permute.xlu0 %1432
    %1434 = vrot.lane.b32.xlu0 %v1228, 9
    %v1435 = vpop.permute.xlu0 %1434
    %1436 = vrot.lane.b32.xlu0 %v1229, 9
    %v1437 = vpop.permute.xlu0 %1436
    %1438 = vrot.lane.b32.xlu0 %v1230, 9
    %v1439 = vpop.permute.xlu0 %1438
    %1440 = vrot.lane.b32.xlu0 %v1231, 9
    %v1441 = vpop.permute.xlu0 %1440
    %1442 = vrot.lane.b32.xlu0 %v1232, 9
    %v1443 = vpop.permute.xlu0 %1442
    %1444 = vrot.lane.b32.xlu0 %v1233, 9
    %v1445 = vpop.permute.xlu0 %1444
    %1446 = vrot.lane.b32.xlu0 %v1234, 9
    %v1447 = vpop.permute.xlu0 %1446
    %1448 = vrot.lane.b32.xlu0 %v1235, 9
    %v1449 = vpop.permute.xlu0 %1448
    %1450 = vrot.lane.b32.xlu0 %v1236, 9
    %v1451 = vpop.permute.xlu0 %1450
    %1452 = vrot.lane.b32.xlu0 %v1237, 9
    %v1453 = vpop.permute.xlu0 %1452
    %1454 = vrot.lane.b32.xlu0 %v1238, 9
    %v1455 = vpop.permute.xlu0 %1454
    %1456 = vrot.lane.b32.xlu0 %v1239, 9
    %v1457 = vpop.permute.xlu0 %1456
    %1458 = vrot.lane.b32.xlu0 %v1240, 9
    %v1459 = vpop.permute.xlu0 %1458
    %1460 = vrot.lane.b32.xlu0 %v1241, 9
    %v1461 = vpop.permute.xlu0 %1460
    %1462 = vrot.lane.b32.xlu0 %v1242, 9
    %v1463 = vpop.permute.xlu0 %1462
    %1464 = vrot.lane.b32.xlu0 %v1243, 9
    %v1465 = vpop.permute.xlu0 %1464
    %1466 = vrot.lane.b32.xlu0 %v1244, 9
    %v1467 = vpop.permute.xlu0 %1466
    %1468 = vrot.lane.b32.xlu0 %v1245, 9
    %v1469 = vpop.permute.xlu0 %1468
    %1470 = vrot.lane.b32.xlu0 %v1246, 9
    %v1471 = vpop.permute.xlu0 %1470
    %1472 = vrot.lane.b32.xlu0 %v1247, 9
    %v1473 = vpop.permute.xlu0 %1472
    %1474 = vrot.lane.b32.xlu0 %v1248, 9
    %v1475 = vpop.permute.xlu0 %1474
    %1476 = vrot.lane.b32.xlu0 %v1249, 9
    %v1477 = vpop.permute.xlu0 %1476
    %1478 = vrot.lane.b32.xlu0 %v1250, 9
    %v1479 = vpop.permute.xlu0 %1478
    %1480 = vrot.lane.b32.xlu0 %v1251, 9
    %v1481 = vpop.permute.xlu0 %1480
    %1482 = vrot.lane.b32.xlu0 %v1252, 9
    %v1483 = vpop.permute.xlu0 %1482
    %1484 = vrot.lane.b32.xlu0 %v1253, 9
    %v1485 = vpop.permute.xlu0 %1484
    %1486 = vrot.lane.b32.xlu0 %v1254, 9
    %v1487 = vpop.permute.xlu0 %1486
    %1488 = vrot.lane.b32.xlu0 %v1255, 9
    %v1489 = vpop.permute.xlu0 %1488
    %1490 = vrot.lane.b32.xlu0 %v1256, 9
    %v1491 = vpop.permute.xlu0 %1490
    %1492 = vrot.lane.b32.xlu0 %v1257, 9
    %v1493 = vpop.permute.xlu0 %1492
    %1494 = vrot.lane.b32.xlu0 %v1258, 9
    %v1495 = vpop.permute.xlu0 %1494
    %1496 = vrot.lane.b32.xlu0 %v1259, 9
    %v1497 = vpop.permute.xlu0 %1496
    %1498 = vrot.lane.b32.xlu0 %v1260, 9
    %v1499 = vpop.permute.xlu0 %1498
    %1500 = vrot.lane.b32.xlu0 %v1261, 9
    %v1501 = vpop.permute.xlu0 %1500
    %1502 = vrot.lane.b32.xlu0 %v1262, 9
    %v1503 = vpop.permute.xlu0 %1502
    %1504 = vrot.lane.b32.xlu0 %v1263, 9
    %v1505 = vpop.permute.xlu0 %1504
    %1506 = vrot.lane.b32.xlu0 %v1264, 9
    %v1507 = vpop.permute.xlu0 %1506
    %vm1589 = vcmask 97352
    %1590 = vst.msk [vmem:[#allocation2] sm:$0xff] %vm1589, %v1347
    %1591 = vst.msk [vmem:[#allocation2 + $0x8] sm:$0xff] %vm1589, %v1349
    %1592 = vst.msk [vmem:[#allocation2 + $0x10] sm:$0xff] %vm1589, %v1351
    %1593 = vst.msk [vmem:[#allocation2 + $0x18] sm:$0xff] %vm1589, %v1353
    %1594 = vst.msk [vmem:[#allocation2 + $0x20] sm:$0xff] %vm1589, %v1355
    %1595 = vst.msk [vmem:[#allocation2 + $0x28] sm:$0xff] %vm1589, %v1357
    %1596 = vst.msk [vmem:[#allocation2 + $0x30] sm:$0xff] %vm1589, %v1359
    %1597 = vst.msk [vmem:[#allocation2 + $0x38] sm:$0xff] %vm1589, %v1361
    %1598 = vst.msk [vmem:[#allocation2 + $0x40] sm:$0xff] %vm1589, %v1363
    %1599 = vst.msk [vmem:[#allocation2 + $0x48] sm:$0xff] %vm1589, %v1365
    %1600 = vst.msk [vmem:[#allocation2 + $0x50] sm:$0xff] %vm1589, %v1367
    %1601 = vst.msk [vmem:[#allocation2 + $0x58] sm:$0xff] %vm1589, %v1369
    %1602 = vst.msk [vmem:[#allocation2 + $0x60] sm:$0xff] %vm1589, %v1371
    %1603 = vst.msk [vmem:[#allocation2 + $0x68] sm:$0xff] %vm1589, %v1373
    %1604 = vst.msk [vmem:[#allocation2 + $0x70] sm:$0xff] %vm1589, %v1375
    %1605 = vst.msk [vmem:[#allocation2 + $0x78] sm:$0xff] %vm1589, %v1377
    %1606 = vst.msk [vmem:[#allocation2 + $0x80] sm:$0xff] %vm1589, %v1379
    %1607 = vst.msk [vmem:[#allocation2 + $0x88] sm:$0xff] %vm1589, %v1381
    %1608 = vst.msk [vmem:[#allocation2 + $0x90] sm:$0xff] %vm1589, %v1383
    %1609 = vst.msk [vmem:[#allocation2 + $0x98] sm:$0xff] %vm1589, %v1385
    %1610 = vst.msk [vmem:[#allocation2 + $0xa0] sm:$0xff] %vm1589, %v1387
    %1611 = vst.msk [vmem:[#allocation2 + $0xa8] sm:$0xff] %vm1589, %v1389
    %1612 = vst.msk [vmem:[#allocation2 + $0xb0] sm:$0xff] %vm1589, %v1391
    %1613 = vst.msk [vmem:[#allocation2 + $0xb8] sm:$0xff] %vm1589, %v1393
    %1614 = vst.msk [vmem:[#allocation2 + $0xc0] sm:$0xff] %vm1589, %v1395
    %1615 = vst.msk [vmem:[#allocation2 + $0xc8] sm:$0xff] %vm1589, %v1397
    %1616 = vst.msk [vmem:[#allocation2 + $0xd0] sm:$0xff] %vm1589, %v1399
    %1617 = vst.msk [vmem:[#allocation2 + $0xd8] sm:$0xff] %vm1589, %v1401
    %1618 = vst.msk [vmem:[#allocation2 + $0xe0] sm:$0xff] %vm1589, %v1403
    %1619 = vst.msk [vmem:[#allocation2 + $0xe8] sm:$0xff] %vm1589, %v1405
    %1620 = vst.msk [vmem:[#allocation2 + $0xf0] sm:$0xff] %vm1589, %v1407
    %1621 = vst.msk [vmem:[#allocation2 + $0xf8] sm:$0xff] %vm1589, %v1409
    %1622 = vst.msk [vmem:[#allocation2 + $0x100] sm:$0xff] %vm1589, %v1411
    %1623 = vst.msk [vmem:[#allocation2 + $0x108] sm:$0xff] %vm1589, %v1413
    %1624 = vst.msk [vmem:[#allocation2 + $0x110] sm:$0xff] %vm1589, %v1415
    %1625 = vst.msk [vmem:[#allocation2 + $0x118] sm:$0xff] %vm1589, %v1417
    %1626 = vst.msk [vmem:[#allocation2 + $0x120] sm:$0xff] %vm1589, %v1419
    %1627 = vst.msk [vmem:[#allocation2 + $0x128] sm:$0xff] %vm1589, %v1421
    %1628 = vst.msk [vmem:[#allocation2 + $0x130] sm:$0xff] %vm1589, %v1423
    %1629 = vst.msk [vmem:[#allocation2 + $0x138] sm:$0xff] %vm1589, %v1425
    %1630 = vst.msk [vmem:[#allocation2 + $0x140] sm:$0xff] %vm1589, %v1427
    %1631 = vst.msk [vmem:[#allocation2 + $0x148] sm:$0xff] %vm1589, %v1429
    %1632 = vst.msk [vmem:[#allocation2 + $0x150] sm:$0xff] %vm1589, %v1431
    %1633 = vst.msk [vmem:[#allocation2 + $0x158] sm:$0xff] %vm1589, %v1433
    %1634 = vst.msk [vmem:[#allocation2 + $0x160] sm:$0xff] %vm1589, %v1435
    %1635 = vst.msk [vmem:[#allocation2 + $0x168] sm:$0xff] %vm1589, %v1437
    %1636 = vst.msk [vmem:[#allocation2 + $0x170] sm:$0xff] %vm1589, %v1439
    %1637 = vst.msk [vmem:[#allocation2 + $0x178] sm:$0xff] %vm1589, %v1441
    %1638 = vst.msk [vmem:[#allocation2 + $0x180] sm:$0xff] %vm1589, %v1443
    %1639 = vst.msk [vmem:[#allocation2 + $0x188] sm:$0xff] %vm1589, %v1445
    %1640 = vst.msk [vmem:[#allocation2 + $0x190] sm:$0xff] %vm1589, %v1447
    %1641 = vst.msk [vmem:[#allocation2 + $0x198] sm:$0xff] %vm1589, %v1449
    %1642 = vst.msk [vmem:[#allocation2 + $0x1a0] sm:$0xff] %vm1589, %v1451
    %1643 = vst.msk [vmem:[#allocation2 + $0x1a8] sm:$0xff] %vm1589, %v1453
    %1644 = vst.msk [vmem:[#allocation2 + $0x1b0] sm:$0xff] %vm1589, %v1455
    %1645 = vst.msk [vmem:[#allocation2 + $0x1b8] sm:$0xff] %vm1589, %v1457
    %1646 = vst.msk [vmem:[#allocation2 + $0x1c0] sm:$0xff] %vm1589, %v1459
    %1647 = vst.msk [vmem:[#allocation2 + $0x1c8] sm:$0xff] %vm1589, %v1461
    %1648 = vst.msk [vmem:[#allocation2 + $0x1d0] sm:$0xff] %vm1589, %v1463
    %1649 = vst.msk [vmem:[#allocation2 + $0x1d8] sm:$0xff] %vm1589, %v1465
    %1650 = vst.msk [vmem:[#allocation2 + $0x1e0] sm:$0xff] %vm1589, %v1467
    %1651 = vst.msk [vmem:[#allocation2 + $0x1e8] sm:$0xff] %vm1589, %v1469
    %1652 = vst.msk [vmem:[#allocation2 + $0x1f0] sm:$0xff] %vm1589, %v1471
    %1653 = vst.msk [vmem:[#allocation2 + $0x1f8] sm:$0xff] %vm1589, %v1473
    %1654 = vst.msk [vmem:[#allocation2 + $0x200] sm:$0xff] %vm1589, %v1475
    %1655 = vst.msk [vmem:[#allocation2 + $0x208] sm:$0xff] %vm1589, %v1477
    %1656 = vst.msk [vmem:[#allocation2 + $0x210] sm:$0xff] %vm1589, %v1479
    %1657 = vst.msk [vmem:[#allocation2 + $0x218] sm:$0xff] %vm1589, %v1481
    %1658 = vst.msk [vmem:[#allocation2 + $0x220] sm:$0xff] %vm1589, %v1483
    %1659 = vst.msk [vmem:[#allocation2 + $0x228] sm:$0xff] %vm1589, %v1485
    %1660 = vst.msk [vmem:[#allocation2 + $0x230] sm:$0xff] %vm1589, %v1487
    %1661 = vst.msk [vmem:[#allocation2 + $0x238] sm:$0xff] %vm1589, %v1489
    %1662 = vst.msk [vmem:[#allocation2 + $0x240] sm:$0xff] %vm1589, %v1491
    %1663 = vst.msk [vmem:[#allocation2 + $0x248] sm:$0xff] %vm1589, %v1493
    %1664 = vst.msk [vmem:[#allocation2 + $0x250] sm:$0xff] %vm1589, %v1495
    %1665 = vst.msk [vmem:[#allocation2 + $0x258] sm:$0xff] %vm1589, %v1497
    %1666 = vst.msk [vmem:[#allocation2 + $0x260] sm:$0xff] %vm1589, %v1499
    %1667 = vst.msk [vmem:[#allocation2 + $0x268] sm:$0xff] %vm1589, %v1501
    %1668 = vst.msk [vmem:[#allocation2 + $0x270] sm:$0xff] %vm1589, %v1503
    %1669 = vst.msk [vmem:[#allocation2 + $0x278] sm:$0xff] %vm1589, %v1505
    %1670 = vst.msk [vmem:[#allocation2 + $0x280] sm:$0xff] %vm1589, %v1507
    %v1671 = vld [vmem:[%s0 + $0x13] sm:$0xff]
    %v1672 = vld [vmem:[%s0 + $0x1b] sm:$0xff]
    %v1673 = vld [vmem:[%s0 + $0x23] sm:$0xff]
    %v1674 = vld [vmem:[%s0 + $0x2b] sm:$0xff]
    %v1675 = vld [vmem:[%s0 + $0x33] sm:$0xff]
    %v1676 = vld [vmem:[%s0 + $0x3b] sm:$0xff]
    %v1677 = vld [vmem:[%s0 + $0x43] sm:$0xff]
    %v1678 = vld [vmem:[%s0 + $0x4b] sm:$0xff]
    %v1679 = vld [vmem:[%s0 + $0x53] sm:$0xff]
    %v1680 = vld [vmem:[%s0 + $0x5b] sm:$0xff]
    %v1681 = vld [vmem:[%s0 + $0x63] sm:$0xff]
    %v1682 = vld [vmem:[%s0 + $0x6b] sm:$0xff]
    %v1683 = vld [vmem:[%s0 + $0x73] sm:$0xff]
    %v1684 = vld [vmem:[%s0 + $0x7b] sm:$0xff]
    %v1685 = vld [vmem:[%s0 + $0x83] sm:$0xff]
    %v1686 = vld [vmem:[%s0 + $0x8b] sm:$0xff]
    %v1687 = vld [vmem:[%s0 + $0x93] sm:$0xff]
    %v1688 = vld [vmem:[%s0 + $0x9b] sm:$0xff]
    %v1689 = vld [vmem:[%s0 + $0xa3] sm:$0xff]
    %v1690 = vld [vmem:[%s0 + $0xab] sm:$0xff]
    %v1691 = vld [vmem:[%s0 + $0xb3] sm:$0xff]
    %v1692 = vld [vmem:[%s0 + $0xbb] sm:$0xff]
    %v1693 = vld [vmem:[%s0 + $0xc3] sm:$0xff]
    %v1694 = vld [vmem:[%s0 + $0xcb] sm:$0xff]
    %v1695 = vld [vmem:[%s0 + $0xd3] sm:$0xff]
    %v1696 = vld [vmem:[%s0 + $0xdb] sm:$0xff]
    %v1697 = vld [vmem:[%s0 + $0xe3] sm:$0xff]
    %v1698 = vld [vmem:[%s0 + $0xeb] sm:$0xff]
    %v1699 = vld [vmem:[%s0 + $0xf3] sm:$0xff]
    %v1700 = vld [vmem:[%s0 + $0xfb] sm:$0xff]
    %v1701 = vld [vmem:[%s0 + $0x103] sm:$0xff]
    %v1702 = vld [vmem:[%s0 + $0x10b] sm:$0xff]
    %v1703 = vld [vmem:[%s0 + $0x113] sm:$0xff]
    %v1704 = vld [vmem:[%s0 + $0x11b] sm:$0xff]
    %v1705 = vld [vmem:[%s0 + $0x123] sm:$0xff]
    %v1706 = vld [vmem:[%s0 + $0x12b] sm:$0xff]
    %v1707 = vld [vmem:[%s0 + $0x133] sm:$0xff]
    %v1708 = vld [vmem:[%s0 + $0x13b] sm:$0xff]
    %v1709 = vld [vmem:[%s0 + $0x143] sm:$0xff]
    %v1710 = vld [vmem:[%s0 + $0x14b] sm:$0xff]
    %v1711 = vld [vmem:[%s0 + $0x153] sm:$0xff]
    %v1712 = vld [vmem:[%s0 + $0x15b] sm:$0xff]
    %v1713 = vld [vmem:[%s0 + $0x163] sm:$0xff]
    %v1714 = vld [vmem:[%s0 + $0x16b] sm:$0xff]
    %v1715 = vld [vmem:[%s0 + $0x173] sm:$0xff]
    %v1716 = vld [vmem:[%s0 + $0x17b] sm:$0xff]
    %v1717 = vld [vmem:[%s0 + $0x183] sm:$0xff]
    %v1718 = vld [vmem:[%s0 + $0x18b] sm:$0xff]
    %v1719 = vld [vmem:[%s0 + $0x193] sm:$0xff]
    %v1720 = vld [vmem:[%s0 + $0x19b] sm:$0xff]
    %v1721 = vld [vmem:[%s0 + $0x1a3] sm:$0xff]
    %v1722 = vld [vmem:[%s0 + $0x1ab] sm:$0xff]
    %v1723 = vld [vmem:[%s0 + $0x1b3] sm:$0xff]
    %v1724 = vld [vmem:[%s0 + $0x1bb] sm:$0xff]
    %v1725 = vld [vmem:[%s0 + $0x1c3] sm:$0xff]
    %v1726 = vld [vmem:[%s0 + $0x1cb] sm:$0xff]
    %v1727 = vld [vmem:[%s0 + $0x1d3] sm:$0xff]
    %v1728 = vld [vmem:[%s0 + $0x1db] sm:$0xff]
    %v1729 = vld [vmem:[%s0 + $0x1e3] sm:$0xff]
    %v1730 = vld [vmem:[%s0 + $0x1eb] sm:$0xff]
    %v1731 = vld [vmem:[%s0 + $0x1f3] sm:$0xff]
    %v1732 = vld [vmem:[%s0 + $0x1fb] sm:$0xff]
    %v1733 = vld [vmem:[%s0 + $0x203] sm:$0xff]
    %v1734 = vld [vmem:[%s0 + $0x20b] sm:$0xff]
    %v1735 = vld [vmem:[%s0 + $0x213] sm:$0xff]
    %v1736 = vld [vmem:[%s0 + $0x21b] sm:$0xff]
    %v1737 = vld [vmem:[%s0 + $0x223] sm:$0xff]
    %v1738 = vld [vmem:[%s0 + $0x22b] sm:$0xff]
    %v1739 = vld [vmem:[%s0 + $0x233] sm:$0xff]
    %v1740 = vld [vmem:[%s0 + $0x23b] sm:$0xff]
    %v1741 = vld [vmem:[%s0 + $0x243] sm:$0xff]
    %v1742 = vld [vmem:[%s0 + $0x24b] sm:$0xff]
    %v1743 = vld [vmem:[%s0 + $0x253] sm:$0xff]
    %v1744 = vld [vmem:[%s0 + $0x25b] sm:$0xff]
    %v1745 = vld [vmem:[%s0 + $0x263] sm:$0xff]
    %v1746 = vld [vmem:[%s0 + $0x26b] sm:$0xff]
    %v1747 = vld [vmem:[%s0 + $0x273] sm:$0xff]
    %v1748 = vld [vmem:[%s0 + $0x27b] sm:$0xff]
    %v1749 = vld [vmem:[%s0 + $0x283] sm:$0xff]
    %v1750 = vld [vmem:[%s0 + $0x28b] sm:$0xff]
    %v1751 = vld [vmem:[%s0 + $0x293] sm:$0xff]
    %1833 = vrot.lane.b32.xlu0 %v1671, 12
    %v1834 = vpop.permute.xlu0 %1833
    %1835 = vrot.lane.b32.xlu0 %v1672, 12
    %v1836 = vpop.permute.xlu0 %1835
    %1837 = vrot.lane.b32.xlu0 %v1673, 12
    %v1838 = vpop.permute.xlu0 %1837
    %1839 = vrot.lane.b32.xlu0 %v1674, 12
    %v1840 = vpop.permute.xlu0 %1839
    %1841 = vrot.lane.b32.xlu0 %v1675, 12
    %v1842 = vpop.permute.xlu0 %1841
    %1843 = vrot.lane.b32.xlu0 %v1676, 12
    %v1844 = vpop.permute.xlu0 %1843
    %1845 = vrot.lane.b32.xlu0 %v1677, 12
    %v1846 = vpop.permute.xlu0 %1845
    %1847 = vrot.lane.b32.xlu0 %v1678, 12
    %v1848 = vpop.permute.xlu0 %1847
    %1849 = vrot.lane.b32.xlu0 %v1679, 12
    %v1850 = vpop.permute.xlu0 %1849
    %1851 = vrot.lane.b32.xlu0 %v1680, 12
    %v1852 = vpop.permute.xlu0 %1851
    %1853 = vrot.lane.b32.xlu0 %v1681, 12
    %v1854 = vpop.permute.xlu0 %1853
    %1855 = vrot.lane.b32.xlu0 %v1682, 12
    %v1856 = vpop.permute.xlu0 %1855
    %1857 = vrot.lane.b32.xlu0 %v1683, 12
    %v1858 = vpop.permute.xlu0 %1857
    %1859 = vrot.lane.b32.xlu0 %v1684, 12
    %v1860 = vpop.permute.xlu0 %1859
    %1861 = vrot.lane.b32.xlu0 %v1685, 12
    %v1862 = vpop.permute.xlu0 %1861
    %1863 = vrot.lane.b32.xlu0 %v1686, 12
    %v1864 = vpop.permute.xlu0 %1863
    %1865 = vrot.lane.b32.xlu0 %v1687, 12
    %v1866 = vpop.permute.xlu0 %1865
    %1867 = vrot.lane.b32.xlu0 %v1688, 12
    %v1868 = vpop.permute.xlu0 %1867
    %1869 = vrot.lane.b32.xlu0 %v1689, 12
    %v1870 = vpop.permute.xlu0 %1869
    %1871 = vrot.lane.b32.xlu0 %v1690, 12
    %v1872 = vpop.permute.xlu0 %1871
    %1873 = vrot.lane.b32.xlu0 %v1691, 12
    %v1874 = vpop.permute.xlu0 %1873
    %1875 = vrot.lane.b32.xlu0 %v1692, 12
    %v1876 = vpop.permute.xlu0 %1875
    %1877 = vrot.lane.b32.xlu0 %v1693, 12
    %v1878 = vpop.permute.xlu0 %1877
    %1879 = vrot.lane.b32.xlu0 %v1694, 12
    %v1880 = vpop.permute.xlu0 %1879
    %1881 = vrot.lane.b32.xlu0 %v1695, 12
    %v1882 = vpop.permute.xlu0 %1881
    %1883 = vrot.lane.b32.xlu0 %v1696, 12
    %v1884 = vpop.permute.xlu0 %1883
    %1885 = vrot.lane.b32.xlu0 %v1697, 12
    %v1886 = vpop.permute.xlu0 %1885
    %1887 = vrot.lane.b32.xlu0 %v1698, 12
    %v1888 = vpop.permute.xlu0 %1887
    %1889 = vrot.lane.b32.xlu0 %v1699, 12
    %v1890 = vpop.permute.xlu0 %1889
    %1891 = vrot.lane.b32.xlu0 %v1700, 12
    %v1892 = vpop.permute.xlu0 %1891
    %1893 = vrot.lane.b32.xlu0 %v1701, 12
    %v1894 = vpop.permute.xlu0 %1893
    %1895 = vrot.lane.b32.xlu0 %v1702, 12
    %v1896 = vpop.permute.xlu0 %1895
    %1897 = vrot.lane.b32.xlu0 %v1703, 12
    %v1898 = vpop.permute.xlu0 %1897
    %1899 = vrot.lane.b32.xlu0 %v1704, 12
    %v1900 = vpop.permute.xlu0 %1899
    %1901 = vrot.lane.b32.xlu0 %v1705, 12
    %v1902 = vpop.permute.xlu0 %1901
    %1903 = vrot.lane.b32.xlu0 %v1706, 12
    %v1904 = vpop.permute.xlu0 %1903
    %1905 = vrot.lane.b32.xlu0 %v1707, 12
    %v1906 = vpop.permute.xlu0 %1905
    %1907 = vrot.lane.b32.xlu0 %v1708, 12
    %v1908 = vpop.permute.xlu0 %1907
    %1909 = vrot.lane.b32.xlu0 %v1709, 12
    %v1910 = vpop.permute.xlu0 %1909
    %1911 = vrot.lane.b32.xlu0 %v1710, 12
    %v1912 = vpop.permute.xlu0 %1911
    %1913 = vrot.lane.b32.xlu0 %v1711, 12
    %v1914 = vpop.permute.xlu0 %1913
    %1915 = vrot.lane.b32.xlu0 %v1712, 12
    %v1916 = vpop.permute.xlu0 %1915
    %1917 = vrot.lane.b32.xlu0 %v1713, 12
    %v1918 = vpop.permute.xlu0 %1917
    %1919 = vrot.lane.b32.xlu0 %v1714, 12
    %v1920 = vpop.permute.xlu0 %1919
    %1921 = vrot.lane.b32.xlu0 %v1715, 12
    %v1922 = vpop.permute.xlu0 %1921
    %1923 = vrot.lane.b32.xlu0 %v1716, 12
    %v1924 = vpop.permute.xlu0 %1923
    %1925 = vrot.lane.b32.xlu0 %v1717, 12
    %v1926 = vpop.permute.xlu0 %1925
    %1927 = vrot.lane.b32.xlu0 %v1718, 12
    %v1928 = vpop.permute.xlu0 %1927
    %1929 = vrot.lane.b32.xlu0 %v1719, 12
    %v1930 = vpop.permute.xlu0 %1929
    %1931 = vrot.lane.b32.xlu0 %v1720, 12
    %v1932 = vpop.permute.xlu0 %1931
    %1933 = vrot.lane.b32.xlu0 %v1721, 12
    %v1934 = vpop.permute.xlu0 %1933
    %1935 = vrot.lane.b32.xlu0 %v1722, 12
    %v1936 = vpop.permute.xlu0 %1935
    %1937 = vrot.lane.b32.xlu0 %v1723, 12
    %v1938 = vpop.permute.xlu0 %1937
    %1939 = vrot.lane.b32.xlu0 %v1724, 12
    %v1940 = vpop.permute.xlu0 %1939
    %1941 = vrot.lane.b32.xlu0 %v1725, 12
    %v1942 = vpop.permute.xlu0 %1941
    %1943 = vrot.lane.b32.xlu0 %v1726, 12
    %v1944 = vpop.permute.xlu0 %1943
    %1945 = vrot.lane.b32.xlu0 %v1727, 12
    %v1946 = vpop.permute.xlu0 %1945
    %1947 = vrot.lane.b32.xlu0 %v1728, 12
    %v1948 = vpop.permute.xlu0 %1947
    %1949 = vrot.lane.b32.xlu0 %v1729, 12
    %v1950 = vpop.permute.xlu0 %1949
    %1951 = vrot.lane.b32.xlu0 %v1730, 12
    %v1952 = vpop.permute.xlu0 %1951
    %1953 = vrot.lane.b32.xlu0 %v1731, 12
    %v1954 = vpop.permute.xlu0 %1953
    %1955 = vrot.lane.b32.xlu0 %v1732, 12
    %v1956 = vpop.permute.xlu0 %1955
    %1957 = vrot.lane.b32.xlu0 %v1733, 12
    %v1958 = vpop.permute.xlu0 %1957
    %1959 = vrot.lane.b32.xlu0 %v1734, 12
    %v1960 = vpop.permute.xlu0 %1959
    %1961 = vrot.lane.b32.xlu0 %v1735, 12
    %v1962 = vpop.permute.xlu0 %1961
    %1963 = vrot.lane.b32.xlu0 %v1736, 12
    %v1964 = vpop.permute.xlu0 %1963
    %1965 = vrot.lane.b32.xlu0 %v1737, 12
    %v1966 = vpop.permute.xlu0 %1965
    %1967 = vrot.lane.b32.xlu0 %v1738, 12
    %v1968 = vpop.permute.xlu0 %1967
    %1969 = vrot.lane.b32.xlu0 %v1739, 12
    %v1970 = vpop.permute.xlu0 %1969
    %1971 = vrot.lane.b32.xlu0 %v1740, 12
    %v1972 = vpop.permute.xlu0 %1971
    %1973 = vrot.lane.b32.xlu0 %v1741, 12
    %v1974 = vpop.permute.xlu0 %1973
    %1975 = vrot.lane.b32.xlu0 %v1742, 12
    %v1976 = vpop.permute.xlu0 %1975
    %1977 = vrot.lane.b32.xlu0 %v1743, 12
    %v1978 = vpop.permute.xlu0 %1977
    %1979 = vrot.lane.b32.xlu0 %v1744, 12
    %v1980 = vpop.permute.xlu0 %1979
    %1981 = vrot.lane.b32.xlu0 %v1745, 12
    %v1982 = vpop.permute.xlu0 %1981
    %1983 = vrot.lane.b32.xlu0 %v1746, 12
    %v1984 = vpop.permute.xlu0 %1983
    %1985 = vrot.lane.b32.xlu0 %v1747, 12
    %v1986 = vpop.permute.xlu0 %1985
    %1987 = vrot.lane.b32.xlu0 %v1748, 12
    %v1988 = vpop.permute.xlu0 %1987
    %1989 = vrot.lane.b32.xlu0 %v1749, 12
    %v1990 = vpop.permute.xlu0 %1989
    %1991 = vrot.lane.b32.xlu0 %v1750, 12
    %v1992 = vpop.permute.xlu0 %1991
    %1993 = vrot.lane.b32.xlu0 %v1751, 12
    %v1994 = vpop.permute.xlu0 %1993
    %vm2076 = vcmask 121952
    %2077 = vst.msk [vmem:[#allocation2] sm:$0xff] %vm2076, %v1834
    %2078 = vst.msk [vmem:[#allocation2 + $0x8] sm:$0xff] %vm2076, %v1836
    %2079 = vst.msk [vmem:[#allocation2 + $0x10] sm:$0xff] %vm2076, %v1838
    %2080 = vst.msk [vmem:[#allocation2 + $0x18] sm:$0xff] %vm2076, %v1840
    %2081 = vst.msk [vmem:[#allocation2 + $0x20] sm:$0xff] %vm2076, %v1842
    %2082 = vst.msk [vmem:[#allocation2 + $0x28] sm:$0xff] %vm2076, %v1844
    %2083 = vst.msk [vmem:[#allocation2 + $0x30] sm:$0xff] %vm2076, %v1846
    %2084 = vst.msk [vmem:[#allocation2 + $0x38] sm:$0xff] %vm2076, %v1848
    %2085 = vst.msk [vmem:[#allocation2 + $0x40] sm:$0xff] %vm2076, %v1850
    %2086 = vst.msk [vmem:[#allocation2 + $0x48] sm:$0xff] %vm2076, %v1852
    %2087 = vst.msk [vmem:[#allocation2 + $0x50] sm:$0xff] %vm2076, %v1854
    %2088 = vst.msk [vmem:[#allocation2 + $0x58] sm:$0xff] %vm2076, %v1856
    %2089 = vst.msk [vmem:[#allocation2 + $0x60] sm:$0xff] %vm2076, %v1858
    %2090 = vst.msk [vmem:[#allocation2 + $0x68] sm:$0xff] %vm2076, %v1860
    %2091 = vst.msk [vmem:[#allocation2 + $0x70] sm:$0xff] %vm2076, %v1862
    %2092 = vst.msk [vmem:[#allocation2 + $0x78] sm:$0xff] %vm2076, %v1864
    %2093 = vst.msk [vmem:[#allocation2 + $0x80] sm:$0xff] %vm2076, %v1866
    %2094 = vst.msk [vmem:[#allocation2 + $0x88] sm:$0xff] %vm2076, %v1868
    %2095 = vst.msk [vmem:[#allocation2 + $0x90] sm:$0xff] %vm2076, %v1870
    %2096 = vst.msk [vmem:[#allocation2 + $0x98] sm:$0xff] %vm2076, %v1872
    %2097 = vst.msk [vmem:[#allocation2 + $0xa0] sm:$0xff] %vm2076, %v1874
    %2098 = vst.msk [vmem:[#allocation2 + $0xa8] sm:$0xff] %vm2076, %v1876
    %2099 = vst.msk [vmem:[#allocation2 + $0xb0] sm:$0xff] %vm2076, %v1878
    %2100 = vst.msk [vmem:[#allocation2 + $0xb8] sm:$0xff] %vm2076, %v1880
    %2101 = vst.msk [vmem:[#allocation2 + $0xc0] sm:$0xff] %vm2076, %v1882
    %2102 = vst.msk [vmem:[#allocation2 + $0xc8] sm:$0xff] %vm2076, %v1884
    %2103 = vst.msk [vmem:[#allocation2 + $0xd0] sm:$0xff] %vm2076, %v1886
    %2104 = vst.msk [vmem:[#allocation2 + $0xd8] sm:$0xff] %vm2076, %v1888
    %2105 = vst.msk [vmem:[#allocation2 + $0xe0] sm:$0xff] %vm2076, %v1890
    %2106 = vst.msk [vmem:[#allocation2 + $0xe8] sm:$0xff] %vm2076, %v1892
    %2107 = vst.msk [vmem:[#allocation2 + $0xf0] sm:$0xff] %vm2076, %v1894
    %2108 = vst.msk [vmem:[#allocation2 + $0xf8] sm:$0xff] %vm2076, %v1896
    %2109 = vst.msk [vmem:[#allocation2 + $0x100] sm:$0xff] %vm2076, %v1898
    %2110 = vst.msk [vmem:[#allocation2 + $0x108] sm:$0xff] %vm2076, %v1900
    %2111 = vst.msk [vmem:[#allocation2 + $0x110] sm:$0xff] %vm2076, %v1902
    %2112 = vst.msk [vmem:[#allocation2 + $0x118] sm:$0xff] %vm2076, %v1904
    %2113 = vst.msk [vmem:[#allocation2 + $0x120] sm:$0xff] %vm2076, %v1906
    %2114 = vst.msk [vmem:[#allocation2 + $0x128] sm:$0xff] %vm2076, %v1908
    %2115 = vst.msk [vmem:[#allocation2 + $0x130] sm:$0xff] %vm2076, %v1910
    %2116 = vst.msk [vmem:[#allocation2 + $0x138] sm:$0xff] %vm2076, %v1912
    %2117 = vst.msk [vmem:[#allocation2 + $0x140] sm:$0xff] %vm2076, %v1914
    %2118 = vst.msk [vmem:[#allocation2 + $0x148] sm:$0xff] %vm2076, %v1916
    %2119 = vst.msk [vmem:[#allocation2 + $0x150] sm:$0xff] %vm2076, %v1918
    %2120 = vst.msk [vmem:[#allocation2 + $0x158] sm:$0xff] %vm2076, %v1920
    %2121 = vst.msk [vmem:[#allocation2 + $0x160] sm:$0xff] %vm2076, %v1922
    %2122 = vst.msk [vmem:[#allocation2 + $0x168] sm:$0xff] %vm2076, %v1924
    %2123 = vst.msk [vmem:[#allocation2 + $0x170] sm:$0xff] %vm2076, %v1926
    %2124 = vst.msk [vmem:[#allocation2 + $0x178] sm:$0xff] %vm2076, %v1928
    %2125 = vst.msk [vmem:[#allocation2 + $0x180] sm:$0xff] %vm2076, %v1930
    %2126 = vst.msk [vmem:[#allocation2 + $0x188] sm:$0xff] %vm2076, %v1932
    %2127 = vst.msk [vmem:[#allocation2 + $0x190] sm:$0xff] %vm2076, %v1934
    %2128 = vst.msk [vmem:[#allocation2 + $0x198] sm:$0xff] %vm2076, %v1936
    %2129 = vst.msk [vmem:[#allocation2 + $0x1a0] sm:$0xff] %vm2076, %v1938
    %2130 = vst.msk [vmem:[#allocation2 + $0x1a8] sm:$0xff] %vm2076, %v1940
    %2131 = vst.msk [vmem:[#allocation2 + $0x1b0] sm:$0xff] %vm2076, %v1942
    %2132 = vst.msk [vmem:[#allocation2 + $0x1b8] sm:$0xff] %vm2076, %v1944
    %2133 = vst.msk [vmem:[#allocation2 + $0x1c0] sm:$0xff] %vm2076, %v1946
    %2134 = vst.msk [vmem:[#allocation2 + $0x1c8] sm:$0xff] %vm2076, %v1948
    %2135 = vst.msk [vmem:[#allocation2 + $0x1d0] sm:$0xff] %vm2076, %v1950
    %2136 = vst.msk [vmem:[#allocation2 + $0x1d8] sm:$0xff] %vm2076, %v1952
    %2137 = vst.msk [vmem:[#allocation2 + $0x1e0] sm:$0xff] %vm2076, %v1954
    %2138 = vst.msk [vmem:[#allocation2 + $0x1e8] sm:$0xff] %vm2076, %v1956
    %2139 = vst.msk [vmem:[#allocation2 + $0x1f0] sm:$0xff] %vm2076, %v1958
    %2140 = vst.msk [vmem:[#allocation2 + $0x1f8] sm:$0xff] %vm2076, %v1960
    %2141 = vst.msk [vmem:[#allocation2 + $0x200] sm:$0xff] %vm2076, %v1962
    %2142 = vst.msk [vmem:[#allocation2 + $0x208] sm:$0xff] %vm2076, %v1964
    %2143 = vst.msk [vmem:[#allocation2 + $0x210] sm:$0xff] %vm2076, %v1966
    %2144 = vst.msk [vmem:[#allocation2 + $0x218] sm:$0xff] %vm2076, %v1968
    %2145 = vst.msk [vmem:[#allocation2 + $0x220] sm:$0xff] %vm2076, %v1970
    %2146 = vst.msk [vmem:[#allocation2 + $0x228] sm:$0xff] %vm2076, %v1972
    %2147 = vst.msk [vmem:[#allocation2 + $0x230] sm:$0xff] %vm2076, %v1974
    %2148 = vst.msk [vmem:[#allocation2 + $0x238] sm:$0xff] %vm2076, %v1976
    %2149 = vst.msk [vmem:[#allocation2 + $0x240] sm:$0xff] %vm2076, %v1978
    %2150 = vst.msk [vmem:[#allocation2 + $0x248] sm:$0xff] %vm2076, %v1980
    %2151 = vst.msk [vmem:[#allocation2 + $0x250] sm:$0xff] %vm2076, %v1982
    %2152 = vst.msk [vmem:[#allocation2 + $0x258] sm:$0xff] %vm2076, %v1984
    %2153 = vst.msk [vmem:[#allocation2 + $0x260] sm:$0xff] %vm2076, %v1986
    %2154 = vst.msk [vmem:[#allocation2 + $0x268] sm:$0xff] %vm2076, %v1988
    %2155 = vst.msk [vmem:[#allocation2 + $0x270] sm:$0xff] %vm2076, %v1990
    %2156 = vst.msk [vmem:[#allocation2 + $0x278] sm:$0xff] %vm2076, %v1992
    %2157 = vst.msk [vmem:[#allocation2 + $0x280] sm:$0xff] %vm2076, %v1994
    %v2158 = vld [vmem:[%s0 + $0x14] sm:$0xff]
    %v2159 = vld [vmem:[%s0 + $0x1c] sm:$0xff]
    %v2160 = vld [vmem:[%s0 + $0x24] sm:$0xff]
    %v2161 = vld [vmem:[%s0 + $0x2c] sm:$0xff]
    %v2162 = vld [vmem:[%s0 + $0x34] sm:$0xff]
    %v2163 = vld [vmem:[%s0 + $0x3c] sm:$0xff]
    %v2164 = vld [vmem:[%s0 + $0x44] sm:$0xff]
    %v2165 = vld [vmem:[%s0 + $0x4c] sm:$0xff]
    %v2166 = vld [vmem:[%s0 + $0x54] sm:$0xff]
    %v2167 = vld [vmem:[%s0 + $0x5c] sm:$0xff]
    %v2168 = vld [vmem:[%s0 + $0x64] sm:$0xff]
    %v2169 = vld [vmem:[%s0 + $0x6c] sm:$0xff]
    %v2170 = vld [vmem:[%s0 + $0x74] sm:$0xff]
    %v2171 = vld [vmem:[%s0 + $0x7c] sm:$0xff]
    %v2172 = vld [vmem:[%s0 + $0x84] sm:$0xff]
    %v2173 = vld [vmem:[%s0 + $0x8c] sm:$0xff]
    %v2174 = vld [vmem:[%s0 + $0x94] sm:$0xff]
    %v2175 = vld [vmem:[%s0 + $0x9c] sm:$0xff]
    %v2176 = vld [vmem:[%s0 + $0xa4] sm:$0xff]
    %v2177 = vld [vmem:[%s0 + $0xac] sm:$0xff]
    %v2178 = vld [vmem:[%s0 + $0xb4] sm:$0xff]
    %v2179 = vld [vmem:[%s0 + $0xbc] sm:$0xff]
    %v2180 = vld [vmem:[%s0 + $0xc4] sm:$0xff]
    %v2181 = vld [vmem:[%s0 + $0xcc] sm:$0xff]
    %v2182 = vld [vmem:[%s0 + $0xd4] sm:$0xff]
    %v2183 = vld [vmem:[%s0 + $0xdc] sm:$0xff]
    %v2184 = vld [vmem:[%s0 + $0xe4] sm:$0xff]
    %v2185 = vld [vmem:[%s0 + $0xec] sm:$0xff]
    %v2186 = vld [vmem:[%s0 + $0xf4] sm:$0xff]
    %v2187 = vld [vmem:[%s0 + $0xfc] sm:$0xff]
    %v2188 = vld [vmem:[%s0 + $0x104] sm:$0xff]
    %v2189 = vld [vmem:[%s0 + $0x10c] sm:$0xff]
    %v2190 = vld [vmem:[%s0 + $0x114] sm:$0xff]
    %v2191 = vld [vmem:[%s0 + $0x11c] sm:$0xff]
    %v2192 = vld [vmem:[%s0 + $0x124] sm:$0xff]
    %v2193 = vld [vmem:[%s0 + $0x12c] sm:$0xff]
    %v2194 = vld [vmem:[%s0 + $0x134] sm:$0xff]
    %v2195 = vld [vmem:[%s0 + $0x13c] sm:$0xff]
    %v2196 = vld [vmem:[%s0 + $0x144] sm:$0xff]
    %v2197 = vld [vmem:[%s0 + $0x14c] sm:$0xff]
    %v2198 = vld [vmem:[%s0 + $0x154] sm:$0xff]
    %v2199 = vld [vmem:[%s0 + $0x15c] sm:$0xff]
    %v2200 = vld [vmem:[%s0 + $0x164] sm:$0xff]
    %v2201 = vld [vmem:[%s0 + $0x16c] sm:$0xff]
    %v2202 = vld [vmem:[%s0 + $0x174] sm:$0xff]
    %v2203 = vld [vmem:[%s0 + $0x17c] sm:$0xff]
    %v2204 = vld [vmem:[%s0 + $0x184] sm:$0xff]
    %v2205 = vld [vmem:[%s0 + $0x18c] sm:$0xff]
    %v2206 = vld [vmem:[%s0 + $0x194] sm:$0xff]
    %v2207 = vld [vmem:[%s0 + $0x19c] sm:$0xff]
    %v2208 = vld [vmem:[%s0 + $0x1a4] sm:$0xff]
    %v2209 = vld [vmem:[%s0 + $0x1ac] sm:$0xff]
    %v2210 = vld [vmem:[%s0 + $0x1b4] sm:$0xff]
    %v2211 = vld [vmem:[%s0 + $0x1bc] sm:$0xff]
    %v2212 = vld [vmem:[%s0 + $0x1c4] sm:$0xff]
    %v2213 = vld [vmem:[%s0 + $0x1cc] sm:$0xff]
    %v2214 = vld [vmem:[%s0 + $0x1d4] sm:$0xff]
    %v2215 = vld [vmem:[%s0 + $0x1dc] sm:$0xff]
    %v2216 = vld [vmem:[%s0 + $0x1e4] sm:$0xff]
    %v2217 = vld [vmem:[%s0 + $0x1ec] sm:$0xff]
    %v2218 = vld [vmem:[%s0 + $0x1f4] sm:$0xff]
    %v2219 = vld [vmem:[%s0 + $0x1fc] sm:$0xff]
    %v2220 = vld [vmem:[%s0 + $0x204] sm:$0xff]
    %v2221 = vld [vmem:[%s0 + $0x20c] sm:$0xff]
    %v2222 = vld [vmem:[%s0 + $0x214] sm:$0xff]
    %v2223 = vld [vmem:[%s0 + $0x21c] sm:$0xff]
    %v2224 = vld [vmem:[%s0 + $0x224] sm:$0xff]
    %v2225 = vld [vmem:[%s0 + $0x22c] sm:$0xff]
    %v2226 = vld [vmem:[%s0 + $0x234] sm:$0xff]
    %v2227 = vld [vmem:[%s0 + $0x23c] sm:$0xff]
    %v2228 = vld [vmem:[%s0 + $0x244] sm:$0xff]
    %v2229 = vld [vmem:[%s0 + $0x24c] sm:$0xff]
    %v2230 = vld [vmem:[%s0 + $0x254] sm:$0xff]
    %v2231 = vld [vmem:[%s0 + $0x25c] sm:$0xff]
    %v2232 = vld [vmem:[%s0 + $0x264] sm:$0xff]
    %v2233 = vld [vmem:[%s0 + $0x26c] sm:$0xff]
    %v2234 = vld [vmem:[%s0 + $0x274] sm:$0xff]
    %v2235 = vld [vmem:[%s0 + $0x27c] sm:$0xff]
    %v2236 = vld [vmem:[%s0 + $0x284] sm:$0xff]
    %v2237 = vld [vmem:[%s0 + $0x28c] sm:$0xff]
    %v2238 = vld [vmem:[%s0 + $0x294] sm:$0xff]
    %2320 = vrot.lane.b32.xlu0 %v2158, 15
    %v2321 = vpop.permute.xlu0 %2320
    %2322 = vrot.lane.b32.xlu0 %v2159, 15
    %v2323 = vpop.permute.xlu0 %2322
    %2324 = vrot.lane.b32.xlu0 %v2160, 15
    %v2325 = vpop.permute.xlu0 %2324
    %2326 = vrot.lane.b32.xlu0 %v2161, 15
    %v2327 = vpop.permute.xlu0 %2326
    %2328 = vrot.lane.b32.xlu0 %v2162, 15
    %v2329 = vpop.permute.xlu0 %2328
    %2330 = vrot.lane.b32.xlu0 %v2163, 15
    %v2331 = vpop.permute.xlu0 %2330
    %2332 = vrot.lane.b32.xlu0 %v2164, 15
    %v2333 = vpop.permute.xlu0 %2332
    %2334 = vrot.lane.b32.xlu0 %v2165, 15
    %v2335 = vpop.permute.xlu0 %2334
    %2336 = vrot.lane.b32.xlu0 %v2166, 15
    %v2337 = vpop.permute.xlu0 %2336
    %2338 = vrot.lane.b32.xlu0 %v2167, 15
    %v2339 = vpop.permute.xlu0 %2338
    %2340 = vrot.lane.b32.xlu0 %v2168, 15
    %v2341 = vpop.permute.xlu0 %2340
    %2342 = vrot.lane.b32.xlu0 %v2169, 15
    %v2343 = vpop.permute.xlu0 %2342
    %2344 = vrot.lane.b32.xlu0 %v2170, 15
    %v2345 = vpop.permute.xlu0 %2344
    %2346 = vrot.lane.b32.xlu0 %v2171, 15
    %v2347 = vpop.permute.xlu0 %2346
    %2348 = vrot.lane.b32.xlu0 %v2172, 15
    %v2349 = vpop.permute.xlu0 %2348
    %2350 = vrot.lane.b32.xlu0 %v2173, 15
    %v2351 = vpop.permute.xlu0 %2350
    %2352 = vrot.lane.b32.xlu0 %v2174, 15
    %v2353 = vpop.permute.xlu0 %2352
    %2354 = vrot.lane.b32.xlu0 %v2175, 15
    %v2355 = vpop.permute.xlu0 %2354
    %2356 = vrot.lane.b32.xlu0 %v2176, 15
    %v2357 = vpop.permute.xlu0 %2356
    %2358 = vrot.lane.b32.xlu0 %v2177, 15
    %v2359 = vpop.permute.xlu0 %2358
    %2360 = vrot.lane.b32.xlu0 %v2178, 15
    %v2361 = vpop.permute.xlu0 %2360
    %2362 = vrot.lane.b32.xlu0 %v2179, 15
    %v2363 = vpop.permute.xlu0 %2362
    %2364 = vrot.lane.b32.xlu0 %v2180, 15
    %v2365 = vpop.permute.xlu0 %2364
    %2366 = vrot.lane.b32.xlu0 %v2181, 15
    %v2367 = vpop.permute.xlu0 %2366
    %2368 = vrot.lane.b32.xlu0 %v2182, 15
    %v2369 = vpop.permute.xlu0 %2368
    %2370 = vrot.lane.b32.xlu0 %v2183, 15
    %v2371 = vpop.permute.xlu0 %2370
    %2372 = vrot.lane.b32.xlu0 %v2184, 15
    %v2373 = vpop.permute.xlu0 %2372
    %2374 = vrot.lane.b32.xlu0 %v2185, 15
    %v2375 = vpop.permute.xlu0 %2374
    %2376 = vrot.lane.b32.xlu0 %v2186, 15
    %v2377 = vpop.permute.xlu0 %2376
    %2378 = vrot.lane.b32.xlu0 %v2187, 15
    %v2379 = vpop.permute.xlu0 %2378
    %2380 = vrot.lane.b32.xlu0 %v2188, 15
    %v2381 = vpop.permute.xlu0 %2380
    %2382 = vrot.lane.b32.xlu0 %v2189, 15
    %v2383 = vpop.permute.xlu0 %2382
    %2384 = vrot.lane.b32.xlu0 %v2190, 15
    %v2385 = vpop.permute.xlu0 %2384
    %2386 = vrot.lane.b32.xlu0 %v2191, 15
    %v2387 = vpop.permute.xlu0 %2386
    %2388 = vrot.lane.b32.xlu0 %v2192, 15
    %v2389 = vpop.permute.xlu0 %2388
    %2390 = vrot.lane.b32.xlu0 %v2193, 15
    %v2391 = vpop.permute.xlu0 %2390
    %2392 = vrot.lane.b32.xlu0 %v2194, 15
    %v2393 = vpop.permute.xlu0 %2392
    %2394 = vrot.lane.b32.xlu0 %v2195, 15
    %v2395 = vpop.permute.xlu0 %2394
    %2396 = vrot.lane.b32.xlu0 %v2196, 15
    %v2397 = vpop.permute.xlu0 %2396
    %2398 = vrot.lane.b32.xlu0 %v2197, 15
    %v2399 = vpop.permute.xlu0 %2398
    %2400 = vrot.lane.b32.xlu0 %v2198, 15
    %v2401 = vpop.permute.xlu0 %2400
    %2402 = vrot.lane.b32.xlu0 %v2199, 15
    %v2403 = vpop.permute.xlu0 %2402
    %2404 = vrot.lane.b32.xlu0 %v2200, 15
    %v2405 = vpop.permute.xlu0 %2404
    %2406 = vrot.lane.b32.xlu0 %v2201, 15
    %v2407 = vpop.permute.xlu0 %2406
    %2408 = vrot.lane.b32.xlu0 %v2202, 15
    %v2409 = vpop.permute.xlu0 %2408
    %2410 = vrot.lane.b32.xlu0 %v2203, 15
    %v2411 = vpop.permute.xlu0 %2410
    %2412 = vrot.lane.b32.xlu0 %v2204, 15
    %v2413 = vpop.permute.xlu0 %2412
    %2414 = vrot.lane.b32.xlu0 %v2205, 15
    %v2415 = vpop.permute.xlu0 %2414
    %2416 = vrot.lane.b32.xlu0 %v2206, 15
    %v2417 = vpop.permute.xlu0 %2416
    %2418 = vrot.lane.b32.xlu0 %v2207, 15
    %v2419 = vpop.permute.xlu0 %2418
    %2420 = vrot.lane.b32.xlu0 %v2208, 15
    %v2421 = vpop.permute.xlu0 %2420
    %2422 = vrot.lane.b32.xlu0 %v2209, 15
    %v2423 = vpop.permute.xlu0 %2422
    %2424 = vrot.lane.b32.xlu0 %v2210, 15
    %v2425 = vpop.permute.xlu0 %2424
    %2426 = vrot.lane.b32.xlu0 %v2211, 15
    %v2427 = vpop.permute.xlu0 %2426
    %2428 = vrot.lane.b32.xlu0 %v2212, 15
    %v2429 = vpop.permute.xlu0 %2428
    %2430 = vrot.lane.b32.xlu0 %v2213, 15
    %v2431 = vpop.permute.xlu0 %2430
    %2432 = vrot.lane.b32.xlu0 %v2214, 15
    %v2433 = vpop.permute.xlu0 %2432
    %2434 = vrot.lane.b32.xlu0 %v2215, 15
    %v2435 = vpop.permute.xlu0 %2434
    %2436 = vrot.lane.b32.xlu0 %v2216, 15
    %v2437 = vpop.permute.xlu0 %2436
    %2438 = vrot.lane.b32.xlu0 %v2217, 15
    %v2439 = vpop.permute.xlu0 %2438
    %2440 = vrot.lane.b32.xlu0 %v2218, 15
    %v2441 = vpop.permute.xlu0 %2440
    %2442 = vrot.lane.b32.xlu0 %v2219, 15
    %v2443 = vpop.permute.xlu0 %2442
    %2444 = vrot.lane.b32.xlu0 %v2220, 15
    %v2445 = vpop.permute.xlu0 %2444
    %2446 = vrot.lane.b32.xlu0 %v2221, 15
    %v2447 = vpop.permute.xlu0 %2446
    %2448 = vrot.lane.b32.xlu0 %v2222, 15
    %v2449 = vpop.permute.xlu0 %2448
    %2450 = vrot.lane.b32.xlu0 %v2223, 15
    %v2451 = vpop.permute.xlu0 %2450
    %2452 = vrot.lane.b32.xlu0 %v2224, 15
    %v2453 = vpop.permute.xlu0 %2452
    %2454 = vrot.lane.b32.xlu0 %v2225, 15
    %v2455 = vpop.permute.xlu0 %2454
    %2456 = vrot.lane.b32.xlu0 %v2226, 15
    %v2457 = vpop.permute.xlu0 %2456
    %2458 = vrot.lane.b32.xlu0 %v2227, 15
    %v2459 = vpop.permute.xlu0 %2458
    %2460 = vrot.lane.b32.xlu0 %v2228, 15
    %v2461 = vpop.permute.xlu0 %2460
    %2462 = vrot.lane.b32.xlu0 %v2229, 15
    %v2463 = vpop.permute.xlu0 %2462
    %2464 = vrot.lane.b32.xlu0 %v2230, 15
    %v2465 = vpop.permute.xlu0 %2464
    %2466 = vrot.lane.b32.xlu0 %v2231, 15
    %v2467 = vpop.permute.xlu0 %2466
    %2468 = vrot.lane.b32.xlu0 %v2232, 15
    %v2469 = vpop.permute.xlu0 %2468
    %2470 = vrot.lane.b32.xlu0 %v2233, 15
    %v2471 = vpop.permute.xlu0 %2470
    %2472 = vrot.lane.b32.xlu0 %v2234, 15
    %v2473 = vpop.permute.xlu0 %2472
    %2474 = vrot.lane.b32.xlu0 %v2235, 15
    %v2475 = vpop.permute.xlu0 %2474
    %2476 = vrot.lane.b32.xlu0 %v2236, 15
    %v2477 = vpop.permute.xlu0 %2476
    %2478 = vrot.lane.b32.xlu0 %v2237, 15
    %v2479 = vpop.permute.xlu0 %2478
    %2480 = vrot.lane.b32.xlu0 %v2238, 15
    %v2481 = vpop.permute.xlu0 %2480
    %vm2563 = vcmask 146552
    %2564 = vst.msk [vmem:[#allocation2] sm:$0xff] %vm2563, %v2321
    %2565 = vst.msk [vmem:[#allocation2 + $0x8] sm:$0xff] %vm2563, %v2323
    %2566 = vst.msk [vmem:[#allocation2 + $0x10] sm:$0xff] %vm2563, %v2325
    %2567 = vst.msk [vmem:[#allocation2 + $0x18] sm:$0xff] %vm2563, %v2327
    %2568 = vst.msk [vmem:[#allocation2 + $0x20] sm:$0xff] %vm2563, %v2329
    %2569 = vst.msk [vmem:[#allocation2 + $0x28] sm:$0xff] %vm2563, %v2331
    %2570 = vst.msk [vmem:[#allocation2 + $0x30] sm:$0xff] %vm2563, %v2333
    %2571 = vst.msk [vmem:[#allocation2 + $0x38] sm:$0xff] %vm2563, %v2335
    %2572 = vst.msk [vmem:[#allocation2 + $0x40] sm:$0xff] %vm2563, %v2337
    %2573 = vst.msk [vmem:[#allocation2 + $0x48] sm:$0xff] %vm2563, %v2339
    %2574 = vst.msk [vmem:[#allocation2 + $0x50] sm:$0xff] %vm2563, %v2341
    %2575 = vst.msk [vmem:[#allocation2 + $0x58] sm:$0xff] %vm2563, %v2343
    %2576 = vst.msk [vmem:[#allocation2 + $0x60] sm:$0xff] %vm2563, %v2345
    %2577 = vst.msk [vmem:[#allocation2 + $0x68] sm:$0xff] %vm2563, %v2347
    %2578 = vst.msk [vmem:[#allocation2 + $0x70] sm:$0xff] %vm2563, %v2349
    %2579 = vst.msk [vmem:[#allocation2 + $0x78] sm:$0xff] %vm2563, %v2351
    %2580 = vst.msk [vmem:[#allocation2 + $0x80] sm:$0xff] %vm2563, %v2353
    %2581 = vst.msk [vmem:[#allocation2 + $0x88] sm:$0xff] %vm2563, %v2355
    %2582 = vst.msk [vmem:[#allocation2 + $0x90] sm:$0xff] %vm2563, %v2357
    %2583 = vst.msk [vmem:[#allocation2 + $0x98] sm:$0xff] %vm2563, %v2359
    %2584 = vst.msk [vmem:[#allocation2 + $0xa0] sm:$0xff] %vm2563, %v2361
    %2585 = vst.msk [vmem:[#allocation2 + $0xa8] sm:$0xff] %vm2563, %v2363
    %2586 = vst.msk [vmem:[#allocation2 + $0xb0] sm:$0xff] %vm2563, %v2365
    %2587 = vst.msk [vmem:[#allocation2 + $0xb8] sm:$0xff] %vm2563, %v2367
    %2588 = vst.msk [vmem:[#allocation2 + $0xc0] sm:$0xff] %vm2563, %v2369
    %2589 = vst.msk [vmem:[#allocation2 + $0xc8] sm:$0xff] %vm2563, %v2371
    %2590 = vst.msk [vmem:[#allocation2 + $0xd0] sm:$0xff] %vm2563, %v2373
    %2591 = vst.msk [vmem:[#allocation2 + $0xd8] sm:$0xff] %vm2563, %v2375
    %2592 = vst.msk [vmem:[#allocation2 + $0xe0] sm:$0xff] %vm2563, %v2377
    %2593 = vst.msk [vmem:[#allocation2 + $0xe8] sm:$0xff] %vm2563, %v2379
    %2594 = vst.msk [vmem:[#allocation2 + $0xf0] sm:$0xff] %vm2563, %v2381
    %2595 = vst.msk [vmem:[#allocation2 + $0xf8] sm:$0xff] %vm2563, %v2383
    %2596 = vst.msk [vmem:[#allocation2 + $0x100] sm:$0xff] %vm2563, %v2385
    %2597 = vst.msk [vmem:[#allocation2 + $0x108] sm:$0xff] %vm2563, %v2387
    %2598 = vst.msk [vmem:[#allocation2 + $0x110] sm:$0xff] %vm2563, %v2389
    %2599 = vst.msk [vmem:[#allocation2 + $0x118] sm:$0xff] %vm2563, %v2391
    %2600 = vst.msk [vmem:[#allocation2 + $0x120] sm:$0xff] %vm2563, %v2393
    %2601 = vst.msk [vmem:[#allocation2 + $0x128] sm:$0xff] %vm2563, %v2395
    %2602 = vst.msk [vmem:[#allocation2 + $0x130] sm:$0xff] %vm2563, %v2397
    %2603 = vst.msk [vmem:[#allocation2 + $0x138] sm:$0xff] %vm2563, %v2399
    %2604 = vst.msk [vmem:[#allocation2 + $0x140] sm:$0xff] %vm2563, %v2401
    %2605 = vst.msk [vmem:[#allocation2 + $0x148] sm:$0xff] %vm2563, %v2403
    %2606 = vst.msk [vmem:[#allocation2 + $0x150] sm:$0xff] %vm2563, %v2405
    %2607 = vst.msk [vmem:[#allocation2 + $0x158] sm:$0xff] %vm2563, %v2407
    %2608 = vst.msk [vmem:[#allocation2 + $0x160] sm:$0xff] %vm2563, %v2409
    %2609 = vst.msk [vmem:[#allocation2 + $0x168] sm:$0xff] %vm2563, %v2411
    %2610 = vst.msk [vmem:[#allocation2 + $0x170] sm:$0xff] %vm2563, %v2413
    %2611 = vst.msk [vmem:[#allocation2 + $0x178] sm:$0xff] %vm2563, %v2415
    %2612 = vst.msk [vmem:[#allocation2 + $0x180] sm:$0xff] %vm2563, %v2417
    %2613 = vst.msk [vmem:[#allocation2 + $0x188] sm:$0xff] %vm2563, %v2419
    %2614 = vst.msk [vmem:[#allocation2 + $0x190] sm:$0xff] %vm2563, %v2421
    %2615 = vst.msk [vmem:[#allocation2 + $0x198] sm:$0xff] %vm2563, %v2423
    %2616 = vst.msk [vmem:[#allocation2 + $0x1a0] sm:$0xff] %vm2563, %v2425
    %2617 = vst.msk [vmem:[#allocation2 + $0x1a8] sm:$0xff] %vm2563, %v2427
    %2618 = vst.msk [vmem:[#allocation2 + $0x1b0] sm:$0xff] %vm2563, %v2429
    %2619 = vst.msk [vmem:[#allocation2 + $0x1b8] sm:$0xff] %vm2563, %v2431
    %2620 = vst.msk [vmem:[#allocation2 + $0x1c0] sm:$0xff] %vm2563, %v2433
    %2621 = vst.msk [vmem:[#allocation2 + $0x1c8] sm:$0xff] %vm2563, %v2435
    %2622 = vst.msk [vmem:[#allocation2 + $0x1d0] sm:$0xff] %vm2563, %v2437
    %2623 = vst.msk [vmem:[#allocation2 + $0x1d8] sm:$0xff] %vm2563, %v2439
    %2624 = vst.msk [vmem:[#allocation2 + $0x1e0] sm:$0xff] %vm2563, %v2441
    %2625 = vst.msk [vmem:[#allocation2 + $0x1e8] sm:$0xff] %vm2563, %v2443
    %2626 = vst.msk [vmem:[#allocation2 + $0x1f0] sm:$0xff] %vm2563, %v2445
    %2627 = vst.msk [vmem:[#allocation2 + $0x1f8] sm:$0xff] %vm2563, %v2447
    %2628 = vst.msk [vmem:[#allocation2 + $0x200] sm:$0xff] %vm2563, %v2449
    %2629 = vst.msk [vmem:[#allocation2 + $0x208] sm:$0xff] %vm2563, %v2451
    %2630 = vst.msk [vmem:[#allocation2 + $0x210] sm:$0xff] %vm2563, %v2453
    %2631 = vst.msk [vmem:[#allocation2 + $0x218] sm:$0xff] %vm2563, %v2455
    %2632 = vst.msk [vmem:[#allocation2 + $0x220] sm:$0xff] %vm2563, %v2457
    %2633 = vst.msk [vmem:[#allocation2 + $0x228] sm:$0xff] %vm2563, %v2459
    %2634 = vst.msk [vmem:[#allocation2 + $0x230] sm:$0xff] %vm2563, %v2461
    %2635 = vst.msk [vmem:[#allocation2 + $0x238] sm:$0xff] %vm2563, %v2463
    %2636 = vst.msk [vmem:[#allocation2 + $0x240] sm:$0xff] %vm2563, %v2465
    %2637 = vst.msk [vmem:[#allocation2 + $0x248] sm:$0xff] %vm2563, %v2467
    %2638 = vst.msk [vmem:[#allocation2 + $0x250] sm:$0xff] %vm2563, %v2469
    %2639 = vst.msk [vmem:[#allocation2 + $0x258] sm:$0xff] %vm2563, %v2471
    %2640 = vst.msk [vmem:[#allocation2 + $0x260] sm:$0xff] %vm2563, %v2473
    %2641 = vst.msk [vmem:[#allocation2 + $0x268] sm:$0xff] %vm2563, %v2475
    %2642 = vst.msk [vmem:[#allocation2 + $0x270] sm:$0xff] %vm2563, %v2477
    %2643 = vst.msk [vmem:[#allocation2 + $0x278] sm:$0xff] %vm2563, %v2479
    %2644 = vst.msk [vmem:[#allocation2 + $0x280] sm:$0xff] %vm2563, %v2481
    %v2645 = vld [vmem:[%s0 + $0x24] sm:$0xff]
    %v2646 = vld [vmem:[%s0 + $0x2c] sm:$0xff]
    %v2647 = vld [vmem:[%s0 + $0x34] sm:$0xff]
    %v2648 = vld [vmem:[%s0 + $0x3c] sm:$0xff]
    %v2649 = vld [vmem:[%s0 + $0x44] sm:$0xff]
    %v2650 = vld [vmem:[%s0 + $0x4c] sm:$0xff]
    %v2651 = vld [vmem:[%s0 + $0x54] sm:$0xff]
    %v2652 = vld [vmem:[%s0 + $0x5c] sm:$0xff]
    %v2653 = vld [vmem:[%s0 + $0x64] sm:$0xff]
    %v2654 = vld [vmem:[%s0 + $0x6c] sm:$0xff]
    %v2655 = vld [vmem:[%s0 + $0x74] sm:$0xff]
    %v2656 = vld [vmem:[%s0 + $0x7c] sm:$0xff]
    %v2657 = vld [vmem:[%s0 + $0x84] sm:$0xff]
    %v2658 = vld [vmem:[%s0 + $0x8c] sm:$0xff]
    %v2659 = vld [vmem:[%s0 + $0x94] sm:$0xff]
    %v2660 = vld [vmem:[%s0 + $0x9c] sm:$0xff]
    %v2661 = vld [vmem:[%s0 + $0xa4] sm:$0xff]
    %v2662 = vld [vmem:[%s0 + $0xac] sm:$0xff]
    %v2663 = vld [vmem:[%s0 + $0xb4] sm:$0xff]
    %v2664 = vld [vmem:[%s0 + $0xbc] sm:$0xff]
    %v2665 = vld [vmem:[%s0 + $0xc4] sm:$0xff]
    %v2666 = vld [vmem:[%s0 + $0xcc] sm:$0xff]
    %v2667 = vld [vmem:[%s0 + $0xd4] sm:$0xff]
    %v2668 = vld [vmem:[%s0 + $0xdc] sm:$0xff]
    %v2669 = vld [vmem:[%s0 + $0xe4] sm:$0xff]
    %v2670 = vld [vmem:[%s0 + $0xec] sm:$0xff]
    %v2671 = vld [vmem:[%s0 + $0xf4] sm:$0xff]
    %v2672 = vld [vmem:[%s0 + $0xfc] sm:$0xff]
    %v2673 = vld [vmem:[%s0 + $0x104] sm:$0xff]
    %v2674 = vld [vmem:[%s0 + $0x10c] sm:$0xff]
    %v2675 = vld [vmem:[%s0 + $0x114] sm:$0xff]
    %v2676 = vld [vmem:[%s0 + $0x11c] sm:$0xff]
    %v2677 = vld [vmem:[%s0 + $0x124] sm:$0xff]
    %v2678 = vld [vmem:[%s0 + $0x12c] sm:$0xff]
    %v2679 = vld [vmem:[%s0 + $0x134] sm:$0xff]
    %v2680 = vld [vmem:[%s0 + $0x13c] sm:$0xff]
    %v2681 = vld [vmem:[%s0 + $0x144] sm:$0xff]
    %v2682 = vld [vmem:[%s0 + $0x14c] sm:$0xff]
    %v2683 = vld [vmem:[%s0 + $0x154] sm:$0xff]
    %v2684 = vld [vmem:[%s0 + $0x15c] sm:$0xff]
    %v2685 = vld [vmem:[%s0 + $0x164] sm:$0xff]
    %v2686 = vld [vmem:[%s0 + $0x16c] sm:$0xff]
    %v2687 = vld [vmem:[%s0 + $0x174] sm:$0xff]
    %v2688 = vld [vmem:[%s0 + $0x17c] sm:$0xff]
    %v2689 = vld [vmem:[%s0 + $0x184] sm:$0xff]
    %v2690 = vld [vmem:[%s0 + $0x18c] sm:$0xff]
    %v2691 = vld [vmem:[%s0 + $0x194] sm:$0xff]
    %v2692 = vld [vmem:[%s0 + $0x19c] sm:$0xff]
    %v2693 = vld [vmem:[%s0 + $0x1a4] sm:$0xff]
    %v2694 = vld [vmem:[%s0 + $0x1ac] sm:$0xff]
    %v2695 = vld [vmem:[%s0 + $0x1b4] sm:$0xff]
    %v2696 = vld [vmem:[%s0 + $0x1bc] sm:$0xff]
    %v2697 = vld [vmem:[%s0 + $0x1c4] sm:$0xff]
    %v2698 = vld [vmem:[%s0 + $0x1cc] sm:$0xff]
    %v2699 = vld [vmem:[%s0 + $0x1d4] sm:$0xff]
    %v2700 = vld [vmem:[%s0 + $0x1dc] sm:$0xff]
    %v2701 = vld [vmem:[%s0 + $0x1e4] sm:$0xff]
    %v2702 = vld [vmem:[%s0 + $0x1ec] sm:$0xff]
    %v2703 = vld [vmem:[%s0 + $0x1f4] sm:$0xff]
    %v2704 = vld [vmem:[%s0 + $0x1fc] sm:$0xff]
    %v2705 = vld [vmem:[%s0 + $0x204] sm:$0xff]
    %v2706 = vld [vmem:[%s0 + $0x20c] sm:$0xff]
    %v2707 = vld [vmem:[%s0 + $0x214] sm:$0xff]
    %v2708 = vld [vmem:[%s0 + $0x21c] sm:$0xff]
    %v2709 = vld [vmem:[%s0 + $0x224] sm:$0xff]
    %v2710 = vld [vmem:[%s0 + $0x22c] sm:$0xff]
    %v2711 = vld [vmem:[%s0 + $0x234] sm:$0xff]
    %v2712 = vld [vmem:[%s0 + $0x23c] sm:$0xff]
    %v2713 = vld [vmem:[%s0 + $0x244] sm:$0xff]
    %v2714 = vld [vmem:[%s0 + $0x24c] sm:$0xff]
    %v2715 = vld [vmem:[%s0 + $0x254] sm:$0xff]
    %v2716 = vld [vmem:[%s0 + $0x25c] sm:$0xff]
    %v2717 = vld [vmem:[%s0 + $0x264] sm:$0xff]
    %v2718 = vld [vmem:[%s0 + $0x26c] sm:$0xff]
    %v2719 = vld [vmem:[%s0 + $0x274] sm:$0xff]
    %v2720 = vld [vmem:[%s0 + $0x27c] sm:$0xff]
    %v2721 = vld [vmem:[%s0 + $0x284] sm:$0xff]
    %v2722 = vld [vmem:[%s0 + $0x28c] sm:$0xff]
    %v2723 = vld [vmem:[%s0 + $0x294] sm:$0xff]
    %v2724 = vld [vmem:[%s0 + $0x29c] sm:$0xff]
    %v2725 = vld [vmem:[%s0 + $0x2a4] sm:$0xff]
    %2807 = vrot.lane.b32.xlu0 %v2645, 18
    %v2808 = vpop.permute.xlu0 %2807
    %2809 = vrot.lane.b32.xlu0 %v2646, 18
    %v2810 = vpop.permute.xlu0 %2809
    %2811 = vrot.lane.b32.xlu0 %v2647, 18
    %v2812 = vpop.permute.xlu0 %2811
    %2813 = vrot.lane.b32.xlu0 %v2648, 18
    %v2814 = vpop.permute.xlu0 %2813
    %2815 = vrot.lane.b32.xlu0 %v2649, 18
    %v2816 = vpop.permute.xlu0 %2815
    %2817 = vrot.lane.b32.xlu0 %v2650, 18
    %v2818 = vpop.permute.xlu0 %2817
    %2819 = vrot.lane.b32.xlu0 %v2651, 18
    %v2820 = vpop.permute.xlu0 %2819
    %2821 = vrot.lane.b32.xlu0 %v2652, 18
    %v2822 = vpop.permute.xlu0 %2821
    %2823 = vrot.lane.b32.xlu0 %v2653, 18
    %v2824 = vpop.permute.xlu0 %2823
    %2825 = vrot.lane.b32.xlu0 %v2654, 18
    %v2826 = vpop.permute.xlu0 %2825
    %2827 = vrot.lane.b32.xlu0 %v2655, 18
    %v2828 = vpop.permute.xlu0 %2827
    %2829 = vrot.lane.b32.xlu0 %v2656, 18
    %v2830 = vpop.permute.xlu0 %2829
    %2831 = vrot.lane.b32.xlu0 %v2657, 18
    %v2832 = vpop.permute.xlu0 %2831
    %2833 = vrot.lane.b32.xlu0 %v2658, 18
    %v2834 = vpop.permute.xlu0 %2833
    %2835 = vrot.lane.b32.xlu0 %v2659, 18
    %v2836 = vpop.permute.xlu0 %2835
    %2837 = vrot.lane.b32.xlu0 %v2660, 18
    %v2838 = vpop.permute.xlu0 %2837
    %2839 = vrot.lane.b32.xlu0 %v2661, 18
    %v2840 = vpop.permute.xlu0 %2839
    %2841 = vrot.lane.b32.xlu0 %v2662, 18
    %v2842 = vpop.permute.xlu0 %2841
    %2843 = vrot.lane.b32.xlu0 %v2663, 18
    %v2844 = vpop.permute.xlu0 %2843
    %2845 = vrot.lane.b32.xlu0 %v2664, 18
    %v2846 = vpop.permute.xlu0 %2845
    %2847 = vrot.lane.b32.xlu0 %v2665, 18
    %v2848 = vpop.permute.xlu0 %2847
    %2849 = vrot.lane.b32.xlu0 %v2666, 18
    %v2850 = vpop.permute.xlu0 %2849
    %2851 = vrot.lane.b32.xlu0 %v2667, 18
    %v2852 = vpop.permute.xlu0 %2851
    %2853 = vrot.lane.b32.xlu0 %v2668, 18
    %v2854 = vpop.permute.xlu0 %2853
    %2855 = vrot.lane.b32.xlu0 %v2669, 18
    %v2856 = vpop.permute.xlu0 %2855
    %2857 = vrot.lane.b32.xlu0 %v2670, 18
    %v2858 = vpop.permute.xlu0 %2857
    %2859 = vrot.lane.b32.xlu0 %v2671, 18
    %v2860 = vpop.permute.xlu0 %2859
    %2861 = vrot.lane.b32.xlu0 %v2672, 18
    %v2862 = vpop.permute.xlu0 %2861
    %2863 = vrot.lane.b32.xlu0 %v2673, 18
    %v2864 = vpop.permute.xlu0 %2863
    %2865 = vrot.lane.b32.xlu0 %v2674, 18
    %v2866 = vpop.permute.xlu0 %2865
    %2867 = vrot.lane.b32.xlu0 %v2675, 18
    %v2868 = vpop.permute.xlu0 %2867
    %2869 = vrot.lane.b32.xlu0 %v2676, 18
    %v2870 = vpop.permute.xlu0 %2869
    %2871 = vrot.lane.b32.xlu0 %v2677, 18
    %v2872 = vpop.permute.xlu0 %2871
    %2873 = vrot.lane.b32.xlu0 %v2678, 18
    %v2874 = vpop.permute.xlu0 %2873
    %2875 = vrot.lane.b32.xlu0 %v2679, 18
    %v2876 = vpop.permute.xlu0 %2875
    %2877 = vrot.lane.b32.xlu0 %v2680, 18
    %v2878 = vpop.permute.xlu0 %2877
    %2879 = vrot.lane.b32.xlu0 %v2681, 18
    %v2880 = vpop.permute.xlu0 %2879
    %2881 = vrot.lane.b32.xlu0 %v2682, 18
    %v2882 = vpop.permute.xlu0 %2881
    %2883 = vrot.lane.b32.xlu0 %v2683, 18
    %v2884 = vpop.permute.xlu0 %2883
    %2885 = vrot.lane.b32.xlu0 %v2684, 18
    %v2886 = vpop.permute.xlu0 %2885
    %2887 = vrot.lane.b32.xlu0 %v2685, 18
    %v2888 = vpop.permute.xlu0 %2887
    %2889 = vrot.lane.b32.xlu0 %v2686, 18
    %v2890 = vpop.permute.xlu0 %2889
    %2891 = vrot.lane.b32.xlu0 %v2687, 18
    %v2892 = vpop.permute.xlu0 %2891
    %2893 = vrot.lane.b32.xlu0 %v2688, 18
    %v2894 = vpop.permute.xlu0 %2893
    %2895 = vrot.lane.b32.xlu0 %v2689, 18
    %v2896 = vpop.permute.xlu0 %2895
    %2897 = vrot.lane.b32.xlu0 %v2690, 18
    %v2898 = vpop.permute.xlu0 %2897
    %2899 = vrot.lane.b32.xlu0 %v2691, 18
    %v2900 = vpop.permute.xlu0 %2899
    %2901 = vrot.lane.b32.xlu0 %v2692, 18
    %v2902 = vpop.permute.xlu0 %2901
    %2903 = vrot.lane.b32.xlu0 %v2693, 18
    %v2904 = vpop.permute.xlu0 %2903
    %2905 = vrot.lane.b32.xlu0 %v2694, 18
    %v2906 = vpop.permute.xlu0 %2905
    %2907 = vrot.lane.b32.xlu0 %v2695, 18
    %v2908 = vpop.permute.xlu0 %2907
    %2909 = vrot.lane.b32.xlu0 %v2696, 18
    %v2910 = vpop.permute.xlu0 %2909
    %2911 = vrot.lane.b32.xlu0 %v2697, 18
    %v2912 = vpop.permute.xlu0 %2911
    %2913 = vrot.lane.b32.xlu0 %v2698, 18
    %v2914 = vpop.permute.xlu0 %2913
    %2915 = vrot.lane.b32.xlu0 %v2699, 18
    %v2916 = vpop.permute.xlu0 %2915
    %2917 = vrot.lane.b32.xlu0 %v2700, 18
    %v2918 = vpop.permute.xlu0 %2917
    %2919 = vrot.lane.b32.xlu0 %v2701, 18
    %v2920 = vpop.permute.xlu0 %2919
    %2921 = vrot.lane.b32.xlu0 %v2702, 18
    %v2922 = vpop.permute.xlu0 %2921
    %2923 = vrot.lane.b32.xlu0 %v2703, 18
    %v2924 = vpop.permute.xlu0 %2923
    %2925 = vrot.lane.b32.xlu0 %v2704, 18
    %v2926 = vpop.permute.xlu0 %2925
    %2927 = vrot.lane.b32.xlu0 %v2705, 18
    %v2928 = vpop.permute.xlu0 %2927
    %2929 = vrot.lane.b32.xlu0 %v2706, 18
    %v2930 = vpop.permute.xlu0 %2929
    %2931 = vrot.lane.b32.xlu0 %v2707, 18
    %v2932 = vpop.permute.xlu0 %2931
    %2933 = vrot.lane.b32.xlu0 %v2708, 18
    %v2934 = vpop.permute.xlu0 %2933
    %2935 = vrot.lane.b32.xlu0 %v2709, 18
    %v2936 = vpop.permute.xlu0 %2935
    %2937 = vrot.lane.b32.xlu0 %v2710, 18
    %v2938 = vpop.permute.xlu0 %2937
    %2939 = vrot.lane.b32.xlu0 %v2711, 18
    %v2940 = vpop.permute.xlu0 %2939
    %2941 = vrot.lane.b32.xlu0 %v2712, 18
    %v2942 = vpop.permute.xlu0 %2941
    %2943 = vrot.lane.b32.xlu0 %v2713, 18
    %v2944 = vpop.permute.xlu0 %2943
    %2945 = vrot.lane.b32.xlu0 %v2714, 18
    %v2946 = vpop.permute.xlu0 %2945
    %2947 = vrot.lane.b32.xlu0 %v2715, 18
    %v2948 = vpop.permute.xlu0 %2947
    %2949 = vrot.lane.b32.xlu0 %v2716, 18
    %v2950 = vpop.permute.xlu0 %2949
    %2951 = vrot.lane.b32.xlu0 %v2717, 18
    %v2952 = vpop.permute.xlu0 %2951
    %2953 = vrot.lane.b32.xlu0 %v2718, 18
    %v2954 = vpop.permute.xlu0 %2953
    %2955 = vrot.lane.b32.xlu0 %v2719, 18
    %v2956 = vpop.permute.xlu0 %2955
    %2957 = vrot.lane.b32.xlu0 %v2720, 18
    %v2958 = vpop.permute.xlu0 %2957
    %2959 = vrot.lane.b32.xlu0 %v2721, 18
    %v2960 = vpop.permute.xlu0 %2959
    %2961 = vrot.lane.b32.xlu0 %v2722, 18
    %v2962 = vpop.permute.xlu0 %2961
    %2963 = vrot.lane.b32.xlu0 %v2723, 18
    %v2964 = vpop.permute.xlu0 %2963
    %2965 = vrot.lane.b32.xlu0 %v2724, 18
    %v2966 = vpop.permute.xlu0 %2965
    %2967 = vrot.lane.b32.xlu0 %v2725, 18
    %v2968 = vpop.permute.xlu0 %2967
    %vm3050 = vcmask 171152
    %3051 = vst.msk [vmem:[#allocation2] sm:$0xff] %vm3050, %v2808
    %3052 = vst.msk [vmem:[#allocation2 + $0x8] sm:$0xff] %vm3050, %v2810
    %3053 = vst.msk [vmem:[#allocation2 + $0x10] sm:$0xff] %vm3050, %v2812
    %3054 = vst.msk [vmem:[#allocation2 + $0x18] sm:$0xff] %vm3050, %v2814
    %3055 = vst.msk [vmem:[#allocation2 + $0x20] sm:$0xff] %vm3050, %v2816
    %3056 = vst.msk [vmem:[#allocation2 + $0x28] sm:$0xff] %vm3050, %v2818
    %3057 = vst.msk [vmem:[#allocation2 + $0x30] sm:$0xff] %vm3050, %v2820
    %3058 = vst.msk [vmem:[#allocation2 + $0x38] sm:$0xff] %vm3050, %v2822
    %3059 = vst.msk [vmem:[#allocation2 + $0x40] sm:$0xff] %vm3050, %v2824
    %3060 = vst.msk [vmem:[#allocation2 + $0x48] sm:$0xff] %vm3050, %v2826
    %3061 = vst.msk [vmem:[#allocation2 + $0x50] sm:$0xff] %vm3050, %v2828
    %3062 = vst.msk [vmem:[#allocation2 + $0x58] sm:$0xff] %vm3050, %v2830
    %3063 = vst.msk [vmem:[#allocation2 + $0x60] sm:$0xff] %vm3050, %v2832
    %3064 = vst.msk [vmem:[#allocation2 + $0x68] sm:$0xff] %vm3050, %v2834
    %3065 = vst.msk [vmem:[#allocation2 + $0x70] sm:$0xff] %vm3050, %v2836
    %3066 = vst.msk [vmem:[#allocation2 + $0x78] sm:$0xff] %vm3050, %v2838
    %3067 = vst.msk [vmem:[#allocation2 + $0x80] sm:$0xff] %vm3050, %v2840
    %3068 = vst.msk [vmem:[#allocation2 + $0x88] sm:$0xff] %vm3050, %v2842
    %3069 = vst.msk [vmem:[#allocation2 + $0x90] sm:$0xff] %vm3050, %v2844
    %3070 = vst.msk [vmem:[#allocation2 + $0x98] sm:$0xff] %vm3050, %v2846
    %3071 = vst.msk [vmem:[#allocation2 + $0xa0] sm:$0xff] %vm3050, %v2848
    %3072 = vst.msk [vmem:[#allocation2 + $0xa8] sm:$0xff] %vm3050, %v2850
    %3073 = vst.msk [vmem:[#allocation2 + $0xb0] sm:$0xff] %vm3050, %v2852
    %3074 = vst.msk [vmem:[#allocation2 + $0xb8] sm:$0xff] %vm3050, %v2854
    %3075 = vst.msk [vmem:[#allocation2 + $0xc0] sm:$0xff] %vm3050, %v2856
    %3076 = vst.msk [vmem:[#allocation2 + $0xc8] sm:$0xff] %vm3050, %v2858
    %3077 = vst.msk [vmem:[#allocation2 + $0xd0] sm:$0xff] %vm3050, %v2860
    %3078 = vst.msk [vmem:[#allocation2 + $0xd8] sm:$0xff] %vm3050, %v2862
    %3079 = vst.msk [vmem:[#allocation2 + $0xe0] sm:$0xff] %vm3050, %v2864
    %3080 = vst.msk [vmem:[#allocation2 + $0xe8] sm:$0xff] %vm3050, %v2866
    %3081 = vst.msk [vmem:[#allocation2 + $0xf0] sm:$0xff] %vm3050, %v2868
    %3082 = vst.msk [vmem:[#allocation2 + $0xf8] sm:$0xff] %vm3050, %v2870
    %3083 = vst.msk [vmem:[#allocation2 + $0x100] sm:$0xff] %vm3050, %v2872
    %3084 = vst.msk [vmem:[#allocation2 + $0x108] sm:$0xff] %vm3050, %v2874
    %3085 = vst.msk [vmem:[#allocation2 + $0x110] sm:$0xff] %vm3050, %v2876
    %3086 = vst.msk [vmem:[#allocation2 + $0x118] sm:$0xff] %vm3050, %v2878
    %3087 = vst.msk [vmem:[#allocation2 + $0x120] sm:$0xff] %vm3050, %v2880
    %3088 = vst.msk [vmem:[#allocation2 + $0x128] sm:$0xff] %vm3050, %v2882
    %3089 = vst.msk [vmem:[#allocation2 + $0x130] sm:$0xff] %vm3050, %v2884
    %3090 = vst.msk [vmem:[#allocation2 + $0x138] sm:$0xff] %vm3050, %v2886
    %3091 = vst.msk [vmem:[#allocation2 + $0x140] sm:$0xff] %vm3050, %v2888
    %3092 = vst.msk [vmem:[#allocation2 + $0x148] sm:$0xff] %vm3050, %v2890
    %3093 = vst.msk [vmem:[#allocation2 + $0x150] sm:$0xff] %vm3050, %v2892
    %3094 = vst.msk [vmem:[#allocation2 + $0x158] sm:$0xff] %vm3050, %v2894
    %3095 = vst.msk [vmem:[#allocation2 + $0x160] sm:$0xff] %vm3050, %v2896
    %3096 = vst.msk [vmem:[#allocation2 + $0x168] sm:$0xff] %vm3050, %v2898
    %3097 = vst.msk [vmem:[#allocation2 + $0x170] sm:$0xff] %vm3050, %v2900
    %3098 = vst.msk [vmem:[#allocation2 + $0x178] sm:$0xff] %vm3050, %v2902
    %3099 = vst.msk [vmem:[#allocation2 + $0x180] sm:$0xff] %vm3050, %v2904
    %3100 = vst.msk [vmem:[#allocation2 + $0x188] sm:$0xff] %vm3050, %v2906
    %3101 = vst.msk [vmem:[#allocation2 + $0x190] sm:$0xff] %vm3050, %v2908
    %3102 = vst.msk [vmem:[#allocation2 + $0x198] sm:$0xff] %vm3050, %v2910
    %3103 = vst.msk [vmem:[#allocation2 + $0x1a0] sm:$0xff] %vm3050, %v2912
    %3104 = vst.msk [vmem:[#allocation2 + $0x1a8] sm:$0xff] %vm3050, %v2914
    %3105 = vst.msk [vmem:[#allocation2 + $0x1b0] sm:$0xff] %vm3050, %v2916
    %3106 = vst.msk [vmem:[#allocation2 + $0x1b8] sm:$0xff] %vm3050, %v2918
    %3107 = vst.msk [vmem:[#allocation2 + $0x1c0] sm:$0xff] %vm3050, %v2920
    %3108 = vst.msk [vmem:[#allocation2 + $0x1c8] sm:$0xff] %vm3050, %v2922
    %3109 = vst.msk [vmem:[#allocation2 + $0x1d0] sm:$0xff] %vm3050, %v2924
    %3110 = vst.msk [vmem:[#allocation2 + $0x1d8] sm:$0xff] %vm3050, %v2926
    %3111 = vst.msk [vmem:[#allocation2 + $0x1e0] sm:$0xff] %vm3050, %v2928
    %3112 = vst.msk [vmem:[#allocation2 + $0x1e8] sm:$0xff] %vm3050, %v2930
    %3113 = vst.msk [vmem:[#allocation2 + $0x1f0] sm:$0xff] %vm3050, %v2932
    %3114 = vst.msk [vmem:[#allocation2 + $0x1f8] sm:$0xff] %vm3050, %v2934
    %3115 = vst.msk [vmem:[#allocation2 + $0x200] sm:$0xff] %vm3050, %v2936
    %3116 = vst.msk [vmem:[#allocation2 + $0x208] sm:$0xff] %vm3050, %v2938
    %3117 = vst.msk [vmem:[#allocation2 + $0x210] sm:$0xff] %vm3050, %v2940
    %3118 = vst.msk [vmem:[#allocation2 + $0x218] sm:$0xff] %vm3050, %v2942
    %3119 = vst.msk [vmem:[#allocation2 + $0x220] sm:$0xff] %vm3050, %v2944
    %3120 = vst.msk [vmem:[#allocation2 + $0x228] sm:$0xff] %vm3050, %v2946
    %3121 = vst.msk [vmem:[#allocation2 + $0x230] sm:$0xff] %vm3050, %v2948
    %3122 = vst.msk [vmem:[#allocation2 + $0x238] sm:$0xff] %vm3050, %v2950
    %3123 = vst.msk [vmem:[#allocation2 + $0x240] sm:$0xff] %vm3050, %v2952
    %3124 = vst.msk [vmem:[#allocation2 + $0x248] sm:$0xff] %vm3050, %v2954
    %3125 = vst.msk [vmem:[#allocation2 + $0x250] sm:$0xff] %vm3050, %v2956
    %3126 = vst.msk [vmem:[#allocation2 + $0x258] sm:$0xff] %vm3050, %v2958
    %3127 = vst.msk [vmem:[#allocation2 + $0x260] sm:$0xff] %vm3050, %v2960
    %3128 = vst.msk [vmem:[#allocation2 + $0x268] sm:$0xff] %vm3050, %v2962
    %3129 = vst.msk [vmem:[#allocation2 + $0x270] sm:$0xff] %vm3050, %v2964
    %3130 = vst.msk [vmem:[#allocation2 + $0x278] sm:$0xff] %vm3050, %v2966
    %3131 = vst.msk [vmem:[#allocation2 + $0x280] sm:$0xff] %vm3050, %v2968
    %v3132 = vld [vmem:[%s0 + $0x25] sm:$0xff]
    %v3133 = vld [vmem:[%s0 + $0x2d] sm:$0xff]
    %v3134 = vld [vmem:[%s0 + $0x35] sm:$0xff]
    %v3135 = vld [vmem:[%s0 + $0x3d] sm:$0xff]
    %v3136 = vld [vmem:[%s0 + $0x45] sm:$0xff]
    %v3137 = vld [vmem:[%s0 + $0x4d] sm:$0xff]
    %v3138 = vld [vmem:[%s0 + $0x55] sm:$0xff]
    %v3139 = vld [vmem:[%s0 + $0x5d] sm:$0xff]
    %v3140 = vld [vmem:[%s0 + $0x65] sm:$0xff]
    %v3141 = vld [vmem:[%s0 + $0x6d] sm:$0xff]
    %v3142 = vld [vmem:[%s0 + $0x75] sm:$0xff]
    %v3143 = vld [vmem:[%s0 + $0x7d] sm:$0xff]
    %v3144 = vld [vmem:[%s0 + $0x85] sm:$0xff]
    %v3145 = vld [vmem:[%s0 + $0x8d] sm:$0xff]
    %v3146 = vld [vmem:[%s0 + $0x95] sm:$0xff]
    %v3147 = vld [vmem:[%s0 + $0x9d] sm:$0xff]
    %v3148 = vld [vmem:[%s0 + $0xa5] sm:$0xff]
    %v3149 = vld [vmem:[%s0 + $0xad] sm:$0xff]
    %v3150 = vld [vmem:[%s0 + $0xb5] sm:$0xff]
    %v3151 = vld [vmem:[%s0 + $0xbd] sm:$0xff]
    %v3152 = vld [vmem:[%s0 + $0xc5] sm:$0xff]
    %v3153 = vld [vmem:[%s0 + $0xcd] sm:$0xff]
    %v3154 = vld [vmem:[%s0 + $0xd5] sm:$0xff]
    %v3155 = vld [vmem:[%s0 + $0xdd] sm:$0xff]
    %v3156 = vld [vmem:[%s0 + $0xe5] sm:$0xff]
    %v3157 = vld [vmem:[%s0 + $0xed] sm:$0xff]
    %v3158 = vld [vmem:[%s0 + $0xf5] sm:$0xff]
    %v3159 = vld [vmem:[%s0 + $0xfd] sm:$0xff]
    %v3160 = vld [vmem:[%s0 + $0x105] sm:$0xff]
    %v3161 = vld [vmem:[%s0 + $0x10d] sm:$0xff]
    %v3162 = vld [vmem:[%s0 + $0x115] sm:$0xff]
    %v3163 = vld [vmem:[%s0 + $0x11d] sm:$0xff]
    %v3164 = vld [vmem:[%s0 + $0x125] sm:$0xff]
    %v3165 = vld [vmem:[%s0 + $0x12d] sm:$0xff]
    %v3166 = vld [vmem:[%s0 + $0x135] sm:$0xff]
    %v3167 = vld [vmem:[%s0 + $0x13d] sm:$0xff]
    %v3168 = vld [vmem:[%s0 + $0x145] sm:$0xff]
    %v3169 = vld [vmem:[%s0 + $0x14d] sm:$0xff]
    %v3170 = vld [vmem:[%s0 + $0x155] sm:$0xff]
    %v3171 = vld [vmem:[%s0 + $0x15d] sm:$0xff]
    %v3172 = vld [vmem:[%s0 + $0x165] sm:$0xff]
    %v3173 = vld [vmem:[%s0 + $0x16d] sm:$0xff]
    %v3174 = vld [vmem:[%s0 + $0x175] sm:$0xff]
    %v3175 = vld [vmem:[%s0 + $0x17d] sm:$0xff]
    %v3176 = vld [vmem:[%s0 + $0x185] sm:$0xff]
    %v3177 = vld [vmem:[%s0 + $0x18d] sm:$0xff]
    %v3178 = vld [vmem:[%s0 + $0x195] sm:$0xff]
    %v3179 = vld [vmem:[%s0 + $0x19d] sm:$0xff]
    %v3180 = vld [vmem:[%s0 + $0x1a5] sm:$0xff]
    %v3181 = vld [vmem:[%s0 + $0x1ad] sm:$0xff]
    %v3182 = vld [vmem:[%s0 + $0x1b5] sm:$0xff]
    %v3183 = vld [vmem:[%s0 + $0x1bd] sm:$0xff]
    %v3184 = vld [vmem:[%s0 + $0x1c5] sm:$0xff]
    %v3185 = vld [vmem:[%s0 + $0x1cd] sm:$0xff]
    %v3186 = vld [vmem:[%s0 + $0x1d5] sm:$0xff]
    %v3187 = vld [vmem:[%s0 + $0x1dd] sm:$0xff]
    %v3188 = vld [vmem:[%s0 + $0x1e5] sm:$0xff]
    %v3189 = vld [vmem:[%s0 + $0x1ed] sm:$0xff]
    %v3190 = vld [vmem:[%s0 + $0x1f5] sm:$0xff]
    %v3191 = vld [vmem:[%s0 + $0x1fd] sm:$0xff]
    %v3192 = vld [vmem:[%s0 + $0x205] sm:$0xff]
    %v3193 = vld [vmem:[%s0 + $0x20d] sm:$0xff]
    %v3194 = vld [vmem:[%s0 + $0x215] sm:$0xff]
    %v3195 = vld [vmem:[%s0 + $0x21d] sm:$0xff]
    %v3196 = vld [vmem:[%s0 + $0x225] sm:$0xff]
    %v3197 = vld [vmem:[%s0 + $0x22d] sm:$0xff]
    %v3198 = vld [vmem:[%s0 + $0x235] sm:$0xff]
    %v3199 = vld [vmem:[%s0 + $0x23d] sm:$0xff]
    %v3200 = vld [vmem:[%s0 + $0x245] sm:$0xff]
    %v3201 = vld [vmem:[%s0 + $0x24d] sm:$0xff]
    %v3202 = vld [vmem:[%s0 + $0x255] sm:$0xff]
    %v3203 = vld [vmem:[%s0 + $0x25d] sm:$0xff]
    %v3204 = vld [vmem:[%s0 + $0x265] sm:$0xff]
    %v3205 = vld [vmem:[%s0 + $0x26d] sm:$0xff]
    %v3206 = vld [vmem:[%s0 + $0x275] sm:$0xff]
    %v3207 = vld [vmem:[%s0 + $0x27d] sm:$0xff]
    %v3208 = vld [vmem:[%s0 + $0x285] sm:$0xff]
    %v3209 = vld [vmem:[%s0 + $0x28d] sm:$0xff]
    %v3210 = vld [vmem:[%s0 + $0x295] sm:$0xff]
    %v3211 = vld [vmem:[%s0 + $0x29d] sm:$0xff]
    %v3212 = vld [vmem:[%s0 + $0x2a5] sm:$0xff]
    %3294 = vrot.lane.b32.xlu0 %v3132, 21
    %v3295 = vpop.permute.xlu0 %3294
    %3296 = vrot.lane.b32.xlu0 %v3133, 21
    %v3297 = vpop.permute.xlu0 %3296
    %3298 = vrot.lane.b32.xlu0 %v3134, 21
    %v3299 = vpop.permute.xlu0 %3298
    %3300 = vrot.lane.b32.xlu0 %v3135, 21
    %v3301 = vpop.permute.xlu0 %3300
    %3302 = vrot.lane.b32.xlu0 %v3136, 21
    %v3303 = vpop.permute.xlu0 %3302
    %3304 = vrot.lane.b32.xlu0 %v3137, 21
    %v3305 = vpop.permute.xlu0 %3304
    %3306 = vrot.lane.b32.xlu0 %v3138, 21
    %v3307 = vpop.permute.xlu0 %3306
    %3308 = vrot.lane.b32.xlu0 %v3139, 21
    %v3309 = vpop.permute.xlu0 %3308
    %3310 = vrot.lane.b32.xlu0 %v3140, 21
    %v3311 = vpop.permute.xlu0 %3310
    %3312 = vrot.lane.b32.xlu0 %v3141, 21
    %v3313 = vpop.permute.xlu0 %3312
    %3314 = vrot.lane.b32.xlu0 %v3142, 21
    %v3315 = vpop.permute.xlu0 %3314
    %3316 = vrot.lane.b32.xlu0 %v3143, 21
    %v3317 = vpop.permute.xlu0 %3316
    %3318 = vrot.lane.b32.xlu0 %v3144, 21
    %v3319 = vpop.permute.xlu0 %3318
    %3320 = vrot.lane.b32.xlu0 %v3145, 21
    %v3321 = vpop.permute.xlu0 %3320
    %3322 = vrot.lane.b32.xlu0 %v3146, 21
    %v3323 = vpop.permute.xlu0 %3322
    %3324 = vrot.lane.b32.xlu0 %v3147, 21
    %v3325 = vpop.permute.xlu0 %3324
    %3326 = vrot.lane.b32.xlu0 %v3148, 21
    %v3327 = vpop.permute.xlu0 %3326
    %3328 = vrot.lane.b32.xlu0 %v3149, 21
    %v3329 = vpop.permute.xlu0 %3328
    %3330 = vrot.lane.b32.xlu0 %v3150, 21
    %v3331 = vpop.permute.xlu0 %3330
    %3332 = vrot.lane.b32.xlu0 %v3151, 21
    %v3333 = vpop.permute.xlu0 %3332
    %3334 = vrot.lane.b32.xlu0 %v3152, 21
    %v3335 = vpop.permute.xlu0 %3334
    %3336 = vrot.lane.b32.xlu0 %v3153, 21
    %v3337 = vpop.permute.xlu0 %3336
    %3338 = vrot.lane.b32.xlu0 %v3154, 21
    %v3339 = vpop.permute.xlu0 %3338
    %3340 = vrot.lane.b32.xlu0 %v3155, 21
    %v3341 = vpop.permute.xlu0 %3340
    %3342 = vrot.lane.b32.xlu0 %v3156, 21
    %v3343 = vpop.permute.xlu0 %3342
    %3344 = vrot.lane.b32.xlu0 %v3157, 21
    %v3345 = vpop.permute.xlu0 %3344
    %3346 = vrot.lane.b32.xlu0 %v3158, 21
    %v3347 = vpop.permute.xlu0 %3346
    %3348 = vrot.lane.b32.xlu0 %v3159, 21
    %v3349 = vpop.permute.xlu0 %3348
    %3350 = vrot.lane.b32.xlu0 %v3160, 21
    %v3351 = vpop.permute.xlu0 %3350
    %3352 = vrot.lane.b32.xlu0 %v3161, 21
    %v3353 = vpop.permute.xlu0 %3352
    %3354 = vrot.lane.b32.xlu0 %v3162, 21
    %v3355 = vpop.permute.xlu0 %3354
    %3356 = vrot.lane.b32.xlu0 %v3163, 21
    %v3357 = vpop.permute.xlu0 %3356
    %3358 = vrot.lane.b32.xlu0 %v3164, 21
    %v3359 = vpop.permute.xlu0 %3358
    %3360 = vrot.lane.b32.xlu0 %v3165, 21
    %v3361 = vpop.permute.xlu0 %3360
    %3362 = vrot.lane.b32.xlu0 %v3166, 21
    %v3363 = vpop.permute.xlu0 %3362
    %3364 = vrot.lane.b32.xlu0 %v3167, 21
    %v3365 = vpop.permute.xlu0 %3364
    %3366 = vrot.lane.b32.xlu0 %v3168, 21
    %v3367 = vpop.permute.xlu0 %3366
    %3368 = vrot.lane.b32.xlu0 %v3169, 21
    %v3369 = vpop.permute.xlu0 %3368
    %3370 = vrot.lane.b32.xlu0 %v3170, 21
    %v3371 = vpop.permute.xlu0 %3370
    %3372 = vrot.lane.b32.xlu0 %v3171, 21
    %v3373 = vpop.permute.xlu0 %3372
    %3374 = vrot.lane.b32.xlu0 %v3172, 21
    %v3375 = vpop.permute.xlu0 %3374
    %3376 = vrot.lane.b32.xlu0 %v3173, 21
    %v3377 = vpop.permute.xlu0 %3376
    %3378 = vrot.lane.b32.xlu0 %v3174, 21
    %v3379 = vpop.permute.xlu0 %3378
    %3380 = vrot.lane.b32.xlu0 %v3175, 21
    %v3381 = vpop.permute.xlu0 %3380
    %3382 = vrot.lane.b32.xlu0 %v3176, 21
    %v3383 = vpop.permute.xlu0 %3382
    %3384 = vrot.lane.b32.xlu0 %v3177, 21
    %v3385 = vpop.permute.xlu0 %3384
    %3386 = vrot.lane.b32.xlu0 %v3178, 21
    %v3387 = vpop.permute.xlu0 %3386
    %3388 = vrot.lane.b32.xlu0 %v3179, 21
    %v3389 = vpop.permute.xlu0 %3388
    %3390 = vrot.lane.b32.xlu0 %v3180, 21
    %v3391 = vpop.permute.xlu0 %3390
    %3392 = vrot.lane.b32.xlu0 %v3181, 21
    %v3393 = vpop.permute.xlu0 %3392
    %3394 = vrot.lane.b32.xlu0 %v3182, 21
    %v3395 = vpop.permute.xlu0 %3394
    %3396 = vrot.lane.b32.xlu0 %v3183, 21
    %v3397 = vpop.permute.xlu0 %3396
    %3398 = vrot.lane.b32.xlu0 %v3184, 21
    %v3399 = vpop.permute.xlu0 %3398
    %3400 = vrot.lane.b32.xlu0 %v3185, 21
    %v3401 = vpop.permute.xlu0 %3400
    %3402 = vrot.lane.b32.xlu0 %v3186, 21
    %v3403 = vpop.permute.xlu0 %3402
    %3404 = vrot.lane.b32.xlu0 %v3187, 21
    %v3405 = vpop.permute.xlu0 %3404
    %3406 = vrot.lane.b32.xlu0 %v3188, 21
    %v3407 = vpop.permute.xlu0 %3406
    %3408 = vrot.lane.b32.xlu0 %v3189, 21
    %v3409 = vpop.permute.xlu0 %3408
    %3410 = vrot.lane.b32.xlu0 %v3190, 21
    %v3411 = vpop.permute.xlu0 %3410
    %3412 = vrot.lane.b32.xlu0 %v3191, 21
    %v3413 = vpop.permute.xlu0 %3412
    %3414 = vrot.lane.b32.xlu0 %v3192, 21
    %v3415 = vpop.permute.xlu0 %3414
    %3416 = vrot.lane.b32.xlu0 %v3193, 21
    %v3417 = vpop.permute.xlu0 %3416
    %3418 = vrot.lane.b32.xlu0 %v3194, 21
    %v3419 = vpop.permute.xlu0 %3418
    %3420 = vrot.lane.b32.xlu0 %v3195, 21
    %v3421 = vpop.permute.xlu0 %3420
    %3422 = vrot.lane.b32.xlu0 %v3196, 21
    %v3423 = vpop.permute.xlu0 %3422
    %3424 = vrot.lane.b32.xlu0 %v3197, 21
    %v3425 = vpop.permute.xlu0 %3424
    %3426 = vrot.lane.b32.xlu0 %v3198, 21
    %v3427 = vpop.permute.xlu0 %3426
    %3428 = vrot.lane.b32.xlu0 %v3199, 21
    %v3429 = vpop.permute.xlu0 %3428
    %3430 = vrot.lane.b32.xlu0 %v3200, 21
    %v3431 = vpop.permute.xlu0 %3430
    %3432 = vrot.lane.b32.xlu0 %v3201, 21
    %v3433 = vpop.permute.xlu0 %3432
    %3434 = vrot.lane.b32.xlu0 %v3202, 21
    %v3435 = vpop.permute.xlu0 %3434
    %3436 = vrot.lane.b32.xlu0 %v3203, 21
    %v3437 = vpop.permute.xlu0 %3436
    %3438 = vrot.lane.b32.xlu0 %v3204, 21
    %v3439 = vpop.permute.xlu0 %3438
    %3440 = vrot.lane.b32.xlu0 %v3205, 21
    %v3441 = vpop.permute.xlu0 %3440
    %3442 = vrot.lane.b32.xlu0 %v3206, 21
    %v3443 = vpop.permute.xlu0 %3442
    %3444 = vrot.lane.b32.xlu0 %v3207, 21
    %v3445 = vpop.permute.xlu0 %3444
    %3446 = vrot.lane.b32.xlu0 %v3208, 21
    %v3447 = vpop.permute.xlu0 %3446
    %3448 = vrot.lane.b32.xlu0 %v3209, 21
    %v3449 = vpop.permute.xlu0 %3448
    %3450 = vrot.lane.b32.xlu0 %v3210, 21
    %v3451 = vpop.permute.xlu0 %3450
    %3452 = vrot.lane.b32.xlu0 %v3211, 21
    %v3453 = vpop.permute.xlu0 %3452
    %3454 = vrot.lane.b32.xlu0 %v3212, 21
    %v3455 = vpop.permute.xlu0 %3454
    %vm3537 = vcmask 195752
    %3538 = vst.msk [vmem:[#allocation2] sm:$0xff] %vm3537, %v3295
    %3539 = vst.msk [vmem:[#allocation2 + $0x8] sm:$0xff] %vm3537, %v3297
    %3540 = vst.msk [vmem:[#allocation2 + $0x10] sm:$0xff] %vm3537, %v3299
    %3541 = vst.msk [vmem:[#allocation2 + $0x18] sm:$0xff] %vm3537, %v3301
    %3542 = vst.msk [vmem:[#allocation2 + $0x20] sm:$0xff] %vm3537, %v3303
    %3543 = vst.msk [vmem:[#allocation2 + $0x28] sm:$0xff] %vm3537, %v3305
    %3544 = vst.msk [vmem:[#allocation2 + $0x30] sm:$0xff] %vm3537, %v3307
    %3545 = vst.msk [vmem:[#allocation2 + $0x38] sm:$0xff] %vm3537, %v3309
    %3546 = vst.msk [vmem:[#allocation2 + $0x40] sm:$0xff] %vm3537, %v3311
    %3547 = vst.msk [vmem:[#allocation2 + $0x48] sm:$0xff] %vm3537, %v3313
    %3548 = vst.msk [vmem:[#allocation2 + $0x50] sm:$0xff] %vm3537, %v3315
    %3549 = vst.msk [vmem:[#allocation2 + $0x58] sm:$0xff] %vm3537, %v3317
    %3550 = vst.msk [vmem:[#allocation2 + $0x60] sm:$0xff] %vm3537, %v3319
    %3551 = vst.msk [vmem:[#allocation2 + $0x68] sm:$0xff] %vm3537, %v3321
    %3552 = vst.msk [vmem:[#allocation2 + $0x70] sm:$0xff] %vm3537, %v3323
    %3553 = vst.msk [vmem:[#allocation2 + $0x78] sm:$0xff] %vm3537, %v3325
    %3554 = vst.msk [vmem:[#allocation2 + $0x80] sm:$0xff] %vm3537, %v3327
    %3555 = vst.msk [vmem:[#allocation2 + $0x88] sm:$0xff] %vm3537, %v3329
    %3556 = vst.msk [vmem:[#allocation2 + $0x90] sm:$0xff] %vm3537, %v3331
    %3557 = vst.msk [vmem:[#allocation2 + $0x98] sm:$0xff] %vm3537, %v3333
    %3558 = vst.msk [vmem:[#allocation2 + $0xa0] sm:$0xff] %vm3537, %v3335
    %3559 = vst.msk [vmem:[#allocation2 + $0xa8] sm:$0xff] %vm3537, %v3337
    %3560 = vst.msk [vmem:[#allocation2 + $0xb0] sm:$0xff] %vm3537, %v3339
    %3561 = vst.msk [vmem:[#allocation2 + $0xb8] sm:$0xff] %vm3537, %v3341
    %3562 = vst.msk [vmem:[#allocation2 + $0xc0] sm:$0xff] %vm3537, %v3343
    %3563 = vst.msk [vmem:[#allocation2 + $0xc8] sm:$0xff] %vm3537, %v3345
    %3564 = vst.msk [vmem:[#allocation2 + $0xd0] sm:$0xff] %vm3537, %v3347
    %3565 = vst.msk [vmem:[#allocation2 + $0xd8] sm:$0xff] %vm3537, %v3349
    %3566 = vst.msk [vmem:[#allocation2 + $0xe0] sm:$0xff] %vm3537, %v3351
    %3567 = vst.msk [vmem:[#allocation2 + $0xe8] sm:$0xff] %vm3537, %v3353
    %3568 = vst.msk [vmem:[#allocation2 + $0xf0] sm:$0xff] %vm3537, %v3355
    %3569 = vst.msk [vmem:[#allocation2 + $0xf8] sm:$0xff] %vm3537, %v3357
    %3570 = vst.msk [vmem:[#allocation2 + $0x100] sm:$0xff] %vm3537, %v3359
    %3571 = vst.msk [vmem:[#allocation2 + $0x108] sm:$0xff] %vm3537, %v3361
    %3572 = vst.msk [vmem:[#allocation2 + $0x110] sm:$0xff] %vm3537, %v3363
    %3573 = vst.msk [vmem:[#allocation2 + $0x118] sm:$0xff] %vm3537, %v3365
    %3574 = vst.msk [vmem:[#allocation2 + $0x120] sm:$0xff] %vm3537, %v3367
    %3575 = vst.msk [vmem:[#allocation2 + $0x128] sm:$0xff] %vm3537, %v3369
    %3576 = vst.msk [vmem:[#allocation2 + $0x130] sm:$0xff] %vm3537, %v3371
    %3577 = vst.msk [vmem:[#allocation2 + $0x138] sm:$0xff] %vm3537, %v3373
    %3578 = vst.msk [vmem:[#allocation2 + $0x140] sm:$0xff] %vm3537, %v3375
    %3579 = vst.msk [vmem:[#allocation2 + $0x148] sm:$0xff] %vm3537, %v3377
    %3580 = vst.msk [vmem:[#allocation2 + $0x150] sm:$0xff] %vm3537, %v3379
    %3581 = vst.msk [vmem:[#allocation2 + $0x158] sm:$0xff] %vm3537, %v3381
    %3582 = vst.msk [vmem:[#allocation2 + $0x160] sm:$0xff] %vm3537, %v3383
    %3583 = vst.msk [vmem:[#allocation2 + $0x168] sm:$0xff] %vm3537, %v3385
    %3584 = vst.msk [vmem:[#allocation2 + $0x170] sm:$0xff] %vm3537, %v3387
    %3585 = vst.msk [vmem:[#allocation2 + $0x178] sm:$0xff] %vm3537, %v3389
    %3586 = vst.msk [vmem:[#allocation2 + $0x180] sm:$0xff] %vm3537, %v3391
    %3587 = vst.msk [vmem:[#allocation2 + $0x188] sm:$0xff] %vm3537, %v3393
    %3588 = vst.msk [vmem:[#allocation2 + $0x190] sm:$0xff] %vm3537, %v3395
    %3589 = vst.msk [vmem:[#allocation2 + $0x198] sm:$0xff] %vm3537, %v3397
    %3590 = vst.msk [vmem:[#allocation2 + $0x1a0] sm:$0xff] %vm3537, %v3399
    %3591 = vst.msk [vmem:[#allocation2 + $0x1a8] sm:$0xff] %vm3537, %v3401
    %3592 = vst.msk [vmem:[#allocation2 + $0x1b0] sm:$0xff] %vm3537, %v3403
    %3593 = vst.msk [vmem:[#allocation2 + $0x1b8] sm:$0xff] %vm3537, %v3405
    %3594 = vst.msk [vmem:[#allocation2 + $0x1c0] sm:$0xff] %vm3537, %v3407
    %3595 = vst.msk [vmem:[#allocation2 + $0x1c8] sm:$0xff] %vm3537, %v3409
    %3596 = vst.msk [vmem:[#allocation2 + $0x1d0] sm:$0xff] %vm3537, %v3411
    %3597 = vst.msk [vmem:[#allocation2 + $0x1d8] sm:$0xff] %vm3537, %v3413
    %3598 = vst.msk [vmem:[#allocation2 + $0x1e0] sm:$0xff] %vm3537, %v3415
    %3599 = vst.msk [vmem:[#allocation2 + $0x1e8] sm:$0xff] %vm3537, %v3417
    %3600 = vst.msk [vmem:[#allocation2 + $0x1f0] sm:$0xff] %vm3537, %v3419
    %3601 = vst.msk [vmem:[#allocation2 + $0x1f8] sm:$0xff] %vm3537, %v3421
    %3602 = vst.msk [vmem:[#allocation2 + $0x200] sm:$0xff] %vm3537, %v3423
    %3603 = vst.msk [vmem:[#allocation2 + $0x208] sm:$0xff] %vm3537, %v3425
    %3604 = vst.msk [vmem:[#allocation2 + $0x210] sm:$0xff] %vm3537, %v3427
    %3605 = vst.msk [vmem:[#allocation2 + $0x218] sm:$0xff] %vm3537, %v3429
    %3606 = vst.msk [vmem:[#allocation2 + $0x220] sm:$0xff] %vm3537, %v3431
    %3607 = vst.msk [vmem:[#allocation2 + $0x228] sm:$0xff] %vm3537, %v3433
    %3608 = vst.msk [vmem:[#allocation2 + $0x230] sm:$0xff] %vm3537, %v3435
    %3609 = vst.msk [vmem:[#allocation2 + $0x238] sm:$0xff] %vm3537, %v3437
    %3610 = vst.msk [vmem:[#allocation2 + $0x240] sm:$0xff] %vm3537, %v3439
    %3611 = vst.msk [vmem:[#allocation2 + $0x248] sm:$0xff] %vm3537, %v3441
    %3612 = vst.msk [vmem:[#allocation2 + $0x250] sm:$0xff] %vm3537, %v3443
    %3613 = vst.msk [vmem:[#allocation2 + $0x258] sm:$0xff] %vm3537, %v3445
    %3614 = vst.msk [vmem:[#allocation2 + $0x260] sm:$0xff] %vm3537, %v3447
    %3615 = vst.msk [vmem:[#allocation2 + $0x268] sm:$0xff] %vm3537, %v3449
    %3616 = vst.msk [vmem:[#allocation2 + $0x270] sm:$0xff] %vm3537, %v3451
    %3617 = vst.msk [vmem:[#allocation2 + $0x278] sm:$0xff] %vm3537, %v3453
    %3618 = vst.msk [vmem:[#allocation2 + $0x280] sm:$0xff] %vm3537, %v3455
    %v3619 = vld [vmem:[%s0 + $0x26] sm:$0xff]
    %v3620 = vld [vmem:[%s0 + $0x2e] sm:$0xff]
    %v3621 = vld [vmem:[%s0 + $0x36] sm:$0xff]
    %v3622 = vld [vmem:[%s0 + $0x3e] sm:$0xff]
    %v3623 = vld [vmem:[%s0 + $0x46] sm:$0xff]
    %v3624 = vld [vmem:[%s0 + $0x4e] sm:$0xff]
    %v3625 = vld [vmem:[%s0 + $0x56] sm:$0xff]
    %v3626 = vld [vmem:[%s0 + $0x5e] sm:$0xff]
    %v3627 = vld [vmem:[%s0 + $0x66] sm:$0xff]
    %v3628 = vld [vmem:[%s0 + $0x6e] sm:$0xff]
    %v3629 = vld [vmem:[%s0 + $0x76] sm:$0xff]
    %v3630 = vld [vmem:[%s0 + $0x7e] sm:$0xff]
    %v3631 = vld [vmem:[%s0 + $0x86] sm:$0xff]
    %v3632 = vld [vmem:[%s0 + $0x8e] sm:$0xff]
    %v3633 = vld [vmem:[%s0 + $0x96] sm:$0xff]
    %v3634 = vld [vmem:[%s0 + $0x9e] sm:$0xff]
    %v3635 = vld [vmem:[%s0 + $0xa6] sm:$0xff]
    %v3636 = vld [vmem:[%s0 + $0xae] sm:$0xff]
    %v3637 = vld [vmem:[%s0 + $0xb6] sm:$0xff]
    %v3638 = vld [vmem:[%s0 + $0xbe] sm:$0xff]
    %v3639 = vld [vmem:[%s0 + $0xc6] sm:$0xff]
    %v3640 = vld [vmem:[%s0 + $0xce] sm:$0xff]
    %v3641 = vld [vmem:[%s0 + $0xd6] sm:$0xff]
    %v3642 = vld [vmem:[%s0 + $0xde] sm:$0xff]
    %v3643 = vld [vmem:[%s0 + $0xe6] sm:$0xff]
    %v3644 = vld [vmem:[%s0 + $0xee] sm:$0xff]
    %v3645 = vld [vmem:[%s0 + $0xf6] sm:$0xff]
    %v3646 = vld [vmem:[%s0 + $0xfe] sm:$0xff]
    %v3647 = vld [vmem:[%s0 + $0x106] sm:$0xff]
    %v3648 = vld [vmem:[%s0 + $0x10e] sm:$0xff]
    %v3649 = vld [vmem:[%s0 + $0x116] sm:$0xff]
    %v3650 = vld [vmem:[%s0 + $0x11e] sm:$0xff]
    %v3651 = vld [vmem:[%s0 + $0x126] sm:$0xff]
    %v3652 = vld [vmem:[%s0 + $0x12e] sm:$0xff]
    %v3653 = vld [vmem:[%s0 + $0x136] sm:$0xff]
    %v3654 = vld [vmem:[%s0 + $0x13e] sm:$0xff]
    %v3655 = vld [vmem:[%s0 + $0x146] sm:$0xff]
    %v3656 = vld [vmem:[%s0 + $0x14e] sm:$0xff]
    %v3657 = vld [vmem:[%s0 + $0x156] sm:$0xff]
    %v3658 = vld [vmem:[%s0 + $0x15e] sm:$0xff]
    %v3659 = vld [vmem:[%s0 + $0x166] sm:$0xff]
    %v3660 = vld [vmem:[%s0 + $0x16e] sm:$0xff]
    %v3661 = vld [vmem:[%s0 + $0x176] sm:$0xff]
    %v3662 = vld [vmem:[%s0 + $0x17e] sm:$0xff]
    %v3663 = vld [vmem:[%s0 + $0x186] sm:$0xff]
    %v3664 = vld [vmem:[%s0 + $0x18e] sm:$0xff]
    %v3665 = vld [vmem:[%s0 + $0x196] sm:$0xff]
    %v3666 = vld [vmem:[%s0 + $0x19e] sm:$0xff]
    %v3667 = vld [vmem:[%s0 + $0x1a6] sm:$0xff]
    %v3668 = vld [vmem:[%s0 + $0x1ae] sm:$0xff]
    %v3669 = vld [vmem:[%s0 + $0x1b6] sm:$0xff]
    %v3670 = vld [vmem:[%s0 + $0x1be] sm:$0xff]
    %v3671 = vld [vmem:[%s0 + $0x1c6] sm:$0xff]
    %v3672 = vld [vmem:[%s0 + $0x1ce] sm:$0xff]
    %v3673 = vld [vmem:[%s0 + $0x1d6] sm:$0xff]
    %v3674 = vld [vmem:[%s0 + $0x1de] sm:$0xff]
    %v3675 = vld [vmem:[%s0 + $0x1e6] sm:$0xff]
    %v3676 = vld [vmem:[%s0 + $0x1ee] sm:$0xff]
    %v3677 = vld [vmem:[%s0 + $0x1f6] sm:$0xff]
    %v3678 = vld [vmem:[%s0 + $0x1fe] sm:$0xff]
    %v3679 = vld [vmem:[%s0 + $0x206] sm:$0xff]
    %v3680 = vld [vmem:[%s0 + $0x20e] sm:$0xff]
    %v3681 = vld [vmem:[%s0 + $0x216] sm:$0xff]
    %v3682 = vld [vmem:[%s0 + $0x21e] sm:$0xff]
    %v3683 = vld [vmem:[%s0 + $0x226] sm:$0xff]
    %v3684 = vld [vmem:[%s0 + $0x22e] sm:$0xff]
    %v3685 = vld [vmem:[%s0 + $0x236] sm:$0xff]
    %v3686 = vld [vmem:[%s0 + $0x23e] sm:$0xff]
    %v3687 = vld [vmem:[%s0 + $0x246] sm:$0xff]
    %v3688 = vld [vmem:[%s0 + $0x24e] sm:$0xff]
    %v3689 = vld [vmem:[%s0 + $0x256] sm:$0xff]
    %v3690 = vld [vmem:[%s0 + $0x25e] sm:$0xff]
    %v3691 = vld [vmem:[%s0 + $0x266] sm:$0xff]
    %v3692 = vld [vmem:[%s0 + $0x26e] sm:$0xff]
    %v3693 = vld [vmem:[%s0 + $0x276] sm:$0xff]
    %v3694 = vld [vmem:[%s0 + $0x27e] sm:$0xff]
    %v3695 = vld [vmem:[%s0 + $0x286] sm:$0xff]
    %v3696 = vld [vmem:[%s0 + $0x28e] sm:$0xff]
    %v3697 = vld [vmem:[%s0 + $0x296] sm:$0xff]
    %v3698 = vld [vmem:[%s0 + $0x29e] sm:$0xff]
    %v3699 = vld [vmem:[%s0 + $0x2a6] sm:$0xff]
    %3781 = vrot.lane.b32.xlu0 %v3619, 24
    %v3782 = vpop.permute.xlu0 %3781
    %3783 = vrot.lane.b32.xlu0 %v3620, 24
    %v3784 = vpop.permute.xlu0 %3783
    %3785 = vrot.lane.b32.xlu0 %v3621, 24
    %v3786 = vpop.permute.xlu0 %3785
    %3787 = vrot.lane.b32.xlu0 %v3622, 24
    %v3788 = vpop.permute.xlu0 %3787
    %3789 = vrot.lane.b32.xlu0 %v3623, 24
    %v3790 = vpop.permute.xlu0 %3789
    %3791 = vrot.lane.b32.xlu0 %v3624, 24
    %v3792 = vpop.permute.xlu0 %3791
    %3793 = vrot.lane.b32.xlu0 %v3625, 24
    %v3794 = vpop.permute.xlu0 %3793
    %3795 = vrot.lane.b32.xlu0 %v3626, 24
    %v3796 = vpop.permute.xlu0 %3795
    %3797 = vrot.lane.b32.xlu0 %v3627, 24
    %v3798 = vpop.permute.xlu0 %3797
    %3799 = vrot.lane.b32.xlu0 %v3628, 24
    %v3800 = vpop.permute.xlu0 %3799
    %3801 = vrot.lane.b32.xlu0 %v3629, 24
    %v3802 = vpop.permute.xlu0 %3801
    %3803 = vrot.lane.b32.xlu0 %v3630, 24
    %v3804 = vpop.permute.xlu0 %3803
    %3805 = vrot.lane.b32.xlu0 %v3631, 24
    %v3806 = vpop.permute.xlu0 %3805
    %3807 = vrot.lane.b32.xlu0 %v3632, 24
    %v3808 = vpop.permute.xlu0 %3807
    %3809 = vrot.lane.b32.xlu0 %v3633, 24
    %v3810 = vpop.permute.xlu0 %3809
    %3811 = vrot.lane.b32.xlu0 %v3634, 24
    %v3812 = vpop.permute.xlu0 %3811
    %3813 = vrot.lane.b32.xlu0 %v3635, 24
    %v3814 = vpop.permute.xlu0 %3813
    %3815 = vrot.lane.b32.xlu0 %v3636, 24
    %v3816 = vpop.permute.xlu0 %3815
    %3817 = vrot.lane.b32.xlu0 %v3637, 24
    %v3818 = vpop.permute.xlu0 %3817
    %3819 = vrot.lane.b32.xlu0 %v3638, 24
    %v3820 = vpop.permute.xlu0 %3819
    %3821 = vrot.lane.b32.xlu0 %v3639, 24
    %v3822 = vpop.permute.xlu0 %3821
    %3823 = vrot.lane.b32.xlu0 %v3640, 24
    %v3824 = vpop.permute.xlu0 %3823
    %3825 = vrot.lane.b32.xlu0 %v3641, 24
    %v3826 = vpop.permute.xlu0 %3825
    %3827 = vrot.lane.b32.xlu0 %v3642, 24
    %v3828 = vpop.permute.xlu0 %3827
    %3829 = vrot.lane.b32.xlu0 %v3643, 24
    %v3830 = vpop.permute.xlu0 %3829
    %3831 = vrot.lane.b32.xlu0 %v3644, 24
    %v3832 = vpop.permute.xlu0 %3831
    %3833 = vrot.lane.b32.xlu0 %v3645, 24
    %v3834 = vpop.permute.xlu0 %3833
    %3835 = vrot.lane.b32.xlu0 %v3646, 24
    %v3836 = vpop.permute.xlu0 %3835
    %3837 = vrot.lane.b32.xlu0 %v3647, 24
    %v3838 = vpop.permute.xlu0 %3837
    %3839 = vrot.lane.b32.xlu0 %v3648, 24
    %v3840 = vpop.permute.xlu0 %3839
    %3841 = vrot.lane.b32.xlu0 %v3649, 24
    %v3842 = vpop.permute.xlu0 %3841
    %3843 = vrot.lane.b32.xlu0 %v3650, 24
    %v3844 = vpop.permute.xlu0 %3843
    %3845 = vrot.lane.b32.xlu0 %v3651, 24
    %v3846 = vpop.permute.xlu0 %3845
    %3847 = vrot.lane.b32.xlu0 %v3652, 24
    %v3848 = vpop.permute.xlu0 %3847
    %3849 = vrot.lane.b32.xlu0 %v3653, 24
    %v3850 = vpop.permute.xlu0 %3849
    %3851 = vrot.lane.b32.xlu0 %v3654, 24
    %v3852 = vpop.permute.xlu0 %3851
    %3853 = vrot.lane.b32.xlu0 %v3655, 24
    %v3854 = vpop.permute.xlu0 %3853
    %3855 = vrot.lane.b32.xlu0 %v3656, 24
    %v3856 = vpop.permute.xlu0 %3855
    %3857 = vrot.lane.b32.xlu0 %v3657, 24
    %v3858 = vpop.permute.xlu0 %3857
    %3859 = vrot.lane.b32.xlu0 %v3658, 24
    %v3860 = vpop.permute.xlu0 %3859
    %3861 = vrot.lane.b32.xlu0 %v3659, 24
    %v3862 = vpop.permute.xlu0 %3861
    %3863 = vrot.lane.b32.xlu0 %v3660, 24
    %v3864 = vpop.permute.xlu0 %3863
    %3865 = vrot.lane.b32.xlu0 %v3661, 24
    %v3866 = vpop.permute.xlu0 %3865
    %3867 = vrot.lane.b32.xlu0 %v3662, 24
    %v3868 = vpop.permute.xlu0 %3867
    %3869 = vrot.lane.b32.xlu0 %v3663, 24
    %v3870 = vpop.permute.xlu0 %3869
    %3871 = vrot.lane.b32.xlu0 %v3664, 24
    %v3872 = vpop.permute.xlu0 %3871
    %3873 = vrot.lane.b32.xlu0 %v3665, 24
    %v3874 = vpop.permute.xlu0 %3873
    %3875 = vrot.lane.b32.xlu0 %v3666, 24
    %v3876 = vpop.permute.xlu0 %3875
    %3877 = vrot.lane.b32.xlu0 %v3667, 24
    %v3878 = vpop.permute.xlu0 %3877
    %3879 = vrot.lane.b32.xlu0 %v3668, 24
    %v3880 = vpop.permute.xlu0 %3879
    %3881 = vrot.lane.b32.xlu0 %v3669, 24
    %v3882 = vpop.permute.xlu0 %3881
    %3883 = vrot.lane.b32.xlu0 %v3670, 24
    %v3884 = vpop.permute.xlu0 %3883
    %3885 = vrot.lane.b32.xlu0 %v3671, 24
    %v3886 = vpop.permute.xlu0 %3885
    %3887 = vrot.lane.b32.xlu0 %v3672, 24
    %v3888 = vpop.permute.xlu0 %3887
    %3889 = vrot.lane.b32.xlu0 %v3673, 24
    %v3890 = vpop.permute.xlu0 %3889
    %3891 = vrot.lane.b32.xlu0 %v3674, 24
    %v3892 = vpop.permute.xlu0 %3891
    %3893 = vrot.lane.b32.xlu0 %v3675, 24
    %v3894 = vpop.permute.xlu0 %3893
    %3895 = vrot.lane.b32.xlu0 %v3676, 24
    %v3896 = vpop.permute.xlu0 %3895
    %3897 = vrot.lane.b32.xlu0 %v3677, 24
    %v3898 = vpop.permute.xlu0 %3897
    %3899 = vrot.lane.b32.xlu0 %v3678, 24
    %v3900 = vpop.permute.xlu0 %3899
    %3901 = vrot.lane.b32.xlu0 %v3679, 24
    %v3902 = vpop.permute.xlu0 %3901
    %3903 = vrot.lane.b32.xlu0 %v3680, 24
    %v3904 = vpop.permute.xlu0 %3903
    %3905 = vrot.lane.b32.xlu0 %v3681, 24
    %v3906 = vpop.permute.xlu0 %3905
    %3907 = vrot.lane.b32.xlu0 %v3682, 24
    %v3908 = vpop.permute.xlu0 %3907
    %3909 = vrot.lane.b32.xlu0 %v3683, 24
    %v3910 = vpop.permute.xlu0 %3909
    %3911 = vrot.lane.b32.xlu0 %v3684, 24
    %v3912 = vpop.permute.xlu0 %3911
    %3913 = vrot.lane.b32.xlu0 %v3685, 24
    %v3914 = vpop.permute.xlu0 %3913
    %3915 = vrot.lane.b32.xlu0 %v3686, 24
    %v3916 = vpop.permute.xlu0 %3915
    %3917 = vrot.lane.b32.xlu0 %v3687, 24
    %v3918 = vpop.permute.xlu0 %3917
    %3919 = vrot.lane.b32.xlu0 %v3688, 24
    %v3920 = vpop.permute.xlu0 %3919
    %3921 = vrot.lane.b32.xlu0 %v3689, 24
    %v3922 = vpop.permute.xlu0 %3921
    %3923 = vrot.lane.b32.xlu0 %v3690, 24
    %v3924 = vpop.permute.xlu0 %3923
    %3925 = vrot.lane.b32.xlu0 %v3691, 24
    %v3926 = vpop.permute.xlu0 %3925
    %3927 = vrot.lane.b32.xlu0 %v3692, 24
    %v3928 = vpop.permute.xlu0 %3927
    %3929 = vrot.lane.b32.xlu0 %v3693, 24
    %v3930 = vpop.permute.xlu0 %3929
    %3931 = vrot.lane.b32.xlu0 %v3694, 24
    %v3932 = vpop.permute.xlu0 %3931
    %3933 = vrot.lane.b32.xlu0 %v3695, 24
    %v3934 = vpop.permute.xlu0 %3933
    %3935 = vrot.lane.b32.xlu0 %v3696, 24
    %v3936 = vpop.permute.xlu0 %3935
    %3937 = vrot.lane.b32.xlu0 %v3697, 24
    %v3938 = vpop.permute.xlu0 %3937
    %3939 = vrot.lane.b32.xlu0 %v3698, 24
    %v3940 = vpop.permute.xlu0 %3939
    %3941 = vrot.lane.b32.xlu0 %v3699, 24
    %v3942 = vpop.permute.xlu0 %3941
    %vm4024 = vcmask 220352
    %4025 = vst.msk [vmem:[#allocation2] sm:$0xff] %vm4024, %v3782
    %4026 = vst.msk [vmem:[#allocation2 + $0x8] sm:$0xff] %vm4024, %v3784
    %4027 = vst.msk [vmem:[#allocation2 + $0x10] sm:$0xff] %vm4024, %v3786
    %4028 = vst.msk [vmem:[#allocation2 + $0x18] sm:$0xff] %vm4024, %v3788
    %4029 = vst.msk [vmem:[#allocation2 + $0x20] sm:$0xff] %vm4024, %v3790
    %4030 = vst.msk [vmem:[#allocation2 + $0x28] sm:$0xff] %vm4024, %v3792
    %4031 = vst.msk [vmem:[#allocation2 + $0x30] sm:$0xff] %vm4024, %v3794
    %4032 = vst.msk [vmem:[#allocation2 + $0x38] sm:$0xff] %vm4024, %v3796
    %4033 = vst.msk [vmem:[#allocation2 + $0x40] sm:$0xff] %vm4024, %v3798
    %4034 = vst.msk [vmem:[#allocation2 + $0x48] sm:$0xff] %vm4024, %v3800
    %4035 = vst.msk [vmem:[#allocation2 + $0x50] sm:$0xff] %vm4024, %v3802
    %4036 = vst.msk [vmem:[#allocation2 + $0x58] sm:$0xff] %vm4024, %v3804
    %4037 = vst.msk [vmem:[#allocation2 + $0x60] sm:$0xff] %vm4024, %v3806
    %4038 = vst.msk [vmem:[#allocation2 + $0x68] sm:$0xff] %vm4024, %v3808
    %4039 = vst.msk [vmem:[#allocation2 + $0x70] sm:$0xff] %vm4024, %v3810
    %4040 = vst.msk [vmem:[#allocation2 + $0x78] sm:$0xff] %vm4024, %v3812
    %4041 = vst.msk [vmem:[#allocation2 + $0x80] sm:$0xff] %vm4024, %v3814
    %4042 = vst.msk [vmem:[#allocation2 + $0x88] sm:$0xff] %vm4024, %v3816
    %4043 = vst.msk [vmem:[#allocation2 + $0x90] sm:$0xff] %vm4024, %v3818
    %4044 = vst.msk [vmem:[#allocation2 + $0x98] sm:$0xff] %vm4024, %v3820
    %4045 = vst.msk [vmem:[#allocation2 + $0xa0] sm:$0xff] %vm4024, %v3822
    %4046 = vst.msk [vmem:[#allocation2 + $0xa8] sm:$0xff] %vm4024, %v3824
    %4047 = vst.msk [vmem:[#allocation2 + $0xb0] sm:$0xff] %vm4024, %v3826
    %4048 = vst.msk [vmem:[#allocation2 + $0xb8] sm:$0xff] %vm4024, %v3828
    %4049 = vst.msk [vmem:[#allocation2 + $0xc0] sm:$0xff] %vm4024, %v3830
    %4050 = vst.msk [vmem:[#allocation2 + $0xc8] sm:$0xff] %vm4024, %v3832
    %4051 = vst.msk [vmem:[#allocation2 + $0xd0] sm:$0xff] %vm4024, %v3834
    %4052 = vst.msk [vmem:[#allocation2 + $0xd8] sm:$0xff] %vm4024, %v3836
    %4053 = vst.msk [vmem:[#allocation2 + $0xe0] sm:$0xff] %vm4024, %v3838
    %4054 = vst.msk [vmem:[#allocation2 + $0xe8] sm:$0xff] %vm4024, %v3840
    %4055 = vst.msk [vmem:[#allocation2 + $0xf0] sm:$0xff] %vm4024, %v3842
    %4056 = vst.msk [vmem:[#allocation2 + $0xf8] sm:$0xff] %vm4024, %v3844
    %4057 = vst.msk [vmem:[#allocation2 + $0x100] sm:$0xff] %vm4024, %v3846
    %4058 = vst.msk [vmem:[#allocation2 + $0x108] sm:$0xff] %vm4024, %v3848
    %4059 = vst.msk [vmem:[#allocation2 + $0x110] sm:$0xff] %vm4024, %v3850
    %4060 = vst.msk [vmem:[#allocation2 + $0x118] sm:$0xff] %vm4024, %v3852
    %4061 = vst.msk [vmem:[#allocation2 + $0x120] sm:$0xff] %vm4024, %v3854
    %4062 = vst.msk [vmem:[#allocation2 + $0x128] sm:$0xff] %vm4024, %v3856
    %4063 = vst.msk [vmem:[#allocation2 + $0x130] sm:$0xff] %vm4024, %v3858
    %4064 = vst.msk [vmem:[#allocation2 + $0x138] sm:$0xff] %vm4024, %v3860
    %4065 = vst.msk [vmem:[#allocation2 + $0x140] sm:$0xff] %vm4024, %v3862
    %4066 = vst.msk [vmem:[#allocation2 + $0x148] sm:$0xff] %vm4024, %v3864
    %4067 = vst.msk [vmem:[#allocation2 + $0x150] sm:$0xff] %vm4024, %v3866
    %4068 = vst.msk [vmem:[#allocation2 + $0x158] sm:$0xff] %vm4024, %v3868
    %4069 = vst.msk [vmem:[#allocation2 + $0x160] sm:$0xff] %vm4024, %v3870
    %4070 = vst.msk [vmem:[#allocation2 + $0x168] sm:$0xff] %vm4024, %v3872
    %4071 = vst.msk [vmem:[#allocation2 + $0x170] sm:$0xff] %vm4024, %v3874
    %4072 = vst.msk [vmem:[#allocation2 + $0x178] sm:$0xff] %vm4024, %v3876
    %4073 = vst.msk [vmem:[#allocation2 + $0x180] sm:$0xff] %vm4024, %v3878
    %4074 = vst.msk [vmem:[#allocation2 + $0x188] sm:$0xff] %vm4024, %v3880
    %4075 = vst.msk [vmem:[#allocation2 + $0x190] sm:$0xff] %vm4024, %v3882
    %4076 = vst.msk [vmem:[#allocation2 + $0x198] sm:$0xff] %vm4024, %v3884
    %4077 = vst.msk [vmem:[#allocation2 + $0x1a0] sm:$0xff] %vm4024, %v3886
    %4078 = vst.msk [vmem:[#allocation2 + $0x1a8] sm:$0xff] %vm4024, %v3888
    %4079 = vst.msk [vmem:[#allocation2 + $0x1b0] sm:$0xff] %vm4024, %v3890
    %4080 = vst.msk [vmem:[#allocation2 + $0x1b8] sm:$0xff] %vm4024, %v3892
    %4081 = vst.msk [vmem:[#allocation2 + $0x1c0] sm:$0xff] %vm4024, %v3894
    %4082 = vst.msk [vmem:[#allocation2 + $0x1c8] sm:$0xff] %vm4024, %v3896
    %4083 = vst.msk [vmem:[#allocation2 + $0x1d0] sm:$0xff] %vm4024, %v3898
    %4084 = vst.msk [vmem:[#allocation2 + $0x1d8] sm:$0xff] %vm4024, %v3900
    %4085 = vst.msk [vmem:[#allocation2 + $0x1e0] sm:$0xff] %vm4024, %v3902
    %4086 = vst.msk [vmem:[#allocation2 + $0x1e8] sm:$0xff] %vm4024, %v3904
    %4087 = vst.msk [vmem:[#allocation2 + $0x1f0] sm:$0xff] %vm4024, %v3906
    %4088 = vst.msk [vmem:[#allocation2 + $0x1f8] sm:$0xff] %vm4024, %v3908
    %4089 = vst.msk [vmem:[#allocation2 + $0x200] sm:$0xff] %vm4024, %v3910
    %4090 = vst.msk [vmem:[#allocation2 + $0x208] sm:$0xff] %vm4024, %v3912
    %4091 = vst.msk [vmem:[#allocation2 + $0x210] sm:$0xff] %vm4024, %v3914
    %4092 = vst.msk [vmem:[#allocation2 + $0x218] sm:$0xff] %vm4024, %v3916
    %4093 = vst.msk [vmem:[#allocation2 + $0x220] sm:$0xff] %vm4024, %v3918
    %4094 = vst.msk [vmem:[#allocation2 + $0x228] sm:$0xff] %vm4024, %v3920
    %4095 = vst.msk [vmem:[#allocation2 + $0x230] sm:$0xff] %vm4024, %v3922
    %4096 = vst.msk [vmem:[#allocation2 + $0x238] sm:$0xff] %vm4024, %v3924
    %4097 = vst.msk [vmem:[#allocation2 + $0x240] sm:$0xff] %vm4024, %v3926
    %4098 = vst.msk [vmem:[#allocation2 + $0x248] sm:$0xff] %vm4024, %v3928
    %4099 = vst.msk [vmem:[#allocation2 + $0x250] sm:$0xff] %vm4024, %v3930
    %4100 = vst.msk [vmem:[#allocation2 + $0x258] sm:$0xff] %vm4024, %v3932
    %4101 = vst.msk [vmem:[#allocation2 + $0x260] sm:$0xff] %vm4024, %v3934
    %4102 = vst.msk [vmem:[#allocation2 + $0x268] sm:$0xff] %vm4024, %v3936
    %4103 = vst.msk [vmem:[#allocation2 + $0x270] sm:$0xff] %vm4024, %v3938
    %4104 = vst.msk [vmem:[#allocation2 + $0x278] sm:$0xff] %vm4024, %v3940
    %4105 = vst.msk [vmem:[#allocation2 + $0x280] sm:$0xff] %vm4024, %v3942
    %v4106 = vld [vmem:[#allocation2] sm:$0xff]
    %v4107 = vld [vmem:[#allocation2 + $0x8] sm:$0xff]
    %v4108 = vld [vmem:[#allocation2 + $0x10] sm:$0xff]
    %v4109 = vld [vmem:[#allocation2 + $0x18] sm:$0xff]
    %v4110 = vld [vmem:[#allocation2 + $0x20] sm:$0xff]
    %v4111 = vld [vmem:[#allocation2 + $0x28] sm:$0xff]
    %v4112 = vld [vmem:[#allocation2 + $0x30] sm:$0xff]
    %v4113 = vld [vmem:[#allocation2 + $0x38] sm:$0xff]
    %v4114 = vld [vmem:[#allocation2 + $0x40] sm:$0xff]
    %v4115 = vld [vmem:[#allocation2 + $0x48] sm:$0xff]
    %v4116 = vld [vmem:[#allocation2 + $0x50] sm:$0xff]
    %v4117 = vld [vmem:[#allocation2 + $0x58] sm:$0xff]
    %v4118 = vld [vmem:[#allocation2 + $0x60] sm:$0xff]
    %v4119 = vld [vmem:[#allocation2 + $0x68] sm:$0xff]
    %v4120 = vld [vmem:[#allocation2 + $0x70] sm:$0xff]
    %v4121 = vld [vmem:[#allocation2 + $0x78] sm:$0xff]
    %v4122 = vld [vmem:[#allocation2 + $0x80] sm:$0xff]
    %v4123 = vld [vmem:[#allocation2 + $0x88] sm:$0xff]
    %v4124 = vld [vmem:[#allocation2 + $0x90] sm:$0xff]
    %v4125 = vld [vmem:[#allocation2 + $0x98] sm:$0xff]
    %v4126 = vld [vmem:[#allocation2 + $0xa0] sm:$0xff]
    %v4127 = vld [vmem:[#allocation2 + $0xa8] sm:$0xff]
    %v4128 = vld [vmem:[#allocation2 + $0xb0] sm:$0xff]
    %v4129 = vld [vmem:[#allocation2 + $0xb8] sm:$0xff]
    %v4130 = vld [vmem:[#allocation2 + $0xc0] sm:$0xff]
    %v4131 = vld [vmem:[#allocation2 + $0xc8] sm:$0xff]
    %v4132 = vld [vmem:[#allocation2 + $0xd0] sm:$0xff]
    %v4133 = vld [vmem:[#allocation2 + $0xd8] sm:$0xff]
    %v4134 = vld [vmem:[#allocation2 + $0xe0] sm:$0xff]
    %v4135 = vld [vmem:[#allocation2 + $0xe8] sm:$0xff]
    %v4136 = vld [vmem:[#allocation2 + $0xf0] sm:$0xff]
    %v4137 = vld [vmem:[#allocation2 + $0xf8] sm:$0xff]
    %v4138 = vld [vmem:[#allocation2 + $0x100] sm:$0xff]
    %v4139 = vld [vmem:[#allocation2 + $0x108] sm:$0xff]
    %v4140 = vld [vmem:[#allocation2 + $0x110] sm:$0xff]
    %v4141 = vld [vmem:[#allocation2 + $0x118] sm:$0xff]
    %v4142 = vld [vmem:[#allocation2 + $0x120] sm:$0xff]
    %v4143 = vld [vmem:[#allocation2 + $0x128] sm:$0xff]
    %v4144 = vld [vmem:[#allocation2 + $0x130] sm:$0xff]
    %v4145 = vld [vmem:[#allocation2 + $0x138] sm:$0xff]
    %v4146 = vld [vmem:[#allocation2 + $0x140] sm:$0xff]
    %v4147 = vld [vmem:[#allocation2 + $0x148] sm:$0xff]
    %v4148 = vld [vmem:[#allocation2 + $0x150] sm:$0xff]
    %v4149 = vld [vmem:[#allocation2 + $0x158] sm:$0xff]
    %v4150 = vld [vmem:[#allocation2 + $0x160] sm:$0xff]
    %v4151 = vld [vmem:[#allocation2 + $0x168] sm:$0xff]
    %v4152 = vld [vmem:[#allocation2 + $0x170] sm:$0xff]
    %v4153 = vld [vmem:[#allocation2 + $0x178] sm:$0xff]
    %v4154 = vld [vmem:[#allocation2 + $0x180] sm:$0xff]
    %v4155 = vld [vmem:[#allocation2 + $0x188] sm:$0xff]
    %v4156 = vld [vmem:[#allocation2 + $0x190] sm:$0xff]
    %v4157 = vld [vmem:[#allocation2 + $0x198] sm:$0xff]
    %v4158 = vld [vmem:[#allocation2 + $0x1a0] sm:$0xff]
    %v4159 = vld [vmem:[#allocation2 + $0x1a8] sm:$0xff]
    %v4160 = vld [vmem:[#allocation2 + $0x1b0] sm:$0xff]
    %v4161 = vld [vmem:[#allocation2 + $0x1b8] sm:$0xff]
    %v4162 = vld [vmem:[#allocation2 + $0x1c0] sm:$0xff]
    %v4163 = vld [vmem:[#allocation2 + $0x1c8] sm:$0xff]
    %v4164 = vld [vmem:[#allocation2 + $0x1d0] sm:$0xff]
    %v4165 = vld [vmem:[#allocation2 + $0x1d8] sm:$0xff]
    %v4166 = vld [vmem:[#allocation2 + $0x1e0] sm:$0xff]
    %v4167 = vld [vmem:[#allocation2 + $0x1e8] sm:$0xff]
    %v4168 = vld [vmem:[#allocation2 + $0x1f0] sm:$0xff]
    %v4169 = vld [vmem:[#allocation2 + $0x1f8] sm:$0xff]
    %v4170 = vld [vmem:[#allocation2 + $0x200] sm:$0xff]
    %v4171 = vld [vmem:[#allocation2 + $0x208] sm:$0xff]
    %v4172 = vld [vmem:[#allocation2 + $0x210] sm:$0xff]
    %v4173 = vld [vmem:[#allocation2 + $0x218] sm:$0xff]
    %v4174 = vld [vmem:[#allocation2 + $0x220] sm:$0xff]
    %v4175 = vld [vmem:[#allocation2 + $0x228] sm:$0xff]
    %v4176 = vld [vmem:[#allocation2 + $0x230] sm:$0xff]
    %v4177 = vld [vmem:[#allocation2 + $0x238] sm:$0xff]
    %v4178 = vld [vmem:[#allocation2 + $0x240] sm:$0xff]
    %v4179 = vld [vmem:[#allocation2 + $0x248] sm:$0xff]
    %v4180 = vld [vmem:[#allocation2 + $0x250] sm:$0xff]
    %v4181 = vld [vmem:[#allocation2 + $0x258] sm:$0xff]
    %v4182 = vld [vmem:[#allocation2 + $0x260] sm:$0xff]
    %v4183 = vld [vmem:[#allocation2 + $0x268] sm:$0xff]
    %v4184 = vld [vmem:[#allocation2 + $0x270] sm:$0xff]
    %v4185 = vld [vmem:[#allocation2 + $0x278] sm:$0xff]
    %v4186 = vld [vmem:[#allocation2 + $0x280] sm:$0xff]
    %v4187 = vld [vmem:[%s2] sm:$0xff]
    %v4188 = vld [vmem:[%s2 + $0x8] sm:$0xff]
    %v4189 = vld [vmem:[%s2 + $0x10] sm:$0xff]
    %v4190 = vld [vmem:[%s2 + $0x18] sm:$0x7]
    %v4191 = vld [vmem:[%s3] sm:$0x1]
    %v4193 = vlaneseq
    %v4194 = vshrl.u32 %v4193, 7
    %v4195 = vsub.s32 0, %v4194
    %v4196 = vrot.slane %v4191, %v4195
    %vm4198 = vcmask 220160
    %v4200 = vsel %vm4198, %v4106, 0
    %v4203 = vsel %vm4198, %v4107, 0
    %v4206 = vsel %vm4198, %v4108, 0
    %v4209 = vsel %vm4198, %v4109, 0
    %v4212 = vsel %vm4198, %v4110, 0
    %v4215 = vsel %vm4198, %v4111, 0
    %v4218 = vsel %vm4198, %v4112, 0
    %v4221 = vsel %vm4198, %v4113, 0
    %v4224 = vsel %vm4198, %v4114, 0
    %v4227 = vsel %vm4198, %v4115, 0
    %v4230 = vsel %vm4198, %v4116, 0
    %v4233 = vsel %vm4198, %v4117, 0
    %v4236 = vsel %vm4198, %v4118, 0
    %v4239 = vsel %vm4198, %v4119, 0
    %v4242 = vsel %vm4198, %v4120, 0
    %v4245 = vsel %vm4198, %v4121, 0
    %v4248 = vsel %vm4198, %v4122, 0
    %v4251 = vsel %vm4198, %v4123, 0
    %v4254 = vsel %vm4198, %v4124, 0
    %v4257 = vsel %vm4198, %v4125, 0
    %v4260 = vsel %vm4198, %v4126, 0
    %v4263 = vsel %vm4198, %v4127, 0
    %v4266 = vsel %vm4198, %v4128, 0
    %v4269 = vsel %vm4198, %v4129, 0
    %v4272 = vsel %vm4198, %v4130, 0
    %v4275 = vsel %vm4198, %v4131, 0
    %v4278 = vsel %vm4198, %v4132, 0
    %v4281 = vsel %vm4198, %v4133, 0
    %v4284 = vsel %vm4198, %v4134, 0
    %v4287 = vsel %vm4198, %v4135, 0
    %v4290 = vsel %vm4198, %v4136, 0
    %v4293 = vsel %vm4198, %v4137, 0
    %v4296 = vsel %vm4198, %v4138, 0
    %v4299 = vsel %vm4198, %v4139, 0
    %v4302 = vsel %vm4198, %v4140, 0
    %v4305 = vsel %vm4198, %v4141, 0
    %v4308 = vsel %vm4198, %v4142, 0
    %v4311 = vsel %vm4198, %v4143, 0
    %v4314 = vsel %vm4198, %v4144, 0
    %v4317 = vsel %vm4198, %v4145, 0
    %v4320 = vsel %vm4198, %v4146, 0
    %v4323 = vsel %vm4198, %v4147, 0
    %v4326 = vsel %vm4198, %v4148, 0
    %v4329 = vsel %vm4198, %v4149, 0
    %v4332 = vsel %vm4198, %v4150, 0
    %v4335 = vsel %vm4198, %v4151, 0
    %v4338 = vsel %vm4198, %v4152, 0
    %v4341 = vsel %vm4198, %v4153, 0
    %v4344 = vsel %vm4198, %v4154, 0
    %v4347 = vsel %vm4198, %v4155, 0
    %v4350 = vsel %vm4198, %v4156, 0
    %v4353 = vsel %vm4198, %v4157, 0
    %v4356 = vsel %vm4198, %v4158, 0
    %v4359 = vsel %vm4198, %v4159, 0
    %v4362 = vsel %vm4198, %v4160, 0
    %v4365 = vsel %vm4198, %v4161, 0
    %v4368 = vsel %vm4198, %v4162, 0
    %v4371 = vsel %vm4198, %v4163, 0
    %v4374 = vsel %vm4198, %v4164, 0
    %v4377 = vsel %vm4198, %v4165, 0
    %v4380 = vsel %vm4198, %v4166, 0
    %v4383 = vsel %vm4198, %v4167, 0
    %v4386 = vsel %vm4198, %v4168, 0
    %v4389 = vsel %vm4198, %v4169, 0
    %v4392 = vsel %vm4198, %v4170, 0
    %v4395 = vsel %vm4198, %v4171, 0
    %v4398 = vsel %vm4198, %v4172, 0
    %v4401 = vsel %vm4198, %v4173, 0
    %v4404 = vsel %vm4198, %v4174, 0
    %v4407 = vsel %vm4198, %v4175, 0
    %v4410 = vsel %vm4198, %v4176, 0
    %v4413 = vsel %vm4198, %v4177, 0
    %v4416 = vsel %vm4198, %v4178, 0
    %v4419 = vsel %vm4198, %v4179, 0
    %v4422 = vsel %vm4198, %v4180, 0
    %v4425 = vsel %vm4198, %v4181, 0
    %v4428 = vsel %vm4198, %v4182, 0
    %v4431 = vsel %vm4198, %v4183, 0
    %v4434 = vsel %vm4198, %v4184, 0
    %v4437 = vsel %vm4198, %v4185, 0
    %v4440 = vsel %vm4198, %v4186, 0
    %vm4442 = vcmask 1042432
    %v4444 = vsel %vm4442, %v4190, 0
    %4446 = vmatprep.subr.mxu0 0.0
    %4447 = vmatpush1.msra.mxu0 0.0
    %4448 = vmatprep.subr.mxu0 0.0
    %4449 = vmatpush1.msra.mxu0 0.0
    %4450 = vmatprep.subr.mxu0 0.0
    %4451 = vmatpush1.msra.mxu0 0.0
    %4452 = vmatprep.subr.mxu0 0.0
    %4453 = vmatpush1.msra.mxu0 0.0
    %4454 = vmatprep.subr.mxu0 0.0
    %4455 = vmatpush1.msra.mxu0 0.0
    %4456 = vmatprep.subr.mxu0 0.0
    %4457 = vmatpush1.msra.mxu0 0.0
    %4458 = vmatprep.subr.mxu0 0.0
    %4459 = vmatpush1.msra.mxu0 0.0
    %4460 = vmatprep.subr.mxu0 0.0
    %4461 = vmatpush1.msra.mxu0 0.0
    %4462 = vmatprep.subr.mxu0 0.0
    %4463 = vmatpush1.msra.mxu0 0.0
    %4464 = vmatprep.subr.mxu0 0.0
    %4465 = vmatpush1.msra.mxu0 0.0
    %4466 = vmatprep.subr.mxu0 0.0
    %4467 = vmatpush1.msra.mxu0 0.0
    %4468 = vmatprep.subr.mxu0 0.0
    %4469 = vmatpush1.msra.mxu0 0.0
    %4470 = vmatprep.subr.mxu0 0.0
    %4471 = vmatpush1.msra.mxu0 %v4444
    %4472 = vmatprep.subr.mxu0 0.0
    %4473 = vmatpush1.msra.mxu0 %v4189
    %4474 = vmatprep.subr.mxu0 0.0
    %4475 = vmatpush1.msra.mxu0 %v4188
    %4476 = vmatprep.subr.mxu0 0.0
    %4477 = vmatpush1.msra.mxu0 %v4187
    %4478 = vmatprep.subr.mxu0 0.0
    %4479 = vmatpush2.msra.mxu0 0.0
    %4480 = vmatprep.subr.mxu0 0.0
    %4481 = vmatpush2.msra.mxu0 0.0
    %4482 = vmatprep.subr.mxu0 0.0
    %4483 = vmatpush2.msra.mxu0 0.0
    %4484 = vmatprep.subr.mxu0 0.0
    %4485 = vmatpush2.msra.mxu0 0.0
    %4486 = vmatprep.subr.mxu0 0.0
    %4487 = vmatpush2.msra.mxu0 0.0
    %4488 = vmatprep.subr.mxu0 0.0
    %4489 = vmatpush2.msra.mxu0 0.0
    %4490 = vmatprep.subr.mxu0 0.0
    %4491 = vmatpush2.msra.mxu0 0.0
    %4492 = vmatprep.subr.mxu0 0.0
    %4493 = vmatpush2.msra.mxu0 0.0
    %4494 = vmatprep.subr.mxu0 0.0
    %4495 = vmatpush2.msra.mxu0 0.0
    %4496 = vmatprep.subr.mxu0 0.0
    %4497 = vmatpush2.msra.mxu0 0.0
    %4498 = vmatprep.subr.mxu0 0.0
    %4499 = vmatpush2.msra.mxu0 0.0
    %4500 = vmatprep.subr.mxu0 0.0
    %4501 = vmatpush2.msra.mxu0 0.0
    %4502 = vmatprep.subr.mxu0 0.0
    %4503 = vmatpush2.msra.mxu0 0.0
    %4504 = vmatprep.subr.mxu0 0.0
    %4505 = vmatpush2.msra.mxu0 0.0
    %4506 = vmatprep.subr.mxu0 0.0
    %4507 = vmatpush2.msra.mxu0 0.0
    %4508 = vmatprep.subr.mxu0 0.0
    %4509 = vmatpush2.msra.mxu0 0.0
    %4510 = vmatprep.mubr.f32.mxu0 0.0
    %4511 = vmatmul.mubr.f32.gmra.mxu0 %v4200
    %v4512 = vpop.f32.mrf.mxu0
    %v4513 = vadd.f32 %v4196, %v4512
    %v4514 = vpop.f32.mrf.mxu0
    %4515 = vmatprep.mubr.f32.mxu0 0.0
    %4516 = vmatmul.mubr.f32.gmra.mxu0 %v4203
    %v4517 = vpop.f32.mrf.mxu0
    %v4518 = vadd.f32 %v4196, %v4517
    %v4519 = vpop.f32.mrf.mxu0
    %4520 = vmatprep.mubr.f32.mxu0 0.0
    %4521 = vmatmul.mubr.f32.gmra.mxu0 %v4206
    %v4522 = vpop.f32.mrf.mxu0
    %v4523 = vadd.f32 %v4196, %v4522
    %v4524 = vpop.f32.mrf.mxu0
    %4525 = vmatprep.mubr.f32.mxu0 0.0
    %4526 = vmatmul.mubr.f32.gmra.mxu0 %v4209
    %v4527 = vpop.f32.mrf.mxu0
    %v4528 = vadd.f32 %v4196, %v4527
    %v4529 = vpop.f32.mrf.mxu0
    %4530 = vmatprep.mubr.f32.mxu0 0.0
    %4531 = vmatmul.mubr.f32.gmra.mxu0 %v4212
    %v4532 = vpop.f32.mrf.mxu0
    %v4533 = vadd.f32 %v4196, %v4532
    %v4534 = vpop.f32.mrf.mxu0
    %4535 = vmatprep.mubr.f32.mxu0 0.0
    %4536 = vmatmul.mubr.f32.gmra.mxu0 %v4215
    %v4537 = vpop.f32.mrf.mxu0
    %v4538 = vadd.f32 %v4196, %v4537
    %v4539 = vpop.f32.mrf.mxu0
    %4540 = vmatprep.mubr.f32.mxu0 0.0
    %4541 = vmatmul.mubr.f32.gmra.mxu0 %v4218
    %v4542 = vpop.f32.mrf.mxu0
    %v4543 = vadd.f32 %v4196, %v4542
    %v4544 = vpop.f32.mrf.mxu0
    %4545 = vmatprep.mubr.f32.mxu0 0.0
    %4546 = vmatmul.mubr.f32.gmra.mxu0 %v4221
    %v4547 = vpop.f32.mrf.mxu0
    %v4548 = vadd.f32 %v4196, %v4547
    %v4549 = vpop.f32.mrf.mxu0
    %4550 = vmatprep.mubr.f32.mxu0 0.0
    %4551 = vmatmul.mubr.f32.gmra.mxu0 %v4224
    %v4552 = vpop.f32.mrf.mxu0
    %v4553 = vadd.f32 %v4196, %v4552
    %v4554 = vpop.f32.mrf.mxu0
    %4555 = vmatprep.mubr.f32.mxu0 0.0
    %4556 = vmatmul.mubr.f32.gmra.mxu0 %v4227
    %v4557 = vpop.f32.mrf.mxu0
    %v4558 = vadd.f32 %v4196, %v4557
    %v4559 = vpop.f32.mrf.mxu0
    %4560 = vmatprep.mubr.f32.mxu0 0.0
    %4561 = vmatmul.mubr.f32.gmra.mxu0 %v4230
    %v4562 = vpop.f32.mrf.mxu0
    %v4563 = vadd.f32 %v4196, %v4562
    %v4564 = vpop.f32.mrf.mxu0
    %4565 = vmatprep.mubr.f32.mxu0 0.0
    %4566 = vmatmul.mubr.f32.gmra.mxu0 %v4233
    %v4567 = vpop.f32.mrf.mxu0
    %v4568 = vadd.f32 %v4196, %v4567
    %v4569 = vpop.f32.mrf.mxu0
    %4570 = vmatprep.mubr.f32.mxu0 0.0
    %4571 = vmatmul.mubr.f32.gmra.mxu0 %v4236
    %v4572 = vpop.f32.mrf.mxu0
    %v4573 = vadd.f32 %v4196, %v4572
    %v4574 = vpop.f32.mrf.mxu0
    %4575 = vmatprep.mubr.f32.mxu0 0.0
    %4576 = vmatmul.mubr.f32.gmra.mxu0 %v4239
    %v4577 = vpop.f32.mrf.mxu0
    %v4578 = vadd.f32 %v4196, %v4577
    %v4579 = vpop.f32.mrf.mxu0
    %4580 = vmatprep.mubr.f32.mxu0 0.0
    %4581 = vmatmul.mubr.f32.gmra.mxu0 %v4242
    %v4582 = vpop.f32.mrf.mxu0
    %v4583 = vadd.f32 %v4196, %v4582
    %v4584 = vpop.f32.mrf.mxu0
    %4585 = vmatprep.mubr.f32.mxu0 0.0
    %4586 = vmatmul.mubr.f32.gmra.mxu0 %v4245
    %v4587 = vpop.f32.mrf.mxu0
    %v4588 = vadd.f32 %v4196, %v4587
    %v4589 = vpop.f32.mrf.mxu0
    %4590 = vmatprep.mubr.f32.mxu0 0.0
    %4591 = vmatmul.mubr.f32.gmra.mxu0 %v4248
    %v4592 = vpop.f32.mrf.mxu0
    %v4593 = vadd.f32 %v4196, %v4592
    %v4594 = vpop.f32.mrf.mxu0
    %4595 = vmatprep.mubr.f32.mxu0 0.0
    %4596 = vmatmul.mubr.f32.gmra.mxu0 %v4251
    %v4597 = vpop.f32.mrf.mxu0
    %v4598 = vadd.f32 %v4196, %v4597
    %v4599 = vpop.f32.mrf.mxu0
    %4600 = vmatprep.mubr.f32.mxu0 0.0
    %4601 = vmatmul.mubr.f32.gmra.mxu0 %v4254
    %v4602 = vpop.f32.mrf.mxu0
    %v4603 = vadd.f32 %v4196, %v4602
    %v4604 = vpop.f32.mrf.mxu0
    %4605 = vmatprep.mubr.f32.mxu0 0.0
    %4606 = vmatmul.mubr.f32.gmra.mxu0 %v4257
    %v4607 = vpop.f32.mrf.mxu0
    %v4608 = vadd.f32 %v4196, %v4607
    %v4609 = vpop.f32.mrf.mxu0
    %4610 = vmatprep.mubr.f32.mxu0 0.0
    %4611 = vmatmul.mubr.f32.gmra.mxu0 %v4260
    %v4612 = vpop.f32.mrf.mxu0
    %v4613 = vadd.f32 %v4196, %v4612
    %v4614 = vpop.f32.mrf.mxu0
    %4615 = vmatprep.mubr.f32.mxu0 0.0
    %4616 = vmatmul.mubr.f32.gmra.mxu0 %v4263
    %v4617 = vpop.f32.mrf.mxu0
    %v4618 = vadd.f32 %v4196, %v4617
    %v4619 = vpop.f32.mrf.mxu0
    %4620 = vmatprep.mubr.f32.mxu0 0.0
    %4621 = vmatmul.mubr.f32.gmra.mxu0 %v4266
    %v4622 = vpop.f32.mrf.mxu0
    %v4623 = vadd.f32 %v4196, %v4622
    %v4624 = vpop.f32.mrf.mxu0
    %4625 = vmatprep.mubr.f32.mxu0 0.0
    %4626 = vmatmul.mubr.f32.gmra.mxu0 %v4269
    %v4627 = vpop.f32.mrf.mxu0
    %v4628 = vadd.f32 %v4196, %v4627
    %v4629 = vpop.f32.mrf.mxu0
    %4630 = vmatprep.mubr.f32.mxu0 0.0
    %4631 = vmatmul.mubr.f32.gmra.mxu0 %v4272
    %v4632 = vpop.f32.mrf.mxu0
    %v4633 = vadd.f32 %v4196, %v4632
    %v4634 = vpop.f32.mrf.mxu0
    %4635 = vmatprep.mubr.f32.mxu0 0.0
    %4636 = vmatmul.mubr.f32.gmra.mxu0 %v4275
    %v4637 = vpop.f32.mrf.mxu0
    %v4638 = vadd.f32 %v4196, %v4637
    %v4639 = vpop.f32.mrf.mxu0
    %4640 = vmatprep.mubr.f32.mxu0 0.0
    %4641 = vmatmul.mubr.f32.gmra.mxu0 %v4278
    %v4642 = vpop.f32.mrf.mxu0
    %v4643 = vadd.f32 %v4196, %v4642
    %v4644 = vpop.f32.mrf.mxu0
    %4645 = vmatprep.mubr.f32.mxu0 0.0
    %4646 = vmatmul.mubr.f32.gmra.mxu0 %v4281
    %v4647 = vpop.f32.mrf.mxu0
    %v4648 = vadd.f32 %v4196, %v4647
    %v4649 = vpop.f32.mrf.mxu0
    %4650 = vmatprep.mubr.f32.mxu0 0.0
    %4651 = vmatmul.mubr.f32.gmra.mxu0 %v4284
    %v4652 = vpop.f32.mrf.mxu0
    %v4653 = vadd.f32 %v4196, %v4652
    %v4654 = vpop.f32.mrf.mxu0
    %4655 = vmatprep.mubr.f32.mxu0 0.0
    %4656 = vmatmul.mubr.f32.gmra.mxu0 %v4287
    %v4657 = vpop.f32.mrf.mxu0
    %v4658 = vadd.f32 %v4196, %v4657
    %v4659 = vpop.f32.mrf.mxu0
    %4660 = vmatprep.mubr.f32.mxu0 0.0
    %4661 = vmatmul.mubr.f32.gmra.mxu0 %v4290
    %v4662 = vpop.f32.mrf.mxu0
    %v4663 = vadd.f32 %v4196, %v4662
    %v4664 = vpop.f32.mrf.mxu0
    %4665 = vmatprep.mubr.f32.mxu0 0.0
    %4666 = vmatmul.mubr.f32.gmra.mxu0 %v4293
    %v4667 = vpop.f32.mrf.mxu0
    %v4668 = vadd.f32 %v4196, %v4667
    %v4669 = vpop.f32.mrf.mxu0
    %4670 = vmatprep.mubr.f32.mxu0 0.0
    %4671 = vmatmul.mubr.f32.gmra.mxu0 %v4296
    %v4672 = vpop.f32.mrf.mxu0
    %v4673 = vadd.f32 %v4196, %v4672
    %v4674 = vpop.f32.mrf.mxu0
    %4675 = vmatprep.mubr.f32.mxu0 0.0
    %4676 = vmatmul.mubr.f32.gmra.mxu0 %v4299
    %v4677 = vpop.f32.mrf.mxu0
    %v4678 = vadd.f32 %v4196, %v4677
    %v4679 = vpop.f32.mrf.mxu0
    %4680 = vmatprep.mubr.f32.mxu0 0.0
    %4681 = vmatmul.mubr.f32.gmra.mxu0 %v4302
    %v4682 = vpop.f32.mrf.mxu0
    %v4683 = vadd.f32 %v4196, %v4682
    %v4684 = vpop.f32.mrf.mxu0
    %4685 = vmatprep.mubr.f32.mxu0 0.0
    %4686 = vmatmul.mubr.f32.gmra.mxu0 %v4305
    %v4687 = vpop.f32.mrf.mxu0
    %v4688 = vadd.f32 %v4196, %v4687
    %v4689 = vpop.f32.mrf.mxu0
    %4690 = vmatprep.mubr.f32.mxu0 0.0
    %4691 = vmatmul.mubr.f32.gmra.mxu0 %v4308
    %v4692 = vpop.f32.mrf.mxu0
    %v4693 = vadd.f32 %v4196, %v4692
    %v4694 = vpop.f32.mrf.mxu0
    %4695 = vmatprep.mubr.f32.mxu0 0.0
    %4696 = vmatmul.mubr.f32.gmra.mxu0 %v4311
    %v4697 = vpop.f32.mrf.mxu0
    %v4698 = vadd.f32 %v4196, %v4697
    %v4699 = vpop.f32.mrf.mxu0
    %4700 = vmatprep.mubr.f32.mxu0 0.0
    %4701 = vmatmul.mubr.f32.gmra.mxu0 %v4314
    %v4702 = vpop.f32.mrf.mxu0
    %v4703 = vadd.f32 %v4196, %v4702
    %v4704 = vpop.f32.mrf.mxu0
    %4705 = vmatprep.mubr.f32.mxu0 0.0
    %4706 = vmatmul.mubr.f32.gmra.mxu0 %v4317
    %v4707 = vpop.f32.mrf.mxu0
    %v4708 = vadd.f32 %v4196, %v4707
    %v4709 = vpop.f32.mrf.mxu0
    %4710 = vmatprep.mubr.f32.mxu0 0.0
    %4711 = vmatmul.mubr.f32.gmra.mxu0 %v4320
    %v4712 = vpop.f32.mrf.mxu0
    %v4713 = vadd.f32 %v4196, %v4712
    %v4714 = vpop.f32.mrf.mxu0
    %4715 = vmatprep.mubr.f32.mxu0 0.0
    %4716 = vmatmul.mubr.f32.gmra.mxu0 %v4323
    %v4717 = vpop.f32.mrf.mxu0
    %v4718 = vadd.f32 %v4196, %v4717
    %v4719 = vpop.f32.mrf.mxu0
    %4720 = vmatprep.mubr.f32.mxu0 0.0
    %4721 = vmatmul.mubr.f32.gmra.mxu0 %v4326
    %v4722 = vpop.f32.mrf.mxu0
    %v4723 = vadd.f32 %v4196, %v4722
    %v4724 = vpop.f32.mrf.mxu0
    %4725 = vmatprep.mubr.f32.mxu0 0.0
    %4726 = vmatmul.mubr.f32.gmra.mxu0 %v4329
    %v4727 = vpop.f32.mrf.mxu0
    %v4728 = vadd.f32 %v4196, %v4727
    %v4729 = vpop.f32.mrf.mxu0
    %4730 = vmatprep.mubr.f32.mxu0 0.0
    %4731 = vmatmul.mubr.f32.gmra.mxu0 %v4332
    %v4732 = vpop.f32.mrf.mxu0
    %v4733 = vadd.f32 %v4196, %v4732
    %v4734 = vpop.f32.mrf.mxu0
    %4735 = vmatprep.mubr.f32.mxu0 0.0
    %4736 = vmatmul.mubr.f32.gmra.mxu0 %v4335
    %v4737 = vpop.f32.mrf.mxu0
    %v4738 = vadd.f32 %v4196, %v4737
    %v4739 = vpop.f32.mrf.mxu0
    %4740 = vmatprep.mubr.f32.mxu0 0.0
    %4741 = vmatmul.mubr.f32.gmra.mxu0 %v4338
    %v4742 = vpop.f32.mrf.mxu0
    %v4743 = vadd.f32 %v4196, %v4742
    %v4744 = vpop.f32.mrf.mxu0
    %4745 = vmatprep.mubr.f32.mxu0 0.0
    %4746 = vmatmul.mubr.f32.gmra.mxu0 %v4341
    %v4747 = vpop.f32.mrf.mxu0
    %v4748 = vadd.f32 %v4196, %v4747
    %v4749 = vpop.f32.mrf.mxu0
    %4750 = vmatprep.mubr.f32.mxu0 0.0
    %4751 = vmatmul.mubr.f32.gmra.mxu0 %v4344
    %v4752 = vpop.f32.mrf.mxu0
    %v4753 = vadd.f32 %v4196, %v4752
    %v4754 = vpop.f32.mrf.mxu0
    %4755 = vmatprep.mubr.f32.mxu0 0.0
    %4756 = vmatmul.mubr.f32.gmra.mxu0 %v4347
    %v4757 = vpop.f32.mrf.mxu0
    %v4758 = vadd.f32 %v4196, %v4757
    %v4759 = vpop.f32.mrf.mxu0
    %4760 = vmatprep.mubr.f32.mxu0 0.0
    %4761 = vmatmul.mubr.f32.gmra.mxu0 %v4350
    %v4762 = vpop.f32.mrf.mxu0
    %v4763 = vadd.f32 %v4196, %v4762
    %v4764 = vpop.f32.mrf.mxu0
    %4765 = vmatprep.mubr.f32.mxu0 0.0
    %4766 = vmatmul.mubr.f32.gmra.mxu0 %v4353
    %v4767 = vpop.f32.mrf.mxu0
    %v4768 = vadd.f32 %v4196, %v4767
    %v4769 = vpop.f32.mrf.mxu0
    %4770 = vmatprep.mubr.f32.mxu0 0.0
    %4771 = vmatmul.mubr.f32.gmra.mxu0 %v4356
    %v4772 = vpop.f32.mrf.mxu0
    %v4773 = vadd.f32 %v4196, %v4772
    %v4774 = vpop.f32.mrf.mxu0
    %4775 = vmatprep.mubr.f32.mxu0 0.0
    %4776 = vmatmul.mubr.f32.gmra.mxu0 %v4359
    %v4777 = vpop.f32.mrf.mxu0
    %v4778 = vadd.f32 %v4196, %v4777
    %v4779 = vpop.f32.mrf.mxu0
    %4780 = vmatprep.mubr.f32.mxu0 0.0
    %4781 = vmatmul.mubr.f32.gmra.mxu0 %v4362
    %v4782 = vpop.f32.mrf.mxu0
    %v4783 = vadd.f32 %v4196, %v4782
    %v4784 = vpop.f32.mrf.mxu0
    %4785 = vmatprep.mubr.f32.mxu0 0.0
    %4786 = vmatmul.mubr.f32.gmra.mxu0 %v4365
    %v4787 = vpop.f32.mrf.mxu0
    %v4788 = vadd.f32 %v4196, %v4787
    %v4789 = vpop.f32.mrf.mxu0
    %4790 = vmatprep.mubr.f32.mxu0 0.0
    %4791 = vmatmul.mubr.f32.gmra.mxu0 %v4368
    %v4792 = vpop.f32.mrf.mxu0
    %v4793 = vadd.f32 %v4196, %v4792
    %v4794 = vpop.f32.mrf.mxu0
    %4795 = vmatprep.mubr.f32.mxu0 0.0
    %4796 = vmatmul.mubr.f32.gmra.mxu0 %v4371
    %v4797 = vpop.f32.mrf.mxu0
    %v4798 = vadd.f32 %v4196, %v4797
    %v4799 = vpop.f32.mrf.mxu0
    %4800 = vmatprep.mubr.f32.mxu0 0.0
    %4801 = vmatmul.mubr.f32.gmra.mxu0 %v4374
    %v4802 = vpop.f32.mrf.mxu0
    %v4803 = vadd.f32 %v4196, %v4802
    %v4804 = vpop.f32.mrf.mxu0
    %4805 = vmatprep.mubr.f32.mxu0 0.0
    %4806 = vmatmul.mubr.f32.gmra.mxu0 %v4377
    %v4807 = vpop.f32.mrf.mxu0
    %v4808 = vadd.f32 %v4196, %v4807
    %v4809 = vpop.f32.mrf.mxu0
    %4810 = vmatprep.mubr.f32.mxu0 0.0
    %4811 = vmatmul.mubr.f32.gmra.mxu0 %v4380
    %v4812 = vpop.f32.mrf.mxu0
    %v4813 = vadd.f32 %v4196, %v4812
    %v4814 = vpop.f32.mrf.mxu0
    %4815 = vmatprep.mubr.f32.mxu0 0.0
    %4816 = vmatmul.mubr.f32.gmra.mxu0 %v4383
    %v4817 = vpop.f32.mrf.mxu0
    %v4818 = vadd.f32 %v4196, %v4817
    %v4819 = vpop.f32.mrf.mxu0
    %4820 = vmatprep.mubr.f32.mxu0 0.0
    %4821 = vmatmul.mubr.f32.gmra.mxu0 %v4386
    %v4822 = vpop.f32.mrf.mxu0
    %v4823 = vadd.f32 %v4196, %v4822
    %v4824 = vpop.f32.mrf.mxu0
    %4825 = vmatprep.mubr.f32.mxu0 0.0
    %4826 = vmatmul.mubr.f32.gmra.mxu0 %v4389
    %v4827 = vpop.f32.mrf.mxu0
    %v4828 = vadd.f32 %v4196, %v4827
    %v4829 = vpop.f32.mrf.mxu0
    %4830 = vmatprep.mubr.f32.mxu0 0.0
    %4831 = vmatmul.mubr.f32.gmra.mxu0 %v4392
    %v4832 = vpop.f32.mrf.mxu0
    %v4833 = vadd.f32 %v4196, %v4832
    %v4834 = vpop.f32.mrf.mxu0
    %4835 = vmatprep.mubr.f32.mxu0 0.0
    %4836 = vmatmul.mubr.f32.gmra.mxu0 %v4395
    %v4837 = vpop.f32.mrf.mxu0
    %v4838 = vadd.f32 %v4196, %v4837
    %v4839 = vpop.f32.mrf.mxu0
    %4840 = vmatprep.mubr.f32.mxu0 0.0
    %4841 = vmatmul.mubr.f32.gmra.mxu0 %v4398
    %v4842 = vpop.f32.mrf.mxu0
    %v4843 = vadd.f32 %v4196, %v4842
    %v4844 = vpop.f32.mrf.mxu0
    %4845 = vmatprep.mubr.f32.mxu0 0.0
    %4846 = vmatmul.mubr.f32.gmra.mxu0 %v4401
    %v4847 = vpop.f32.mrf.mxu0
    %v4848 = vadd.f32 %v4196, %v4847
    %v4849 = vpop.f32.mrf.mxu0
    %4850 = vmatprep.mubr.f32.mxu0 0.0
    %4851 = vmatmul.mubr.f32.gmra.mxu0 %v4404
    %v4852 = vpop.f32.mrf.mxu0
    %v4853 = vadd.f32 %v4196, %v4852
    %v4854 = vpop.f32.mrf.mxu0
    %4855 = vmatprep.mubr.f32.mxu0 0.0
    %4856 = vmatmul.mubr.f32.gmra.mxu0 %v4407
    %v4857 = vpop.f32.mrf.mxu0
    %v4858 = vadd.f32 %v4196, %v4857
    %v4859 = vpop.f32.mrf.mxu0
    %4860 = vmatprep.mubr.f32.mxu0 0.0
    %4861 = vmatmul.mubr.f32.gmra.mxu0 %v4410
    %v4862 = vpop.f32.mrf.mxu0
    %v4863 = vadd.f32 %v4196, %v4862
    %v4864 = vpop.f32.mrf.mxu0
    %4865 = vmatprep.mubr.f32.mxu0 0.0
    %4866 = vmatmul.mubr.f32.gmra.mxu0 %v4413
    %v4867 = vpop.f32.mrf.mxu0
    %v4868 = vadd.f32 %v4196, %v4867
    %v4869 = vpop.f32.mrf.mxu0
    %4870 = vmatprep.mubr.f32.mxu0 0.0
    %4871 = vmatmul.mubr.f32.gmra.mxu0 %v4416
    %v4872 = vpop.f32.mrf.mxu0
    %v4873 = vadd.f32 %v4196, %v4872
    %v4874 = vpop.f32.mrf.mxu0
    %4875 = vmatprep.mubr.f32.mxu0 0.0
    %4876 = vmatmul.mubr.f32.gmra.mxu0 %v4419
    %v4877 = vpop.f32.mrf.mxu0
    %v4878 = vadd.f32 %v4196, %v4877
    %v4879 = vpop.f32.mrf.mxu0
    %4880 = vmatprep.mubr.f32.mxu0 0.0
    %4881 = vmatmul.mubr.f32.gmra.mxu0 %v4422
    %v4882 = vpop.f32.mrf.mxu0
    %v4883 = vadd.f32 %v4196, %v4882
    %v4884 = vpop.f32.mrf.mxu0
    %4885 = vmatprep.mubr.f32.mxu0 0.0
    %4886 = vmatmul.mubr.f32.gmra.mxu0 %v4425
    %v4887 = vpop.f32.mrf.mxu0
    %v4888 = vadd.f32 %v4196, %v4887
    %v4889 = vpop.f32.mrf.mxu0
    %4890 = vmatprep.mubr.f32.mxu0 0.0
    %4891 = vmatmul.mubr.f32.gmra.mxu0 %v4428
    %v4892 = vpop.f32.mrf.mxu0
    %v4893 = vadd.f32 %v4196, %v4892
    %v4894 = vpop.f32.mrf.mxu0
    %4895 = vmatprep.mubr.f32.mxu0 0.0
    %4896 = vmatmul.mubr.f32.gmra.mxu0 %v4431
    %v4897 = vpop.f32.mrf.mxu0
    %v4898 = vadd.f32 %v4196, %v4897
    %v4899 = vpop.f32.mrf.mxu0
    %4900 = vmatprep.mubr.f32.mxu0 0.0
    %4901 = vmatmul.mubr.f32.gmra.mxu0 %v4434
    %v4902 = vpop.f32.mrf.mxu0
    %v4903 = vadd.f32 %v4196, %v4902
    %v4904 = vpop.f32.mrf.mxu0
    %4905 = vmatprep.mubr.f32.mxu0 0.0
    %4906 = vmatmul.mubr.f32.gmra.mxu0 %v4437
    %v4907 = vpop.f32.mrf.mxu0
    %v4908 = vadd.f32 %v4196, %v4907
    %v4909 = vpop.f32.mrf.mxu0
    %4910 = vmatprep.mubr.f32.mxu0 0.0
    %4911 = vmatmul.mubr.f32.gmra.mxu0 %v4440
    %v4912 = vpop.f32.mrf.mxu0
    %v4913 = vadd.f32 %v4196, %v4912
    %v4914 = vpop.f32.mrf.mxu0
    %4915 = vdwg.mxu0
    %v4916 = vmax.f32 %v4513, 0.0
    %v4917 = vmax.f32 %v4518, 0.0
    %v4918 = vmax.f32 %v4523, 0.0
    %v4919 = vmax.f32 %v4528, 0.0
    %v4920 = vmax.f32 %v4533, 0.0
    %v4921 = vmax.f32 %v4538, 0.0
    %v4922 = vmax.f32 %v4543, 0.0
    %v4923 = vmax.f32 %v4548, 0.0
    %v4924 = vmax.f32 %v4553, 0.0
    %v4925 = vmax.f32 %v4558, 0.0
    %v4926 = vmax.f32 %v4563, 0.0
    %v4927 = vmax.f32 %v4568, 0.0
    %v4928 = vmax.f32 %v4573, 0.0
    %v4929 = vmax.f32 %v4578, 0.0
    %v4930 = vmax.f32 %v4583, 0.0
    %v4931 = vmax.f32 %v4588, 0.0
    %v4932 = vmax.f32 %v4593, 0.0
    %v4933 = vmax.f32 %v4598, 0.0
    %v4934 = vmax.f32 %v4603, 0.0
    %v4935 = vmax.f32 %v4608, 0.0
    %v4936 = vmax.f32 %v4613, 0.0
    %v4937 = vmax.f32 %v4618, 0.0
    %v4938 = vmax.f32 %v4623, 0.0
    %v4939 = vmax.f32 %v4628, 0.0
    %v4940 = vmax.f32 %v4633, 0.0
    %v4941 = vmax.f32 %v4638, 0.0
    %v4942 = vmax.f32 %v4643, 0.0
    %v4943 = vmax.f32 %v4648, 0.0
    %v4944 = vmax.f32 %v4653, 0.0
    %v4945 = vmax.f32 %v4658, 0.0
    %v4946 = vmax.f32 %v4663, 0.0
    %v4947 = vmax.f32 %v4668, 0.0
    %v4948 = vmax.f32 %v4673, 0.0
    %v4949 = vmax.f32 %v4678, 0.0
    %v4950 = vmax.f32 %v4683, 0.0
    %v4951 = vmax.f32 %v4688, 0.0
    %v4952 = vmax.f32 %v4693, 0.0
    %v4953 = vmax.f32 %v4698, 0.0
    %v4954 = vmax.f32 %v4703, 0.0
    %v4955 = vmax.f32 %v4708, 0.0
    %v4956 = vmax.f32 %v4713, 0.0
    %v4957 = vmax.f32 %v4718, 0.0
    %v4958 = vmax.f32 %v4723, 0.0
    %v4959 = vmax.f32 %v4728, 0.0
    %v4960 = vmax.f32 %v4733, 0.0
    %v4961 = vmax.f32 %v4738, 0.0
    %v4962 = vmax.f32 %v4743, 0.0
    %v4963 = vmax.f32 %v4748, 0.0
    %v4964 = vmax.f32 %v4753, 0.0
    %v4965 = vmax.f32 %v4758, 0.0
    %v4966 = vmax.f32 %v4763, 0.0
    %v4967 = vmax.f32 %v4768, 0.0
    %v4968 = vmax.f32 %v4773, 0.0
    %v4969 = vmax.f32 %v4778, 0.0
    %v4970 = vmax.f32 %v4783, 0.0
    %v4971 = vmax.f32 %v4788, 0.0
    %v4972 = vmax.f32 %v4793, 0.0
    %v4973 = vmax.f32 %v4798, 0.0
    %v4974 = vmax.f32 %v4803, 0.0
    %v4975 = vmax.f32 %v4808, 0.0
    %v4976 = vmax.f32 %v4813, 0.0
    %v4977 = vmax.f32 %v4818, 0.0
    %v4978 = vmax.f32 %v4823, 0.0
    %v4979 = vmax.f32 %v4828, 0.0
    %v4980 = vmax.f32 %v4833, 0.0
    %v4981 = vmax.f32 %v4838, 0.0
    %v4982 = vmax.f32 %v4843, 0.0
    %v4983 = vmax.f32 %v4848, 0.0
    %v4984 = vmax.f32 %v4853, 0.0
    %v4985 = vmax.f32 %v4858, 0.0
    %v4986 = vmax.f32 %v4863, 0.0
    %v4987 = vmax.f32 %v4868, 0.0
    %v4988 = vmax.f32 %v4873, 0.0
    %v4989 = vmax.f32 %v4878, 0.0
    %v4990 = vmax.f32 %v4883, 0.0
    %v4991 = vmax.f32 %v4888, 0.0
    %v4992 = vmax.f32 %v4893, 0.0
    %v4993 = vmax.f32 %v4898, 0.0
    %v4994 = vmax.f32 %v4903, 0.0
    %v4995 = vmax.f32 %v4908, 0.0
    %v4996 = vmax.f32 %v4913, 0.0
    %v4997 = vld [vmem:[%s1] sm:$0xff]
    %v4998 = vld [vmem:[%s1 + $0x8] sm:$0xf]
    %v5001 = vcombine.high %v4997, %v4997
    %v5003 = vunpack.c.l.s4 1983009808
    %v5004 = vunpack.c.0.s8 %v5003
    %v5005 = vlaneseq
    %v5006 = vshrl.u32 %v5005, 7
    %v5007 = vsub.s32 %v5004, %v5006
    %v5008 = vrot.slane %v4997, %v5007
    %v5010 = vunpack.c.l.s4 1983009808
    %v5011 = vunpack.c.0.s8 %v5010
    %v5012 = vlaneseq
    %v5013 = vshrl.u32 %v5012, 7
    %v5014 = vsub.s32 %v5011, %v5013
    %v5015 = vrot.slane %v5001, %v5014
    %v5016 = vcombine.high %v5008, %v5008
    %v5017 = vcombine.high %v5015, %v5015
    %v5019 = vunpack.c.l.s4 1983009808
    %v5020 = vunpack.c.0.s8 %v5019
    %v5021 = vlaneseq
    %v5022 = vshrl.u32 %v5021, 7
    %v5023 = vsub.s32 %v5020, %v5022
    %v5024 = vrot.slane %v4998, %v5023
    %v5025 = vcombine.high %v5024, %v5024
    %vm5031 = vcmask 64512
    %v5032 = vsel %vm5031, %v5025, 0
    %5034 = vmatprep.subr.mxu0 0.0
    %5035 = vmatpush1.msra.mxu0 %v4931
    %5036 = vmatprep.subr.mxu0 0.0
    %5037 = vmatpush1.msra.mxu0 %v4930
    %5038 = vmatprep.subr.mxu0 0.0
    %5039 = vmatpush1.msra.mxu0 %v4929
    %5040 = vmatprep.subr.mxu0 0.0
    %5041 = vmatpush1.msra.mxu0 %v4928
    %5042 = vmatprep.subr.mxu0 0.0
    %5043 = vmatpush1.msra.mxu0 %v4927
    %5044 = vmatprep.subr.mxu0 0.0
    %5045 = vmatpush1.msra.mxu0 %v4926
    %5046 = vmatprep.subr.mxu0 0.0
    %5047 = vmatpush1.msra.mxu0 %v4925
    %5048 = vmatprep.subr.mxu0 0.0
    %5049 = vmatpush1.msra.mxu0 %v4924
    %5050 = vmatprep.subr.mxu0 0.0
    %5051 = vmatpush1.msra.mxu0 %v4923
    %5052 = vmatprep.subr.mxu0 0.0
    %5053 = vmatpush1.msra.mxu0 %v4922
    %5054 = vmatprep.subr.mxu0 0.0
    %5055 = vmatpush1.msra.mxu0 %v4921
    %5056 = vmatprep.subr.mxu0 0.0
    %5057 = vmatpush1.msra.mxu0 %v4920
    %5058 = vmatprep.subr.mxu0 0.0
    %5059 = vmatpush1.msra.mxu0 %v4919
    %5060 = vmatprep.subr.mxu0 0.0
    %5061 = vmatpush1.msra.mxu0 %v4918
    %5062 = vmatprep.subr.mxu0 0.0
    %5063 = vmatpush1.msra.mxu0 %v4917
    %5064 = vmatprep.subr.mxu0 0.0
    %5065 = vmatpush1.msra.mxu0 %v4916
    %5066 = vmatprep.subr.mxu0 0.0
    %5067 = vmatpush2.msra.mxu0 %v4947
    %5068 = vmatprep.subr.mxu0 0.0
    %5069 = vmatpush2.msra.mxu0 %v4946
    %5070 = vmatprep.subr.mxu0 0.0
    %5071 = vmatpush2.msra.mxu0 %v4945
    %5072 = vmatprep.subr.mxu0 0.0
    %5073 = vmatpush2.msra.mxu0 %v4944
    %5074 = vmatprep.subr.mxu0 0.0
    %5075 = vmatpush2.msra.mxu0 %v4943
    %5076 = vmatprep.subr.mxu0 0.0
    %5077 = vmatpush2.msra.mxu0 %v4942
    %5078 = vmatprep.subr.mxu0 0.0
    %5079 = vmatpush2.msra.mxu0 %v4941
    %5080 = vmatprep.subr.mxu0 0.0
    %5081 = vmatpush2.msra.mxu0 %v4940
    %5082 = vmatprep.subr.mxu0 0.0
    %5083 = vmatpush2.msra.mxu0 %v4939
    %5084 = vmatprep.subr.mxu0 0.0
    %5085 = vmatpush2.msra.mxu0 %v4938
    %5086 = vmatprep.subr.mxu0 0.0
    %5087 = vmatpush2.msra.mxu0 %v4937
    %5088 = vmatprep.subr.mxu0 0.0
    %5089 = vmatpush2.msra.mxu0 %v4936
    %5090 = vmatprep.subr.mxu0 0.0
    %5091 = vmatpush2.msra.mxu0 %v4935
    %5092 = vmatprep.subr.mxu0 0.0
    %5093 = vmatpush2.msra.mxu0 %v4934
    %5094 = vmatprep.subr.mxu0 0.0
    %5095 = vmatpush2.msra.mxu0 %v4933
    %5096 = vmatprep.subr.mxu0 0.0
    %5097 = vmatpush2.msra.mxu0 %v4932
    %5098 = vmatprep.mubr.f32.mxu0 %v5016
    %5099 = vmatmul.mubr.f32.gmra.mxu0 %v5008
    %v5100 = vpop.f32.mrf.mxu0
    %v5101 = vadd.f32 0.0, %v5100
    %v5102 = vpop.f32.mrf.mxu0
    %5103 = vdwg.mxu0
    %5104 = vmatprep.subr.mxu0 0.0
    %5105 = vmatpush1.msra.mxu0 %v4963
    %5106 = vmatprep.subr.mxu0 0.0
    %5107 = vmatpush1.msra.mxu0 %v4962
    %5108 = vmatprep.subr.mxu0 0.0
    %5109 = vmatpush1.msra.mxu0 %v4961
    %5110 = vmatprep.subr.mxu0 0.0
    %5111 = vmatpush1.msra.mxu0 %v4960
    %5112 = vmatprep.subr.mxu0 0.0
    %5113 = vmatpush1.msra.mxu0 %v4959
    %5114 = vmatprep.subr.mxu0 0.0
    %5115 = vmatpush1.msra.mxu0 %v4958
    %5116 = vmatprep.subr.mxu0 0.0
    %5117 = vmatpush1.msra.mxu0 %v4957
    %5118 = vmatprep.subr.mxu0 0.0
    %5119 = vmatpush1.msra.mxu0 %v4956
    %5120 = vmatprep.subr.mxu0 0.0
    %5121 = vmatpush1.msra.mxu0 %v4955
    %5122 = vmatprep.subr.mxu0 0.0
    %5123 = vmatpush1.msra.mxu0 %v4954
    %5124 = vmatprep.subr.mxu0 0.0
    %5125 = vmatpush1.msra.mxu0 %v4953
    %5126 = vmatprep.subr.mxu0 0.0
    %5127 = vmatpush1.msra.mxu0 %v4952
    %5128 = vmatprep.subr.mxu0 0.0
    %5129 = vmatpush1.msra.mxu0 %v4951
    %5130 = vmatprep.subr.mxu0 0.0
    %5131 = vmatpush1.msra.mxu0 %v4950
    %5132 = vmatprep.subr.mxu0 0.0
    %5133 = vmatpush1.msra.mxu0 %v4949
    %5134 = vmatprep.subr.mxu0 0.0
    %5135 = vmatpush1.msra.mxu0 %v4948
    %5136 = vmatprep.subr.mxu0 0.0
    %5137 = vmatpush2.msra.mxu0 %v4979
    %5138 = vmatprep.subr.mxu0 0.0
    %5139 = vmatpush2.msra.mxu0 %v4978
    %5140 = vmatprep.subr.mxu0 0.0
    %5141 = vmatpush2.msra.mxu0 %v4977
    %5142 = vmatprep.subr.mxu0 0.0
    %5143 = vmatpush2.msra.mxu0 %v4976
    %5144 = vmatprep.subr.mxu0 0.0
    %5145 = vmatpush2.msra.mxu0 %v4975
    %5146 = vmatprep.subr.mxu0 0.0
    %5147 = vmatpush2.msra.mxu0 %v4974
    %5148 = vmatprep.subr.mxu0 0.0
    %5149 = vmatpush2.msra.mxu0 %v4973
    %5150 = vmatprep.subr.mxu0 0.0
    %5151 = vmatpush2.msra.mxu0 %v4972
    %5152 = vmatprep.subr.mxu0 0.0
    %5153 = vmatpush2.msra.mxu0 %v4971
    %5154 = vmatprep.subr.mxu0 0.0
    %5155 = vmatpush2.msra.mxu0 %v4970
    %5156 = vmatprep.subr.mxu0 0.0
    %5157 = vmatpush2.msra.mxu0 %v4969
    %5158 = vmatprep.subr.mxu0 0.0
    %5159 = vmatpush2.msra.mxu0 %v4968
    %5160 = vmatprep.subr.mxu0 0.0
    %5161 = vmatpush2.msra.mxu0 %v4967
    %5162 = vmatprep.subr.mxu0 0.0
    %5163 = vmatpush2.msra.mxu0 %v4966
    %5164 = vmatprep.subr.mxu0 0.0
    %5165 = vmatpush2.msra.mxu0 %v4965
    %5166 = vmatprep.subr.mxu0 0.0
    %5167 = vmatpush2.msra.mxu0 %v4964
    %5168 = vmatprep.mubr.f32.mxu0 %v5017
    %5169 = vmatmul.mubr.f32.gmra.mxu0 %v5015
    %v5170 = vpop.f32.mrf.mxu0
    %v5171 = vadd.f32 %v5101, %v5170
    %v5172 = vpop.f32.mrf.mxu0
    %5173 = vdwg.mxu0
    %5174 = vmatprep.subr.mxu0 0.0
    %5175 = vmatpush1.msra.mxu0 %v4995
    %5176 = vmatprep.subr.mxu0 0.0
    %5177 = vmatpush1.msra.mxu0 %v4994
    %5178 = vmatprep.subr.mxu0 0.0
    %5179 = vmatpush1.msra.mxu0 %v4993
    %5180 = vmatprep.subr.mxu0 0.0
    %5181 = vmatpush1.msra.mxu0 %v4992
    %5182 = vmatprep.subr.mxu0 0.0
    %5183 = vmatpush1.msra.mxu0 %v4991
    %5184 = vmatprep.subr.mxu0 0.0
    %5185 = vmatpush1.msra.mxu0 %v4990
    %5186 = vmatprep.subr.mxu0 0.0
    %5187 = vmatpush1.msra.mxu0 %v4989
    %5188 = vmatprep.subr.mxu0 0.0
    %5189 = vmatpush1.msra.mxu0 %v4988
    %5190 = vmatprep.subr.mxu0 0.0
    %5191 = vmatpush1.msra.mxu0 %v4987
    %5192 = vmatprep.subr.mxu0 0.0
    %5193 = vmatpush1.msra.mxu0 %v4986
    %5194 = vmatprep.subr.mxu0 0.0
    %5195 = vmatpush1.msra.mxu0 %v4985
    %5196 = vmatprep.subr.mxu0 0.0
    %5197 = vmatpush1.msra.mxu0 %v4984
    %5198 = vmatprep.subr.mxu0 0.0
    %5199 = vmatpush1.msra.mxu0 %v4983
    %5200 = vmatprep.subr.mxu0 0.0
    %5201 = vmatpush1.msra.mxu0 %v4982
    %5202 = vmatprep.subr.mxu0 0.0
    %5203 = vmatpush1.msra.mxu0 %v4981
    %5204 = vmatprep.subr.mxu0 0.0
    %5205 = vmatpush1.msra.mxu0 %v4980
    %5206 = vmatprep.subr.mxu0 0.0
    %5207 = vmatpush2.msra.mxu0 0.0
    %5208 = vmatprep.subr.mxu0 0.0
    %5209 = vmatpush2.msra.mxu0 0.0
    %5210 = vmatprep.subr.mxu0 0.0
    %5211 = vmatpush2.msra.mxu0 0.0
    %5212 = vmatprep.subr.mxu0 0.0
    %5213 = vmatpush2.msra.mxu0 0.0
    %5214 = vmatprep.subr.mxu0 0.0
    %5215 = vmatpush2.msra.mxu0 0.0
    %5216 = vmatprep.subr.mxu0 0.0
    %5217 = vmatpush2.msra.mxu0 0.0
    %5218 = vmatprep.subr.mxu0 0.0
    %5219 = vmatpush2.msra.mxu0 0.0
    %5220 = vmatprep.subr.mxu0 0.0
    %5221 = vmatpush2.msra.mxu0 0.0
    %5222 = vmatprep.subr.mxu0 0.0
    %5223 = vmatpush2.msra.mxu0 0.0
    %5224 = vmatprep.subr.mxu0 0.0
    %5225 = vmatpush2.msra.mxu0 0.0
    %5226 = vmatprep.subr.mxu0 0.0
    %5227 = vmatpush2.msra.mxu0 0.0
    %5228 = vmatprep.subr.mxu0 0.0
    %5229 = vmatpush2.msra.mxu0 0.0
    %5230 = vmatprep.subr.mxu0 0.0
    %5231 = vmatpush2.msra.mxu0 0.0
    %5232 = vmatprep.subr.mxu0 0.0
    %5233 = vmatpush2.msra.mxu0 0.0
    %5234 = vmatprep.subr.mxu0 0.0
    %5235 = vmatpush2.msra.mxu0 0.0
    %5236 = vmatprep.subr.mxu0 0.0
    %5237 = vmatpush2.msra.mxu0 %v4996
    %5238 = vmatprep.mubr.f32.mxu0 %v5032
    %5239 = vmatmul.mubr.f32.gmra.mxu0 %v5024
    %v5240 = vpop.f32.mrf.mxu0
    %v5241 = vadd.f32 %v5171, %v5240
    %v5242 = vpop.f32.mrf.mxu0
    %5243 = vdwg.mxu0
    %v5244 = vld [vmem:[%s4] sm:$0xff]
    %v5245 = vld [vmem:[%s4 + $0x8] sm:$0xff]
    %v5246 = vld [vmem:[%s4 + $0x10] sm:$0xff]
    %v5247 = vld [vmem:[%s4 + $0x18] sm:$0xff]
    %v5248 = vld [vmem:[#allocation3] sm:$0x1]
    %v5250 = vlaneseq
    %v5251 = vshrl.u32 %v5250, 7
    %v5252 = vsub.s32 0, %v5251
    %v5253 = vrot.slane %v5248, %v5252
    %vm5255 = vcmask 261120
    %v5257 = vsel %vm5255, %v5241, 0
    %5259 = vmatprep.subr.mxu0 0.0
    %5260 = vmatpush1.msra.mxu0 0.0
    %5261 = vmatprep.subr.mxu0 0.0
    %5262 = vmatpush1.msra.mxu0 0.0
    %5263 = vmatprep.subr.mxu0 0.0
    %5264 = vmatpush1.msra.mxu0 0.0
    %5265 = vmatprep.subr.mxu0 0.0
    %5266 = vmatpush1.msra.mxu0 0.0
    %5267 = vmatprep.subr.mxu0 0.0
    %5268 = vmatpush1.msra.mxu0 0.0
    %5269 = vmatprep.subr.mxu0 0.0
    %5270 = vmatpush1.msra.mxu0 0.0
    %5271 = vmatprep.subr.mxu0 0.0
    %5272 = vmatpush1.msra.mxu0 0.0
    %5273 = vmatprep.subr.mxu0 0.0
    %5274 = vmatpush1.msra.mxu0 0.0
    %5275 = vmatprep.subr.mxu0 0.0
    %5276 = vmatpush1.msra.mxu0 0.0
    %5277 = vmatprep.subr.mxu0 0.0
    %5278 = vmatpush1.msra.mxu0 0.0
    %5279 = vmatprep.subr.mxu0 0.0
    %5280 = vmatpush1.msra.mxu0 0.0
    %5281 = vmatprep.subr.mxu0 0.0
    %5282 = vmatpush1.msra.mxu0 0.0
    %5283 = vmatprep.subr.mxu0 0.0
    %5284 = vmatpush1.msra.mxu0 %v5247
    %5285 = vmatprep.subr.mxu0 0.0
    %5286 = vmatpush1.msra.mxu0 %v5246
    %5287 = vmatprep.subr.mxu0 0.0
    %5288 = vmatpush1.msra.mxu0 %v5245
    %5289 = vmatprep.subr.mxu0 0.0
    %5290 = vmatpush1.msra.mxu0 %v5244
    %5291 = vmatprep.subr.mxu0 0.0
    %5292 = vmatpush2.msra.mxu0 0.0
    %5293 = vmatprep.subr.mxu0 0.0
    %5294 = vmatpush2.msra.mxu0 0.0
    %5295 = vmatprep.subr.mxu0 0.0
    %5296 = vmatpush2.msra.mxu0 0.0
    %5297 = vmatprep.subr.mxu0 0.0
    %5298 = vmatpush2.msra.mxu0 0.0
    %5299 = vmatprep.subr.mxu0 0.0
    %5300 = vmatpush2.msra.mxu0 0.0
    %5301 = vmatprep.subr.mxu0 0.0
    %5302 = vmatpush2.msra.mxu0 0.0
    %5303 = vmatprep.subr.mxu0 0.0
    %5304 = vmatpush2.msra.mxu0 0.0
    %5305 = vmatprep.subr.mxu0 0.0
    %5306 = vmatpush2.msra.mxu0 0.0
    %5307 = vmatprep.subr.mxu0 0.0
    %5308 = vmatpush2.msra.mxu0 0.0
    %5309 = vmatprep.subr.mxu0 0.0
    %5310 = vmatpush2.msra.mxu0 0.0
    %5311 = vmatprep.subr.mxu0 0.0
    %5312 = vmatpush2.msra.mxu0 0.0
    %5313 = vmatprep.subr.mxu0 0.0
    %5314 = vmatpush2.msra.mxu0 0.0
    %5315 = vmatprep.subr.mxu0 0.0
    %5316 = vmatpush2.msra.mxu0 0.0
    %5317 = vmatprep.subr.mxu0 0.0
    %5318 = vmatpush2.msra.mxu0 0.0
    %5319 = vmatprep.subr.mxu0 0.0
    %5320 = vmatpush2.msra.mxu0 0.0
    %5321 = vmatprep.subr.mxu0 0.0
    %5322 = vmatpush2.msra.mxu0 0.0
    %5323 = vmatprep.mubr.f32.mxu0 0.0
    %5324 = vmatmul.mubr.f32.gmra.mxu0 %v5257
    %v5325 = vpop.f32.mrf.mxu0
    %v5326 = vadd.f32 %v5253, %v5325
    %v5327 = vpop.f32.mrf.mxu0
    %5328 = vdwg.mxu0
    %v5329 = vxor.u32 %v5326, 2147483648
    %v5330 = vmul.f32 %v5329, 1.442695
    %v5331 = vpow.pop %v5330
    %v5332 = vadd.f32 %v5331, 1.0
    %v5333 = vrcp.pop %v5332
    %v5334 = vmul.f32 1.0, %v5333
    %vm5335 = vcmp.lt.f32.partialorder %v5334, 0.5
    %v5336 = vmul.f32 %v5241, 0.3
    %v5337 = vsel %vm5335, 1, 0
    %5338 = vset.pattern.permute.xlu0 0
    %5339 = vperm.xlu0 %5338, %v5337
    %v5340 = vpop.permute.xlu0 %5339
    %vm5341 = vcmp.eq.s32.totalorder %v5340, 1
    %v5342 = vsel %vm5341, %v5336, %v5241
    %v5343 = vld [vmem:[%s6] sm:$0xff]
    %v5344 = vld [vmem:[%s6 + $0x8] sm:$0xff]
    %v5345 = vld [vmem:[%s6 + $0x10] sm:$0xff]
    %v5346 = vld [vmem:[%s6 + $0x18] sm:$0xff]
    %v5347 = vld [vmem:[%s7] sm:$0xff]
    %v5348 = vld [vmem:[%s7 + $0x8] sm:$0xff]
    %v5349 = vld [vmem:[%s7 + $0x10] sm:$0xff]
    %v5350 = vld [vmem:[%s7 + $0x18] sm:$0xff]
    %v5351 = vld [vmem:[%s7 + $0x20] sm:$0xff]
    %v5352 = vld [vmem:[%s7 + $0x28] sm:$0xff]
    %v5353 = vld [vmem:[%s7 + $0x30] sm:$0xff]
    %v5354 = vld [vmem:[%s7 + $0x38] sm:$0xff]
    %5356 = vrot.lane.b32.xlu0 %v5342, 96
    %v5357 = vpop.permute.xlu0 %5356
    %vm5358 = vcmask 523264
    %v5359 = vsel %vm5358, %v5357, 0
    %5361 = vmatprep.subr.mxu0 0.0
    %5362 = vmatpush1.msra.mxu0 0.0
    %5363 = vmatprep.subr.mxu0 0.0
    %5364 = vmatpush1.msra.mxu0 0.0
    %5365 = vmatprep.subr.mxu0 0.0
    %5366 = vmatpush1.msra.mxu0 0.0
    %5367 = vmatprep.subr.mxu0 0.0
    %5368 = vmatpush1.msra.mxu0 0.0
    %5369 = vmatprep.subr.mxu0 0.0
    %5370 = vmatpush1.msra.mxu0 0.0
    %5371 = vmatprep.subr.mxu0 0.0
    %5372 = vmatpush1.msra.mxu0 0.0
    %5373 = vmatprep.subr.mxu0 0.0
    %5374 = vmatpush1.msra.mxu0 0.0
    %5375 = vmatprep.subr.mxu0 0.0
    %5376 = vmatpush1.msra.mxu0 0.0
    %5377 = vmatprep.subr.mxu0 0.0
    %5378 = vmatpush1.msra.mxu0 %v5354
    %5379 = vmatprep.subr.mxu0 0.0
    %5380 = vmatpush1.msra.mxu0 %v5353
    %5381 = vmatprep.subr.mxu0 0.0
    %5382 = vmatpush1.msra.mxu0 %v5352
    %5383 = vmatprep.subr.mxu0 0.0
    %5384 = vmatpush1.msra.mxu0 %v5351
    %5385 = vmatprep.subr.mxu0 0.0
    %5386 = vmatpush1.msra.mxu0 %v5350
    %5387 = vmatprep.subr.mxu0 0.0
    %5388 = vmatpush1.msra.mxu0 %v5349
    %5389 = vmatprep.subr.mxu0 0.0
    %5390 = vmatpush1.msra.mxu0 %v5348
    %5391 = vmatprep.subr.mxu0 0.0
    %5392 = vmatpush1.msra.mxu0 %v5347
    %5393 = vmatprep.subr.mxu0 0.0
    %5394 = vmatpush2.msra.mxu0 0.0
    %5395 = vmatprep.subr.mxu0 0.0
    %5396 = vmatpush2.msra.mxu0 0.0
    %5397 = vmatprep.subr.mxu0 0.0
    %5398 = vmatpush2.msra.mxu0 0.0
    %5399 = vmatprep.subr.mxu0 0.0
    %5400 = vmatpush2.msra.mxu0 0.0
    %5401 = vmatprep.subr.mxu0 0.0
    %5402 = vmatpush2.msra.mxu0 0.0
    %5403 = vmatprep.subr.mxu0 0.0
    %5404 = vmatpush2.msra.mxu0 0.0
    %5405 = vmatprep.subr.mxu0 0.0
    %5406 = vmatpush2.msra.mxu0 0.0
    %5407 = vmatprep.subr.mxu0 0.0
    %5408 = vmatpush2.msra.mxu0 0.0
    %5409 = vmatprep.subr.mxu0 0.0
    %5410 = vmatpush2.msra.mxu0 0.0
    %5411 = vmatprep.subr.mxu0 0.0
    %5412 = vmatpush2.msra.mxu0 0.0
    %5413 = vmatprep.subr.mxu0 0.0
    %5414 = vmatpush2.msra.mxu0 0.0
    %5415 = vmatprep.subr.mxu0 0.0
    %5416 = vmatpush2.msra.mxu0 0.0
    %5417 = vmatprep.subr.mxu0 0.0
    %5418 = vmatpush2.msra.mxu0 0.0
    %5419 = vmatprep.subr.mxu0 0.0
    %5420 = vmatpush2.msra.mxu0 0.0
    %5421 = vmatprep.subr.mxu0 0.0
    %5422 = vmatpush2.msra.mxu0 0.0
    %5423 = vmatprep.subr.mxu0 0.0
    %5424 = vmatpush2.msra.mxu0 0.0
    %5425 = vmatprep.mubr.f32.mxu0 0.0
    %5426 = vmatmul.mubr.f32.gmra.mxu0 %v5359
    %v5427 = vpop.f32.mrf.mxu0
    %v5428 = vadd.f32 0.0, %v5427
    %v5429 = vpop.f32.mrf.mxu0
    %5430 = vdwg.mxu0
    %5431 = vmatprep.subr.mxu0 0.0
    %5432 = vmatpush1.msra.mxu0 0.0
    %5433 = vmatprep.subr.mxu0 0.0
    %5434 = vmatpush1.msra.mxu0 0.0
    %5435 = vmatprep.subr.mxu0 0.0
    %5436 = vmatpush1.msra.mxu0 0.0
    %5437 = vmatprep.subr.mxu0 0.0
    %5438 = vmatpush1.msra.mxu0 0.0
    %5439 = vmatprep.subr.mxu0 0.0
    %5440 = vmatpush1.msra.mxu0 0.0
    %5441 = vmatprep.subr.mxu0 0.0
    %5442 = vmatpush1.msra.mxu0 0.0
    %5443 = vmatprep.subr.mxu0 0.0
    %5444 = vmatpush1.msra.mxu0 0.0
    %5445 = vmatprep.subr.mxu0 0.0
    %5446 = vmatpush1.msra.mxu0 0.0
    %5447 = vmatprep.subr.mxu0 0.0
    %5448 = vmatpush1.msra.mxu0 0.0
    %5449 = vmatprep.subr.mxu0 0.0
    %5450 = vmatpush1.msra.mxu0 0.0
    %5451 = vmatprep.subr.mxu0 0.0
    %5452 = vmatpush1.msra.mxu0 0.0
    %5453 = vmatprep.subr.mxu0 0.0
    %5454 = vmatpush1.msra.mxu0 0.0
    %5455 = vmatprep.subr.mxu0 0.0
    %5456 = vmatpush1.msra.mxu0 %v5346
    %5457 = vmatprep.subr.mxu0 0.0
    %5458 = vmatpush1.msra.mxu0 %v5345
    %5459 = vmatprep.subr.mxu0 0.0
    %5460 = vmatpush1.msra.mxu0 %v5344
    %5461 = vmatprep.subr.mxu0 0.0
    %5462 = vmatpush1.msra.mxu0 %v5343
    %5463 = vmatprep.subr.mxu0 0.0
    %5464 = vmatpush2.msra.mxu0 0.0
    %5465 = vmatprep.subr.mxu0 0.0
    %5466 = vmatpush2.msra.mxu0 0.0
    %5467 = vmatprep.subr.mxu0 0.0
    %5468 = vmatpush2.msra.mxu0 0.0
    %5469 = vmatprep.subr.mxu0 0.0
    %5470 = vmatpush2.msra.mxu0 0.0
    %5471 = vmatprep.subr.mxu0 0.0
    %5472 = vmatpush2.msra.mxu0 0.0
    %5473 = vmatprep.subr.mxu0 0.0
    %5474 = vmatpush2.msra.mxu0 0.0
    %5475 = vmatprep.subr.mxu0 0.0
    %5476 = vmatpush2.msra.mxu0 0.0
    %5477 = vmatprep.subr.mxu0 0.0
    %5478 = vmatpush2.msra.mxu0 0.0
    %5479 = vmatprep.subr.mxu0 0.0
    %5480 = vmatpush2.msra.mxu0 0.0
    %5481 = vmatprep.subr.mxu0 0.0
    %5482 = vmatpush2.msra.mxu0 0.0
    %5483 = vmatprep.subr.mxu0 0.0
    %5484 = vmatpush2.msra.mxu0 0.0
    %5485 = vmatprep.subr.mxu0 0.0
    %5486 = vmatpush2.msra.mxu0 0.0
    %5487 = vmatprep.subr.mxu0 0.0
    %5488 = vmatpush2.msra.mxu0 0.0
    %5489 = vmatprep.subr.mxu0 0.0
    %5490 = vmatpush2.msra.mxu0 0.0
    %5491 = vmatprep.subr.mxu0 0.0
    %5492 = vmatpush2.msra.mxu0 0.0
    %5493 = vmatprep.subr.mxu0 0.0
    %5494 = vmatpush2.msra.mxu0 0.0
    %5495 = vmatprep.mubr.f32.mxu0 0.0
    %5496 = vmatmul.mubr.f32.gmra.mxu0 %v5257
    %v5497 = vpop.f32.mrf.mxu0
    %v5498 = vadd.f32 %v5428, %v5497
    %v5499 = vpop.f32.mrf.mxu0
    %5500 = vdwg.mxu0
    %v5501 = vld [vmem:[%s8] sm:$0x1]
    %v5503 = vlaneseq
    %v5504 = vshrl.u32 %v5503, 7
    %v5505 = vsub.s32 0, %v5504
    %v5506 = vrot.slane %v5501, %v5505
    %v5508 = vadd.f32 %v5498, %v5506
    %v5509 = vmax.f32 %v5508, 0.0
    %v5510 = vld [vmem:[%s9] sm:$0xff]
    %v5511 = vld [vmem:[%s9 + $0x8] sm:$0xff]
    %v5512 = vld [vmem:[%s9 + $0x10] sm:$0xff]
    %v5513 = vld [vmem:[%s9 + $0x18] sm:$0xff]
    %v5514 = vld [vmem:[%s10] sm:$0x1]
    %v5516 = vlaneseq
    %v5517 = vshrl.u32 %v5516, 7
    %v5518 = vsub.s32 0, %v5517
    %v5519 = vrot.slane %v5514, %v5518
    %v5522 = vsel %vm5255, %v5509, 0
    %5524 = vmatprep.subr.mxu0 0.0
    %5525 = vmatpush1.msra.mxu0 0.0
    %5526 = vmatprep.subr.mxu0 0.0
    %5527 = vmatpush1.msra.mxu0 0.0
    %5528 = vmatprep.subr.mxu0 0.0
    %5529 = vmatpush1.msra.mxu0 0.0
    %5530 = vmatprep.subr.mxu0 0.0
    %5531 = vmatpush1.msra.mxu0 0.0
    %5532 = vmatprep.subr.mxu0 0.0
    %5533 = vmatpush1.msra.mxu0 0.0
    %5534 = vmatprep.subr.mxu0 0.0
    %5535 = vmatpush1.msra.mxu0 0.0
    %5536 = vmatprep.subr.mxu0 0.0
    %5537 = vmatpush1.msra.mxu0 0.0
    %5538 = vmatprep.subr.mxu0 0.0
    %5539 = vmatpush1.msra.mxu0 0.0
    %5540 = vmatprep.subr.mxu0 0.0
    %5541 = vmatpush1.msra.mxu0 0.0
    %5542 = vmatprep.subr.mxu0 0.0
    %5543 = vmatpush1.msra.mxu0 0.0
    %5544 = vmatprep.subr.mxu0 0.0
    %5545 = vmatpush1.msra.mxu0 0.0
    %5546 = vmatprep.subr.mxu0 0.0
    %5547 = vmatpush1.msra.mxu0 0.0
    %5548 = vmatprep.subr.mxu0 0.0
    %5549 = vmatpush1.msra.mxu0 %v5513
    %5550 = vmatprep.subr.mxu0 0.0
    %5551 = vmatpush1.msra.mxu0 %v5512
    %5552 = vmatprep.subr.mxu0 0.0
    %5553 = vmatpush1.msra.mxu0 %v5511
    %5554 = vmatprep.subr.mxu0 0.0
    %5555 = vmatpush1.msra.mxu0 %v5510
    %5556 = vmatprep.subr.mxu0 0.0
    %5557 = vmatpush2.msra.mxu0 0.0
    %5558 = vmatprep.subr.mxu0 0.0
    %5559 = vmatpush2.msra.mxu0 0.0
    %5560 = vmatprep.subr.mxu0 0.0
    %5561 = vmatpush2.msra.mxu0 0.0
    %5562 = vmatprep.subr.mxu0 0.0
    %5563 = vmatpush2.msra.mxu0 0.0
    %5564 = vmatprep.subr.mxu0 0.0
    %5565 = vmatpush2.msra.mxu0 0.0
    %5566 = vmatprep.subr.mxu0 0.0
    %5567 = vmatpush2.msra.mxu0 0.0
    %5568 = vmatprep.subr.mxu0 0.0
    %5569 = vmatpush2.msra.mxu0 0.0
    %5570 = vmatprep.subr.mxu0 0.0
    %5571 = vmatpush2.msra.mxu0 0.0
    %5572 = vmatprep.subr.mxu0 0.0
    %5573 = vmatpush2.msra.mxu0 0.0
    %5574 = vmatprep.subr.mxu0 0.0
    %5575 = vmatpush2.msra.mxu0 0.0
    %5576 = vmatprep.subr.mxu0 0.0
    %5577 = vmatpush2.msra.mxu0 0.0
    %5578 = vmatprep.subr.mxu0 0.0
    %5579 = vmatpush2.msra.mxu0 0.0
    %5580 = vmatprep.subr.mxu0 0.0
    %5581 = vmatpush2.msra.mxu0 0.0
    %5582 = vmatprep.subr.mxu0 0.0
    %5583 = vmatpush2.msra.mxu0 0.0
    %5584 = vmatprep.subr.mxu0 0.0
    %5585 = vmatpush2.msra.mxu0 0.0
    %5586 = vmatprep.subr.mxu0 0.0
    %5587 = vmatpush2.msra.mxu0 0.0
    %5588 = vmatprep.mubr.f32.mxu0 0.0
    %5589 = vmatmul.mubr.f32.gmra.mxu0 %v5522
    %v5590 = vpop.f32.mrf.mxu0
    %v5591 = vadd.f32 %v5519, %v5590
    %v5592 = vpop.f32.mrf.mxu0
    %5593 = vdwg.mxu0
    %v5594 = vmax.f32 %v5591, 0.0
    %v5595 = vld [vmem:[%s11] sm:$0xff]
    %v5596 = vld [vmem:[%s11 + $0x8] sm:$0xff]
    %v5597 = vld [vmem:[%s12] sm:$0x1]
    %v5599 = vlaneseq
    %v5600 = vshrl.u32 %v5599, 7
    %v5601 = vsub.s32 0, %v5600
    %v5602 = vrot.slane %v5597, %v5601
    %vm5604 = vcmask 130048
    %v5606 = vsel %vm5604, %v5594, 0
    %5608 = vmatprep.subr.mxu0 0.0
    %5609 = vmatpush1.msra.mxu0 0.0
    %5610 = vmatprep.subr.mxu0 0.0
    %5611 = vmatpush1.msra.mxu0 0.0
    %5612 = vmatprep.subr.mxu0 0.0
    %5613 = vmatpush1.msra.mxu0 0.0
    %5614 = vmatprep.subr.mxu0 0.0
    %5615 = vmatpush1.msra.mxu0 0.0
    %5616 = vmatprep.subr.mxu0 0.0
    %5617 = vmatpush1.msra.mxu0 0.0
    %5618 = vmatprep.subr.mxu0 0.0
    %5619 = vmatpush1.msra.mxu0 0.0
    %5620 = vmatprep.subr.mxu0 0.0
    %5621 = vmatpush1.msra.mxu0 0.0
    %5622 = vmatprep.subr.mxu0 0.0
    %5623 = vmatpush1.msra.mxu0 0.0
    %5624 = vmatprep.subr.mxu0 0.0
    %5625 = vmatpush1.msra.mxu0 0.0
    %5626 = vmatprep.subr.mxu0 0.0
    %5627 = vmatpush1.msra.mxu0 0.0
    %5628 = vmatprep.subr.mxu0 0.0
    %5629 = vmatpush1.msra.mxu0 0.0
    %5630 = vmatprep.subr.mxu0 0.0
    %5631 = vmatpush1.msra.mxu0 0.0
    %5632 = vmatprep.subr.mxu0 0.0
    %5633 = vmatpush1.msra.mxu0 0.0
    %5634 = vmatprep.subr.mxu0 0.0
    %5635 = vmatpush1.msra.mxu0 0.0
    %5636 = vmatprep.subr.mxu0 0.0
    %5637 = vmatpush1.msra.mxu0 %v5596
    %5638 = vmatprep.subr.mxu0 0.0
    %5639 = vmatpush1.msra.mxu0 %v5595
    %5640 = vmatprep.subr.mxu0 0.0
    %5641 = vmatpush2.msra.mxu0 0.0
    %5642 = vmatprep.subr.mxu0 0.0
    %5643 = vmatpush2.msra.mxu0 0.0
    %5644 = vmatprep.subr.mxu0 0.0
    %5645 = vmatpush2.msra.mxu0 0.0
    %5646 = vmatprep.subr.mxu0 0.0
    %5647 = vmatpush2.msra.mxu0 0.0
    %5648 = vmatprep.subr.mxu0 0.0
    %5649 = vmatpush2.msra.mxu0 0.0
    %5650 = vmatprep.subr.mxu0 0.0
    %5651 = vmatpush2.msra.mxu0 0.0
    %5652 = vmatprep.subr.mxu0 0.0
    %5653 = vmatpush2.msra.mxu0 0.0
    %5654 = vmatprep.subr.mxu0 0.0
    %5655 = vmatpush2.msra.mxu0 0.0
    %5656 = vmatprep.subr.mxu0 0.0
    %5657 = vmatpush2.msra.mxu0 0.0
    %5658 = vmatprep.subr.mxu0 0.0
    %5659 = vmatpush2.msra.mxu0 0.0
    %5660 = vmatprep.subr.mxu0 0.0
    %5661 = vmatpush2.msra.mxu0 0.0
    %5662 = vmatprep.subr.mxu0 0.0
    %5663 = vmatpush2.msra.mxu0 0.0
    %5664 = vmatprep.subr.mxu0 0.0
    %5665 = vmatpush2.msra.mxu0 0.0
    %5666 = vmatprep.subr.mxu0 0.0
    %5667 = vmatpush2.msra.mxu0 0.0
    %5668 = vmatprep.subr.mxu0 0.0
    %5669 = vmatpush2.msra.mxu0 0.0
    %5670 = vmatprep.subr.mxu0 0.0
    %5671 = vmatpush2.msra.mxu0 0.0
    %5672 = vmatprep.mubr.f32.mxu0 0.0
    %5673 = vmatmul.mubr.f32.gmra.mxu0 %v5606
    %v5674 = vpop.f32.mrf.mxu0
    %v5675 = vadd.f32 %v5602, %v5674
    %v5676 = vpop.f32.mrf.mxu0
    %5677 = vdwg.mxu0
    %5678 = vst [vmem:[#allocation4] sm:$0x3] %v5675
    // Predicated region
    $region54: #{tpu_custom_call.1} parent=1 // pred_check
      _
    $region55: #{tpu_custom_call.1} parent=1 // pred_check_branch
      %5680 = sbr.rel (0) target = $region57
    $region56: #{tpu_custom_call.1} parent=1 // pred_region
      %s5682 = ssub.s32 32, 32
      %5683 = vsyncadd [#allocation5], %s5682
      %s5685 = sshll.u32 [#allocation4], 4
      %s5686 = int_to_ptr.vmem [resolvable:$true] %s5685
      %5688 = dma.vmem_to_hbm [thread:$0]  %s5686, 32, %s13, [#allocation5]
    $region57: #{tpu_custom_call.1} parent=1 // pred_fallthru
      _
    // Predicated region
    $region58: #{tpu_custom_call.1} parent=1 // pred_check
      _
    $region59: #{tpu_custom_call.1} parent=1 // pred_check_branch
      %5690 = sbr.rel (0) target = $region61
    $region60: #{tpu_custom_call.1} parent=1 // pred_region
      %5691 = dma.done [#allocation5], 32
    $region61: #{tpu_custom_call.1} parent=1 // pred_fallthru
      _
    %5692 = vsyncpa [#allocation5], 1

</llo_original>
